<compile_context>
chip_gen: v7x
topology: tpu7x:2x2x1
jax: 0.10.0
libtpu: 0.0.40
codegen_flags: <defaults>
</compile_context>

<pallas_src>
import jax
import jax.numpy as jnp
from jax import lax
from jax.experimental import pallas as pl
from jax.experimental.pallas import tpu as pltpu

# ---------------------------------------------------------------------------
# Problem sizes (consistent with the module's grapher() slicing rules)
# ---------------------------------------------------------------------------
S = 8            # num_shifts            = state.shape[0] (per sample)
F = 10           # shift_feature_count   (the `shift_features` arg)
W = 6            # num_workers           = state.shape[1] - shift_features
FW = F + W       # state row width
EMB = 32         # embedding dim (torch.zeros(num_workers, 32) in grapher)
H = 32           # encoder hidden dim

SF_START = S - 1           # grapher: state.shape[0] - 1
SF_END = F                 # grapher: state.shape[1] - num_workers
E_IN = SF_END - SF_START   # columns fed to encoder.shift_embedding

LANES = 128                # lane-dense output width (workers in lanes 0..W-1)
NEG = -1e30

# packed parameter slab: one [128, 32] f32 array, sublane-aligned rows
_W_EMB_R0, _W_EMB_R1 = 0, FW       # zero-padded embedding weight [FW, EMB]
_W_SELF_R0, _W_SELF_R1 = 16, 48    # [EMB, H]
_W_NBR_R0, _W_NBR_R1 = 48, 80      # [EMB, H]
_W_DEC_R0, _W_DEC_R1 = 80, 112     # [H, H]
_B_EMB_ROW = 112                   # [1, EMB]
_B_ENC_ROW = 120                   # [1, H]
SLAB_ROWS = 128


# ---------------------------------------------------------------------------
# Kernel: block of `block_b` states per grid step, weights resident in VMEM
# ---------------------------------------------------------------------------
def policy_kernel(state_ref, assign_t_ref, slab_ref, out_ref):
    tb = state_ref.shape[0]

    # resident packed parameters (static, sublane-aligned slices are free)
    w_emb = slab_ref[_W_EMB_R0:_W_EMB_R1, :]          # [FW, EMB] (zero-padded)
    w_self = slab_ref[_W_SELF_R0:_W_SELF_R1, :]       # [EMB, H]
    w_nbr = slab_ref[_W_NBR_R0:_W_NBR_R1, :]          # [EMB, H]
    w_dec = slab_ref[_W_DEC_R0:_W_DEC_R1, :]          # [H, H]
    b_emb = slab_ref[_B_EMB_ROW:_B_EMB_ROW + 1, :]    # [1, EMB]
    b_enc = slab_ref[_B_ENC_ROW:_B_ENC_ROW + 1, :]    # [1, H]

    state = state_ref[...]                            # [TB, S, FW]
    assign_t = assign_t_ref[...]                      # [TB, W, S] (workers x shifts)

    # ---- grapher(): shift embeddings -------------------------------------
    # w_emb is zero outside cols [SF_START:SF_END], so the full row width can
    # be fed to one clean 2-D MXU matmul (no in-kernel lane slicing of state).
    state2d = state.reshape(tb * S, FW)
    emb2d = jnp.dot(state2d, w_emb,
                    preferred_element_type=jnp.float32) + b_emb        # [TB*S, EMB]

    # ---- grapher(): shift_index = first shift with no assignment ---------
    col_ids = lax.broadcasted_iota(jnp.int32, (tb, 1, S), 2)            # [TB,1,S]
    assigned = jnp.sum(assign_t, axis=1, keepdims=True)                 # [TB,1,S]
    shift_idx = jnp.min(jnp.where(assigned == 0.0, col_ids, S),
                        axis=2, keepdims=True)                          # [TB,1,1]

    # ---- grapher(): edge features y (edges of already-assigned shifts) ---
    # exact one-hot inputs -> float equality is safe here
    y_t = jnp.where(jnp.logical_and(assign_t == 1.0, col_ids < shift_idx),
                    1.0, 0.0)                                           # [TB,W,S]

    # ---- encoder, shift side (all shift nodes; batch-flattened matmuls) --
    h_shift2d = jnp.maximum(
        jnp.dot(emb2d, w_self, preferred_element_type=jnp.float32) + b_enc, 0.0)
    query2d = jnp.dot(h_shift2d, w_dec,
                      preferred_element_type=jnp.float32)               # [TB*S, H]
    query3 = query2d.reshape(tb, S, H)

    # ---- encoder, worker side ---------------------------------------------
    # worker j <- sum_i (1 + y[i,j]) * embedded_s[i], then @ w_nbr.
    # Re-associate as (1+y)^T @ (emb @ w_nbr): the dense part is one 2-D MXU
    # matmul and the tiny ragged per-state contraction stays on the VPU
    # (unrolled over S=8), avoiding TB under-filled batched MXU ops.
    emb_nbr = jnp.dot(emb2d, w_nbr,
                      preferred_element_type=jnp.float32).reshape(tb, S, H)
    agg = (1.0 + y_t[:, :, 0:1]) * emb_nbr[:, 0:1, :]                   # [TB,W,H]
    for k in range(1, S):
        agg = agg + (1.0 + y_t[:, :, k:k + 1]) * emb_nbr[:, k:k + 1, :]
    h_worker = jnp.maximum(agg + b_enc[None, :, :], 0.0)                # [TB,W,H]

    # ---- decoder -----------------------------------------------------------
    # select the query row for shift_index (one-hot mask + sublane reduce)
    row_ids = lax.broadcasted_iota(jnp.int32, (tb, S, 1), 1)            # [TB,S,1]
    sel = (row_ids == shift_idx).astype(jnp.float32)                    # [TB,S,1]
    q_sel = jnp.sum(sel * query3, axis=1, keepdims=True)                # [TB,1,H]

    # pointer scores on the VPU (no M=1 MXU matmul)
    scores = jnp.sum(q_sel * h_worker, axis=2, keepdims=True)           # [TB,W,1]

    # place worker scores into lanes 0..W-1 of a lane-dense [TB,1,128] block
    lane_w = lax.broadcasted_iota(jnp.int32, (W, LANES), 1)
    sub_w = lax.broadcasted_iota(jnp.int32, (W, LANES), 0)
    place = (lane_w == sub_w).astype(jnp.float32)                       # [W,128]
    scores_l = jnp.sum(scores * place[None, :, :], axis=1, keepdims=True)  # [TB,1,128]

    lane_ids = lax.broadcasted_iota(jnp.int32, (tb, 1, LANES), 2)
    scores_l = jnp.where(lane_ids < W, scores_l, NEG)

    # stable softmax over workers; reciprocal on the EUP slot
    m = jnp.max(scores_l, axis=2, keepdims=True)
    e = jnp.exp(scores_l - m)
    denom = jnp.sum(e, axis=2, keepdims=True)
    out_ref[...] = e * pl.reciprocal(denom, approx=True)                # [TB,1,128]


# ---------------------------------------------------------------------------
# Wrapper
# ---------------------------------------------------------------------------
def pack_params(params):
    """Pack the 6 small parameter tensors into one [128, 32] f32 slab."""
    w_emb, b_emb, w_self, w_nbr, b_enc, w_dec = params
    w_emb_pad = jnp.zeros((FW, EMB), jnp.float32).at[SF_START:SF_END, :].set(w_emb)
    slab = jnp.zeros((SLAB_ROWS, EMB), jnp.float32)
    slab = slab.at[_W_EMB_R0:_W_EMB_R1, :].set(w_emb_pad)
    slab = slab.at[_W_SELF_R0:_W_SELF_R1, :].set(w_self)
    slab = slab.at[_W_NBR_R0:_W_NBR_R1, :].set(w_nbr)
    slab = slab.at[_W_DEC_R0:_W_DEC_R1, :].set(w_dec)
    slab = slab.at[_B_EMB_ROW, :].set(b_emb[0])
    slab = slab.at[_B_ENC_ROW, :].set(b_enc[0])
    return slab


def policy_forward(state, count_shifts, shift_features, params, *, block_b=16):
    """Batched Policy.forward: state [B, S, F+W] -> probs [B, W]."""
    del count_shifts  # TODO(synk): original injected decoder also consumed count_shifts
    b, s, fw = state.shape
    w = fw - shift_features
    assert b % block_b == 0, "batch must be a multiple of block_b"

    slab = pack_params(params)
    # wrapper-side split/transpose: pure XLA plumbing, avoids in-kernel lane
    # slices and puts workers on sublanes / shifts on lanes for the kernel.
    assign_t = jnp.transpose(state[:, :, shift_features:], (0, 2, 1))   # [B, W, S]

    out = pl.pallas_call(
        policy_kernel,
        out_shape=jax.ShapeDtypeStruct((b, 1, LANES), jnp.float32),
        grid_spec=pltpu.PrefetchScalarGridSpec(
            num_scalar_prefetch=0,
            grid=(b // block_b,),
            in_specs=[
                pl.BlockSpec((block_b, s, fw), lambda i: (i, 0, 0)),
                pl.BlockSpec((block_b, w, s), lambda i: (i, 0, 0)),
                pl.BlockSpec((SLAB_ROWS, EMB), lambda i: (0, 0)),  # resident weights
            ],
            out_specs=pl.BlockSpec((block_b, 1, LANES), lambda i: (i, 0, 0)),
        ),
        compiler_params=pltpu.CompilerParams(
            dimension_semantics=("parallel",)),
    )(state, assign_t, slab)
    return out.reshape(b, LANES)[:, :w]


def make_params(key):
    ks = jax.random.split(key, 6)
    scale = 0.1
    w_emb = scale * jax.random.normal(ks[0], (E_IN, EMB), jnp.float32)
    b_emb = scale * jax.random.normal(ks[1], (1, EMB), jnp.float32)
    w_self = scale * jax.random.normal(ks[2], (EMB, H), jnp.float32)
    w_nbr = scale * jax.random.normal(ks[3], (EMB, H), jnp.float32)
    b_enc = scale * jax.random.normal(ks[4], (1, H), jnp.float32)
    w_dec = scale * jax.random.normal(ks[5], (H, H), jnp.float32)
    return (w_emb, b_emb, w_self, w_nbr, b_enc, w_dec)


def policy_reference(state, shift_features, params):
    """Pure-JAX reference mirroring the synthesized Policy forward pass."""
    w_emb, b_emb, w_self, w_nbr, b_enc, w_dec = params
    s = state.shape[1]

    def single(st):
        emb = st[:, SF_START:SF_END] @ w_emb + b_emb            # [S, EMB]
        assign = st[:, shift_features:]                         # [S, W]
        unassigned = jnp.sum(assign, axis=1) == 0.0
        idx = jnp.min(jnp.where(unassigned, jnp.arange(s), s))
        y = jnp.where((assign == 1.0) & (jnp.arange(s)[:, None] < idx), 1.0, 0.0)
        agg = (1.0 + y).T @ emb                                 # [W, EMB]
        h_s = jax.nn.relu(emb @ w_self + b_enc)                 # [S, H]
        h_w = jax.nn.relu(agg @ w_nbr + b_enc)                  # [W, H]
        onehot = (jnp.arange(s) == idx).astype(jnp.float32)
        query = (onehot @ h_s) @ w_dec                          # [H]
        scores = h_w @ query                                    # [W]
        return jax.nn.softmax(scores)

    return jax.vmap(single)(state)


if __name__ == "__main__":
    B = 64
    key = jax.random.PRNGKey(0)
    k_feat, k_n, k_w, k_par = jax.random.split(key, 4)

    # deterministic batch of states: n_b in [0, S-1] shifts already assigned
    # (so every state has at least one open shift, as grapher() requires)
    feats = jax.random.uniform(k_feat, (B, S, F), jnp.float32)
    n_assigned = jax.random.randint(k_n, (B,), 0, S)
    workers = jax.random.randint(k_w, (B, S), 0, W)
    assigned = (jnp.arange(S)[None, :] < n_assigned[:, None]).astype(jnp.float32)
    assign = jax.nn.one_hot(workers, W, dtype=jnp.float32) * assigned[:, :, None]
    state = jnp.concatenate([feats, assign], axis=2)            # [B, S, F+W]

    params = make_params(k_par)

    probs = policy_forward(state, count_shifts=S, shift_features=F, params=params)
    probs = jax.block_until_ready(probs)

    ref = policy_reference(state, F, params)

    assert probs.shape == (B, W)
    assert bool(jnp.all(probs >= 0.0))
    assert bool(jnp.all(jnp.abs(jnp.sum(probs, axis=1) - 1.0) < 1e-2))
    assert bool(jnp.all(jnp.abs(probs - ref) < 5e-3))
    print("KERNEL_OK")
</pallas_src>

<mosaic_0001>
module attributes {stable_mosaic.version = 11 : i64} {
  func.func @policy_kernel(%arg0: i32, %arg1: memref<16x8x16xf32, #tpu.memory_space<vmem>>, %arg2: memref<16x6x8xf32, #tpu.memory_space<vmem>>, %arg3: memref<128x32xf32, #tpu.memory_space<vmem>>, %arg4: memref<16x1x128xf32, #tpu.memory_space<vmem>>) attributes {dimension_semantics = [#tpu.dimension_semantics<parallel>], iteration_bounds = array<i64: 4>, scalar_prefetch = 0 : i64, scratch_operands = 0 : i64, tpu.core_type = #tpu.core_type<tc>, window_params = [{transform_indices = @transform_0, window_bounds = array<i64: 16, 8, 16>}, {transform_indices = @transform_1, window_bounds = array<i64: 16, 6, 8>}, {pipeline_mode = #tpu.pipeline_mode<synchronous>, transform_indices = @transform_2, window_bounds = array<i64: 128, 32>}, {transform_indices = @transform_3, window_bounds = array<i64: 16, 1, 128>}]} {
    %c0 = arith.constant 0 : index
    %c0_0 = arith.constant 0 : index
    %0 = vector.load %arg3[%c0, %c0_0] : memref<128x32xf32, #tpu.memory_space<vmem>>, vector<16x32xf32>
    %c16 = arith.constant 16 : index
    %c0_1 = arith.constant 0 : index
    %1 = vector.load %arg3[%c16, %c0_1] : memref<128x32xf32, #tpu.memory_space<vmem>>, vector<32x32xf32>
    %c48 = arith.constant 48 : index
    %c0_2 = arith.constant 0 : index
    %2 = vector.load %arg3[%c48, %c0_2] : memref<128x32xf32, #tpu.memory_space<vmem>>, vector<32x32xf32>
    %c80 = arith.constant 80 : index
    %c0_3 = arith.constant 0 : index
    %3 = vector.load %arg3[%c80, %c0_3] : memref<128x32xf32, #tpu.memory_space<vmem>>, vector<32x32xf32>
    %c112 = arith.constant 112 : index
    %c0_4 = arith.constant 0 : index
    %4 = vector.load %arg3[%c112, %c0_4] : memref<128x32xf32, #tpu.memory_space<vmem>>, vector<1x32xf32>
    %c120 = arith.constant 120 : index
    %c0_5 = arith.constant 0 : index
    %5 = vector.load %arg3[%c120, %c0_5] : memref<128x32xf32, #tpu.memory_space<vmem>>, vector<1x32xf32>
    %c0_6 = arith.constant 0 : index
    %c0_7 = arith.constant 0 : index
    %c0_8 = arith.constant 0 : index
    %6 = vector.load %arg1[%c0_6, %c0_7, %c0_8] : memref<16x8x16xf32, #tpu.memory_space<vmem>>, vector<16x8x16xf32>
    %c0_9 = arith.constant 0 : index
    %c0_10 = arith.constant 0 : index
    %c0_11 = arith.constant 0 : index
    %7 = vector.load %arg2[%c0_9, %c0_10, %c0_11] : memref<16x6x8xf32, #tpu.memory_space<vmem>>, vector<16x6x8xf32>
    %8 = vector.shape_cast %6 : vector<16x8x16xf32> to vector<128x16xf32>
    %cst = arith.constant dense<0.000000e+00> : vector<128x32xf32>
    %9 = tpu.matmul %8, %0, %cst {dimension_numbers = #tpu.dot_dimension_numbers<[1], [0], [0], [1], [0, 0, 1, 1], [], []>} : vector<128x16xf32>, vector<16x32xf32>, vector<128x32xf32> -> vector<128x32xf32>
    %10 = vector.broadcast %4 : vector<1x32xf32> to vector<128x32xf32>
    %11 = arith.addf %9, %10 : vector<128x32xf32>
    %12 = tpu.iota {dimensions = array<i32: 2>} : vector<16x1x8xi32>
    %cst_12 = arith.constant dense<0.000000e+00> : vector<16x8xf32>
    %13 = vector.multi_reduction <add>, %7, %cst_12 [1] : vector<16x6x8xf32> to vector<16x8xf32>
    %14 = vector.shape_cast %13 : vector<16x8xf32> to vector<16x1x8xf32>
    %cst_13 = arith.constant 0.000000e+00 : f32
    %15 = vector.broadcast %cst_13 : f32 to vector<16x1x8xf32>
    %16 = arith.cmpf oeq, %14, %15 : vector<16x1x8xf32>
    %c8_i32 = arith.constant 8 : i32
    %17 = vector.broadcast %c8_i32 : i32 to vector<16x1x8xi32>
    %18 = arith.select %16, %12, %17 : vector<16x1x8xi1>, vector<16x1x8xi32>
    %cst_14 = arith.constant dense<2147483647> : vector<16x1xi32>
    %19 = vector.multi_reduction <minsi>, %18, %cst_14 [2] : vector<16x1x8xi32> to vector<16x1xi32>
    %20 = vector.shape_cast %19 : vector<16x1xi32> to vector<16x1x1xi32>
    %cst_15 = arith.constant 1.000000e+00 : f32
    %21 = vector.broadcast %cst_15 : f32 to vector<16x6x8xf32>
    %22 = arith.cmpf oeq, %7, %21 : vector<16x6x8xf32>
    %23 = vector.broadcast %20 : vector<16x1x1xi32> to vector<16x1x8xi32>
    %24 = arith.cmpi slt, %12, %23 : vector<16x1x8xi32>
    %25 = vector.broadcast %24 : vector<16x1x8xi1> to vector<16x6x8xi1>
    %26 = arith.andi %22, %25 : vector<16x6x8xi1>
    %cst_16 = arith.constant 1.000000e+00 : f32
    %cst_17 = arith.constant 0.000000e+00 : f32
    %27 = vector.broadcast %cst_16 : f32 to vector<16x6x8xf32>
    %28 = vector.broadcast %cst_17 : f32 to vector<16x6x8xf32>
    %29 = arith.select %26, %27, %28 : vector<16x6x8xi1>, vector<16x6x8xf32>
    %cst_18 = arith.constant dense<0.000000e+00> : vector<128x32xf32>
    %30 = tpu.matmul %11, %1, %cst_18 {dimension_numbers = #tpu.dot_dimension_numbers<[1], [0], [0], [1], [0, 0, 1, 1], [], []>} : vector<128x32xf32>, vector<32x32xf32>, vector<128x32xf32> -> vector<128x32xf32>
    %31 = vector.broadcast %5 : vector<1x32xf32> to vector<128x32xf32>
    %32 = arith.addf %30, %31 : vector<128x32xf32>
    %cst_19 = arith.constant 0.000000e+00 : f32
    %33 = vector.broadcast %cst_19 : f32 to vector<128x32xf32>
    %34 = arith.maximumf %32, %33 : vector<128x32xf32>
    %cst_20 = arith.constant dense<0.000000e+00> : vector<128x32xf32>
    %35 = tpu.matmul %34, %3, %cst_20 {dimension_numbers = #tpu.dot_dimension_numbers<[1], [0], [0], [1], [0, 0, 1, 1], [], []>} : vector<128x32xf32>, vector<32x32xf32>, vector<128x32xf32> -> vector<128x32xf32>
    %36 = vector.shape_cast %35 : vector<128x32xf32> to vector<16x8x32xf32>
    %cst_21 = arith.constant dense<0.000000e+00> : vector<128x32xf32>
    %37 = tpu.matmul %11, %2, %cst_21 {dimension_numbers = #tpu.dot_dimension_numbers<[1], [0], [0], [1], [0, 0, 1, 1], [], []>} : vector<128x32xf32>, vector<32x32xf32>, vector<128x32xf32> -> vector<128x32xf32>
    %38 = vector.shape_cast %37 : vector<128x32xf32> to vector<16x8x32xf32>
    %39 = vector.extract_strided_slice %29 {offsets = [0, 0, 0], sizes = [16, 6, 1], strides = [1, 1, 1]} : vector<16x6x8xf32> to vector<16x6x1xf32>
    %cst_22 = arith.constant 1.000000e+00 : f32
    %40 = vector.broadcast %cst_22 : f32 to vector<16x6x1xf32>
    %41 = arith.addf %40, %39 : vector<16x6x1xf32>
    %42 = vector.extract_strided_slice %38 {offsets = [0, 0, 0], sizes = [16, 1, 32], strides = [1, 1, 1]} : vector<16x8x32xf32> to vector<16x1x32xf32>
    %43 = vector.broadcast %41 : vector<16x6x1xf32> to vector<16x6x32xf32>
    %44 = vector.broadcast %42 : vector<16x1x32xf32> to vector<16x6x32xf32>
    %45 = arith.mulf %43, %44 : vector<16x6x32xf32>
    %46 = vector.extract_strided_slice %29 {offsets = [0, 0, 1], sizes = [16, 6, 1], strides = [1, 1, 1]} : vector<16x6x8xf32> to vector<16x6x1xf32>
    %cst_23 = arith.constant 1.000000e+00 : f32
    %47 = vector.broadcast %cst_23 : f32 to vector<16x6x1xf32>
    %48 = arith.addf %47, %46 : vector<16x6x1xf32>
    %49 = vector.extract_strided_slice %38 {offsets = [0, 1, 0], sizes = [16, 1, 32], strides = [1, 1, 1]} : vector<16x8x32xf32> to vector<16x1x32xf32>
    %50 = vector.broadcast %48 : vector<16x6x1xf32> to vector<16x6x32xf32>
    %51 = vector.broadcast %49 : vector<16x1x32xf32> to vector<16x6x32xf32>
    %52 = arith.mulf %50, %51 : vector<16x6x32xf32>
    %53 = arith.addf %45, %52 : vector<16x6x32xf32>
    %54 = vector.extract_strided_slice %29 {offsets = [0, 0, 2], sizes = [16, 6, 1], strides = [1, 1, 1]} : vector<16x6x8xf32> to vector<16x6x1xf32>
    %cst_24 = arith.constant 1.000000e+00 : f32
    %55 = vector.broadcast %cst_24 : f32 to vector<16x6x1xf32>
    %56 = arith.addf %55, %54 : vector<16x6x1xf32>
    %57 = vector.extract_strided_slice %38 {offsets = [0, 2, 0], sizes = [16, 1, 32], strides = [1, 1, 1]} : vector<16x8x32xf32> to vector<16x1x32xf32>
    %58 = vector.broadcast %56 : vector<16x6x1xf32> to vector<16x6x32xf32>
    %59 = vector.broadcast %57 : vector<16x1x32xf32> to vector<16x6x32xf32>
    %60 = arith.mulf %58, %59 : vector<16x6x32xf32>
    %61 = arith.addf %53, %60 : vector<16x6x32xf32>
    %62 = vector.extract_strided_slice %29 {offsets = [0, 0, 3], sizes = [16, 6, 1], strides = [1, 1, 1]} : vector<16x6x8xf32> to vector<16x6x1xf32>
    %cst_25 = arith.constant 1.000000e+00 : f32
    %63 = vector.broadcast %cst_25 : f32 to vector<16x6x1xf32>
    %64 = arith.addf %63, %62 : vector<16x6x1xf32>
    %65 = vector.extract_strided_slice %38 {offsets = [0, 3, 0], sizes = [16, 1, 32], strides = [1, 1, 1]} : vector<16x8x32xf32> to vector<16x1x32xf32>
    %66 = vector.broadcast %64 : vector<16x6x1xf32> to vector<16x6x32xf32>
    %67 = vector.broadcast %65 : vector<16x1x32xf32> to vector<16x6x32xf32>
    %68 = arith.mulf %66, %67 : vector<16x6x32xf32>
    %69 = arith.addf %61, %68 : vector<16x6x32xf32>
    %70 = vector.extract_strided_slice %29 {offsets = [0, 0, 4], sizes = [16, 6, 1], strides = [1, 1, 1]} : vector<16x6x8xf32> to vector<16x6x1xf32>
    %cst_26 = arith.constant 1.000000e+00 : f32
    %71 = vector.broadcast %cst_26 : f32 to vector<16x6x1xf32>
    %72 = arith.addf %71, %70 : vector<16x6x1xf32>
    %73 = vector.extract_strided_slice %38 {offsets = [0, 4, 0], sizes = [16, 1, 32], strides = [1, 1, 1]} : vector<16x8x32xf32> to vector<16x1x32xf32>
    %74 = vector.broadcast %72 : vector<16x6x1xf32> to vector<16x6x32xf32>
    %75 = vector.broadcast %73 : vector<16x1x32xf32> to vector<16x6x32xf32>
    %76 = arith.mulf %74, %75 : vector<16x6x32xf32>
    %77 = arith.addf %69, %76 : vector<16x6x32xf32>
    %78 = vector.extract_strided_slice %29 {offsets = [0, 0, 5], sizes = [16, 6, 1], strides = [1, 1, 1]} : vector<16x6x8xf32> to vector<16x6x1xf32>
    %cst_27 = arith.constant 1.000000e+00 : f32
    %79 = vector.broadcast %cst_27 : f32 to vector<16x6x1xf32>
    %80 = arith.addf %79, %78 : vector<16x6x1xf32>
    %81 = vector.extract_strided_slice %38 {offsets = [0, 5, 0], sizes = [16, 1, 32], strides = [1, 1, 1]} : vector<16x8x32xf32> to vector<16x1x32xf32>
    %82 = vector.broadcast %80 : vector<16x6x1xf32> to vector<16x6x32xf32>
    %83 = vector.broadcast %81 : vector<16x1x32xf32> to vector<16x6x32xf32>
    %84 = arith.mulf %82, %83 : vector<16x6x32xf32>
    %85 = arith.addf %77, %84 : vector<16x6x32xf32>
    %86 = vector.extract_strided_slice %29 {offsets = [0, 0, 6], sizes = [16, 6, 1], strides = [1, 1, 1]} : vector<16x6x8xf32> to vector<16x6x1xf32>
    %cst_28 = arith.constant 1.000000e+00 : f32
    %87 = vector.broadcast %cst_28 : f32 to vector<16x6x1xf32>
    %88 = arith.addf %87, %86 : vector<16x6x1xf32>
    %89 = vector.extract_strided_slice %38 {offsets = [0, 6, 0], sizes = [16, 1, 32], strides = [1, 1, 1]} : vector<16x8x32xf32> to vector<16x1x32xf32>
    %90 = vector.broadcast %88 : vector<16x6x1xf32> to vector<16x6x32xf32>
    %91 = vector.broadcast %89 : vector<16x1x32xf32> to vector<16x6x32xf32>
    %92 = arith.mulf %90, %91 : vector<16x6x32xf32>
    %93 = arith.addf %85, %92 : vector<16x6x32xf32>
    %94 = vector.extract_strided_slice %29 {offsets = [0, 0, 7], sizes = [16, 6, 1], strides = [1, 1, 1]} : vector<16x6x8xf32> to vector<16x6x1xf32>
    %cst_29 = arith.constant 1.000000e+00 : f32
    %95 = vector.broadcast %cst_29 : f32 to vector<16x6x1xf32>
    %96 = arith.addf %95, %94 : vector<16x6x1xf32>
    %97 = vector.extract_strided_slice %38 {offsets = [0, 7, 0], sizes = [16, 1, 32], strides = [1, 1, 1]} : vector<16x8x32xf32> to vector<16x1x32xf32>
    %98 = vector.broadcast %96 : vector<16x6x1xf32> to vector<16x6x32xf32>
    %99 = vector.broadcast %97 : vector<16x1x32xf32> to vector<16x6x32xf32>
    %100 = arith.mulf %98, %99 : vector<16x6x32xf32>
    %101 = arith.addf %93, %100 : vector<16x6x32xf32>
    %102 = vector.shape_cast %5 : vector<1x32xf32> to vector<1x1x32xf32>
    %103 = vector.broadcast %102 : vector<1x1x32xf32> to vector<16x6x32xf32>
    %104 = arith.addf %101, %103 : vector<16x6x32xf32>
    %cst_30 = arith.constant 0.000000e+00 : f32
    %105 = vector.broadcast %cst_30 : f32 to vector<16x6x32xf32>
    %106 = arith.maximumf %104, %105 : vector<16x6x32xf32>
    %107 = tpu.iota {dimensions = array<i32: 1>} : vector<16x8x1xi32>
    %108 = vector.broadcast %20 : vector<16x1x1xi32> to vector<16x8x1xi32>
    %109 = arith.cmpi eq, %107, %108 : vector<16x8x1xi32>
    %110 = arith.extui %109 : vector<16x8x1xi1> to vector<16x8x1xi32>
    %111 = arith.sitofp %110 : vector<16x8x1xi32> to vector<16x8x1xf32>
    %112 = vector.broadcast %111 : vector<16x8x1xf32> to vector<16x8x32xf32>
    %113 = arith.mulf %112, %36 : vector<16x8x32xf32>
    %cst_31 = arith.constant dense<0.000000e+00> : vector<16x32xf32>
    %114 = vector.multi_reduction <add>, %113, %cst_31 [1] : vector<16x8x32xf32> to vector<16x32xf32>
    %115 = vector.shape_cast %114 : vector<16x32xf32> to vector<16x1x32xf32>
    %116 = vector.broadcast %115 : vector<16x1x32xf32> to vector<16x6x32xf32>
    %117 = arith.mulf %116, %106 : vector<16x6x32xf32>
    %cst_32 = arith.constant dense<0.000000e+00> : vector<16x6xf32>
    %118 = vector.multi_reduction <add>, %117, %cst_32 [2] : vector<16x6x32xf32> to vector<16x6xf32>
    %119 = vector.shape_cast %118 : vector<16x6xf32> to vector<16x6x1xf32>
    %120 = tpu.iota {dimensions = array<i32: 1>} : vector<6x128xi32>
    %121 = tpu.iota {dimensions = array<i32: 0>} : vector<6x128xi32>
    %122 = arith.cmpi eq, %120, %121 : vector<6x128xi32>
    %123 = arith.extui %122 : vector<6x128xi1> to vector<6x128xi32>
    %124 = arith.sitofp %123 : vector<6x128xi32> to vector<6x128xf32>
    %125 = vector.shape_cast %124 : vector<6x128xf32> to vector<1x6x128xf32>
    %126 = vector.broadcast %119 : vector<16x6x1xf32> to vector<16x6x128xf32>
    %127 = vector.broadcast %125 : vector<1x6x128xf32> to vector<16x6x128xf32>
    %128 = arith.mulf %126, %127 : vector<16x6x128xf32>
    %cst_33 = arith.constant dense<0.000000e+00> : vector<16x128xf32>
    %129 = vector.multi_reduction <add>, %128, %cst_33 [1] : vector<16x6x128xf32> to vector<16x128xf32>
    %130 = vector.shape_cast %129 : vector<16x128xf32> to vector<16x1x128xf32>
    %131 = tpu.iota {dimensions = array<i32: 2>} : vector<16x1x128xi32>
    %c6_i32 = arith.constant 6 : i32
    %132 = vector.broadcast %c6_i32 : i32 to vector<16x1x128xi32>
    %133 = arith.cmpi slt, %131, %132 : vector<16x1x128xi32>
    %cst_34 = arith.constant -1.000000e+30 : f32
    %134 = vector.broadcast %cst_34 : f32 to vector<16x1x128xf32>
    %135 = arith.select %133, %130, %134 : vector<16x1x128xi1>, vector<16x1x128xf32>
    %cst_35 = arith.constant dense<0xFF800000> : vector<16x1xf32>
    %136 = vector.multi_reduction <maximumf>, %135, %cst_35 [2] : vector<16x1x128xf32> to vector<16x1xf32>
    %137 = vector.shape_cast %136 : vector<16x1xf32> to vector<16x1x1xf32>
    %138 = vector.broadcast %137 : vector<16x1x1xf32> to vector<16x1x128xf32>
    %139 = arith.subf %135, %138 : vector<16x1x128xf32>
    %140 = math.exp %139 : vector<16x1x128xf32>
    %cst_36 = arith.constant dense<0.000000e+00> : vector<16x1xf32>
    %141 = vector.multi_reduction <add>, %140, %cst_36 [2] : vector<16x1x128xf32> to vector<16x1xf32>
    %142 = vector.shape_cast %141 : vector<16x1xf32> to vector<16x1x1xf32>
    %143 = tpu.reciprocal %142 {approx = true} : vector<16x1x1xf32> -> vector<16x1x1xf32>
    %144 = vector.broadcast %143 : vector<16x1x1xf32> to vector<16x1x128xf32>
    %145 = arith.mulf %140, %144 : vector<16x1x128xf32>
    %c0_37 = arith.constant 0 : index
    %c0_38 = arith.constant 0 : index
    %c0_39 = arith.constant 0 : index
    %146 = vector.load %arg4[%c0_37, %c0_38, %c0_39] : memref<16x1x128xf32, #tpu.memory_space<vmem>>, vector<16x1x128xf32>
    tpu.vector_store %arg4[%c0_37, %c0_38, %c0_39], %145 {strides = array<i32>} : memref<16x1x128xf32, #tpu.memory_space<vmem>>, vector<16x1x128xf32>,
    return
  }
  func.func @transform_0(%arg0: i32) -> (i32, i32, i32) {
    %c0_i32 = arith.constant 0 : i32
    %c0_i32_0 = arith.constant 0 : i32
    %c0_i32_1 = arith.constant 0 : i32
    return %arg0, %c0_i32, %c0_i32_0 : i32, i32, i32
  }
  func.func @transform_1(%arg0: i32) -> (i32, i32, i32) {
    %c0_i32 = arith.constant 0 : i32
    %c0_i32_0 = arith.constant 0 : i32
    %c0_i32_1 = arith.constant 0 : i32
    return %arg0, %c0_i32, %c0_i32_0 : i32, i32, i32
  }
  func.func @transform_2(%arg0: i32) -> (i32, i32) {
    %c0_i32 = arith.constant 0 : i32
    %c0_i32_0 = arith.constant 0 : i32
    %c0_i32_1 = arith.constant 0 : i32
    return %c0_i32, %c0_i32_0 : i32, i32
  }
  func.func @transform_3(%arg0: i32) -> (i32, i32, i32) {
    %c0_i32 = arith.constant 0 : i32
    %c0_i32_0 = arith.constant 0 : i32
    %c0_i32_1 = arith.constant 0 : i32
    return %arg0, %c0_i32, %c0_i32_0 : i32, i32, i32
  }
}

</mosaic_0001>

<llo_original>
// kernel: tpu_custom_call.1
$region0: #{tpu_custom_call.1}
  #allocation0 [shape = 'u32[]', space=smem, size = 0x4, offset = 0x4, fixed_abs, tag = 'smem constant byte address 0x4 - core index']
  #allocation1 [shape = 'u32[144,128]{1,0:T(1,128)}', space=vmem, size = 0x12000, scoped, tag = 'internal scratch']
  %s0 = inlined_call_operand.vmem [shape: f32[64,8,16], index: 0, kind: input, shape index: {}]
  %s1 = inlined_call_operand.vmem [shape: f32[64,6,8], index: 1, kind: input, shape index: {}]
  %s2 = inlined_call_operand.vmem [shape: f32[128,32], index: 2, kind: input, shape index: {}]
  %s3 = inlined_call_operand.hbm [shape: f32[64,1,128], index: 3, kind: output, shape index: {}]
  %s4 = sld [smem:[#allocation0]]
  $region45: #{tpu_custom_call.1} parent=0
    _
  %s6 = ssub.s32 1, %s4
  %s7 = scalar_select 0, %s6, %s4
  $region1: #{tpu_custom_call.1} parent=0
    #allocation2 [shape = 'u8[16384]{0}', space=vmem, size = 0x4000, scoped, tag = 'output window, operand 0']
    #allocation3 [shape = 's32[2]{0}', space=sflag, size = 0x8, scoped, tag = 'scoped memory for tpu_custom_call.1']
    %8 = vsyncpa [#allocation3], 0
    %s9 = scalar_lea.sflag [#allocation3], 1
    %10 = vsyncpa %s9, 0
    loop: start=0, step=1, limit=6
    $region2: #{tpu_custom_call.1} parent=1 // loop_pre_header
      _
    $region3: #{tpu_custom_call.1} parent=1 // loop_header
      %s12 = sphi 0, %s16
      %p13 = scmp.ge.s32.totalorder %s12, 6
      %s22 = sphi 0, %s24
      %s25 = sphi 0, %s22
      %s26 = sphi 0, %s25
      %s42 = sphi 0, %s26
      %s48 = sphi 0, %s50
      %s51 = sphi 0, %s48
      %s52 = sphi 0, %s51
      %s68 = sphi 0, %s52
      %s72 = sphi 0, %s72
      %s74 = sphi 0, %s72
      %s75 = sphi 0, %s74
      %s89 = sphi 0, %s75
      %s95 = sphi 0, %s97
      %s98 = sphi 0, %s95
      %s99 = sphi 0, %s98
      %s115 = sphi 0, %s99
    $region4: #{tpu_custom_call.1} parent=1 // loop_header_branch
      %15 = sbr.rel (%p13) target = $region8
    $region5: #{tpu_custom_call.1} parent=1 // loop_body
      %s17 = ssub.s32 %s12, 1
      %s18 = ssub.s32 %s12, 2
      %s19 = sadd.s32 %s12, 1
      %s20 = ssub.s32 %s12, %s19
      %p21 = scmp.eq.s32.totalorder %s20, 0
      %s23 = sadd.s32 %s22, 1
      %s24 = scalar_select %p21, %s22, %s23
      %p27 = pneg %p21
      %p28 = scmp.eq.s32.totalorder %s12, 3
      %p29 = por %p27, %p28
      %p30 = scmp.ne.s32.totalorder %s22, %s25
      %p31 = scmp.eq.s32.totalorder %s12, 0
      %p32 = por %p30, %p31
      %p33 = scmp.ne.s32.totalorder %s22, %s25
      %p34 = scmp.eq.s32.totalorder %s17, 3
      %p35 = por %p33, %p34
      %p36 = scmp.ne.s32.totalorder %s25, %s26
      %p37 = scmp.eq.s32.totalorder %s17, 0
      %p38 = por %p36, %p37
      %p39 = scmp.ne.s32.totalorder %s25, %s26
      %p40 = scmp.eq.s32.totalorder %s18, 3
      %p41 = por %p39, %p40
      %p43 = scmp.ne.s32.totalorder %s26, %s42
      %p44 = scmp.eq.s32.totalorder %s18, 0
      %p45 = por %p43, %p44
      %s46 = ssub.s32 %s12, %s19
      %p47 = scmp.eq.s32.totalorder %s46, 0
      %s49 = sadd.s32 %s48, 1
      %s50 = scalar_select %p47, %s48, %s49
      %p53 = pneg %p47
      %p54 = scmp.eq.s32.totalorder %s12, 3
      %p55 = por %p53, %p54
      %p56 = scmp.ne.s32.totalorder %s48, %s51
      %p57 = scmp.eq.s32.totalorder %s12, 0
      %p58 = por %p56, %p57
      %p59 = scmp.ne.s32.totalorder %s48, %s51
      %p60 = scmp.eq.s32.totalorder %s17, 3
      %p61 = por %p59, %p60
      %p62 = scmp.ne.s32.totalorder %s51, %s52
      %p63 = scmp.eq.s32.totalorder %s17, 0
      %p64 = por %p62, %p63
      %p65 = scmp.ne.s32.totalorder %s51, %s52
      %p66 = scmp.eq.s32.totalorder %s18, 3
      %p67 = por %p65, %p66
      %p69 = scmp.ne.s32.totalorder %s52, %s68
      %p70 = scmp.eq.s32.totalorder %s18, 0
      %p71 = por %p69, %p70
      %s73 = sadd.s32 %s72, 1
      %p76 = scmp.eq.s32.totalorder %s12, 3
      %p77 = scmp.ne.s32.totalorder %s72, %s74
      %p78 = scmp.eq.s32.totalorder %s12, 0
      %p79 = por %p77, %p78
      %p80 = scmp.ne.s32.totalorder %s72, %s74
      %p81 = scmp.eq.s32.totalorder %s17, 3
      %p82 = por %p80, %p81
      %p83 = scmp.ne.s32.totalorder %s74, %s75
      %p84 = scmp.eq.s32.totalorder %s17, 0
      %p85 = por %p83, %p84
      %p86 = scmp.ne.s32.totalorder %s74, %s75
      %p87 = scmp.eq.s32.totalorder %s18, 3
      %p88 = por %p86, %p87
      %p90 = scmp.ne.s32.totalorder %s75, %s89
      %p91 = scmp.eq.s32.totalorder %s18, 0
      %p92 = por %p90, %p91
      %s93 = ssub.s32 %s12, %s19
      %p94 = scmp.eq.s32.totalorder %s93, 0
      %s96 = sadd.s32 %s95, 1
      %s97 = scalar_select %p94, %s95, %s96
      %p100 = pneg %p94
      %p101 = scmp.eq.s32.totalorder %s12, 3
      %p102 = por %p100, %p101
      %p103 = scmp.ne.s32.totalorder %s95, %s98
      %p104 = scmp.eq.s32.totalorder %s12, 0
      %p105 = por %p103, %p104
      %p106 = scmp.ne.s32.totalorder %s95, %s98
      %p107 = scmp.eq.s32.totalorder %s17, 3
      %p108 = por %p106, %p107
      %p109 = scmp.ne.s32.totalorder %s98, %s99
      %p110 = scmp.eq.s32.totalorder %s17, 0
      %p111 = por %p109, %p110
      %p112 = scmp.ne.s32.totalorder %s98, %s99
      %p113 = scmp.eq.s32.totalorder %s18, 3
      %p114 = por %p112, %p113
      %p116 = scmp.ne.s32.totalorder %s99, %s115
      %p117 = scmp.eq.s32.totalorder %s18, 0
      %p118 = por %p116, %p117
      %p119 = scmp.le.s32.totalorder 1, %s12
      %p120 = scmp.lt.s32.totalorder %s12, 5
      %p121 = pnand %p119, %p120
      %p122 = pneg %p121
      // Predicated region
      $region9: #{tpu_custom_call.1} parent=5 // pred_check
        _
      $region10: #{tpu_custom_call.1} parent=5 // pred_check_branch
        %124 = sbr.rel (%p121) target = $region12
      $region11: #{tpu_custom_call.1} parent=5 // pred_region
        %s125 = ssub.s32 %s12, 1
        // Predicated region
        $region13: #{tpu_custom_call.1} parent=11 // pred_check
          %p126 = pneg %p85
        $region14: #{tpu_custom_call.1} parent=11 // pred_check_branch
          %128 = sbr.rel (%p126) target = $region16
        $region15: #{tpu_custom_call.1} parent=11 // pred_region
          _
        $region16: #{tpu_custom_call.1} parent=11 // pred_fallthru
          _
      $region12: #{tpu_custom_call.1} parent=5 // pred_fallthru
        _
      %p129 = scmp.lt.s32.totalorder %s12, 4
      // Predicated region
      $region17: #{tpu_custom_call.1} parent=5 // pred_check
        %p130 = pneg %p129
      $region18: #{tpu_custom_call.1} parent=5 // pred_check_branch
        %132 = sbr.rel (%p130) target = $region20
      $region19: #{tpu_custom_call.1} parent=5 // pred_region
        // Predicated region
        $region21: #{tpu_custom_call.1} parent=19 // pred_check
          %p133 = pneg %p32
        $region22: #{tpu_custom_call.1} parent=19 // pred_check_branch
          %135 = sbr.rel (%p133) target = $region24
        $region23: #{tpu_custom_call.1} parent=19 // pred_region
          %s136 = smul.u32 16, %s12
          %p137 = scmp.lt.s32.totalorder %s136, 63
          %s138 = scalar_select %p137, %s136, 63
          %s139 = smul.addr %s138, 8
          %s140 = scalar_lea.vmem %s0, %s139
          %s141 = smul.u32 16, %s12
        $region24: #{tpu_custom_call.1} parent=19 // pred_fallthru
          _
        // Predicated region
        $region25: #{tpu_custom_call.1} parent=19 // pred_check
          %p142 = pneg %p58
        $region26: #{tpu_custom_call.1} parent=19 // pred_check_branch
          %144 = sbr.rel (%p142) target = $region28
        $region27: #{tpu_custom_call.1} parent=19 // pred_region
          %s145 = smul.u32 16, %s12
          %p146 = scmp.lt.s32.totalorder %s145, 63
          %s147 = scalar_select %p146, %s145, 63
          %s148 = smul.addr %s147, 8
          %s149 = scalar_lea.vmem %s1, %s148
          %s150 = smul.u32 16, %s12
        $region28: #{tpu_custom_call.1} parent=19 // pred_fallthru
          _
      $region20: #{tpu_custom_call.1} parent=5 // pred_fallthru
        _
      %p151 = scmp.le.s32.totalorder 1, %s12
      %p152 = scmp.lt.s32.totalorder %s12, 5
      %p153 = pnand %p151, %p152
      %p154 = pneg %p153
      // Predicated region
      $region29: #{tpu_custom_call.1} parent=5 // pred_check
        _
      $region30: #{tpu_custom_call.1} parent=5 // pred_check_branch
        %156 = sbr.rel (%p153) target = $region32
      $region31: #{tpu_custom_call.1} parent=5 // pred_region
        %s157 = ssub.s32 %s12, 1
        %s158 = smul.u32 16, %s17
        %p159 = scmp.lt.s32.totalorder %s158, 63
        %s160 = scalar_select %p159, %s158, 63
        %s161 = smul.addr %s160, 8
        %s162 = scalar_lea.vmem %s0, %s161
        %p163 = pneg %p38
        %p164 = pneg %p35
        %s165 = smul.u32 16, %s17
        %p166 = scmp.lt.s32.totalorder %s165, 63
        %s167 = scalar_select %p166, %s165, 63
        %s168 = smul.addr %s167, 8
        %s169 = scalar_lea.vmem %s1, %s168
        %p170 = pneg %p64
        %p171 = pneg %p61
        %p172 = pneg %p85
        %p173 = pneg %p82
        %p174 = pneg %p111
        %p175 = pneg %p108
        %s176 = sand.u32 %s98, 1
        %s177 = scalar_lea.sflag [#allocation3], %s176
        %s178 = sand.u32 %s98, 1
        %s179 = smul.addr %s178, 16
        %s180 = scalar_lea.vmem [#allocation2], %s179
        %s181 = smul.u32 16, %s17
        %p182 = scmp.lt.s32.totalorder %s181, 63
        %s183 = scalar_select %p182, %s181, 63
        %s184 = smul.addr %s183, 8
        %s185 = scalar_lea.vmem %s0, %s184
        %s186 = smul.u32 16, %s17
        %s187 = smul.u32 16, %s17
        %p188 = scmp.lt.s32.totalorder %s187, 63
        %s189 = scalar_select %p188, %s187, 63
        %s190 = smul.addr %s189, 8
        %s191 = scalar_lea.vmem %s1, %s190
        %s192 = smul.u32 16, %s17
        %s193 = smul.u32 16, %s17
        %v194 = vld [vmem:[%s2] sm:$0xff]
        %v195 = vld [vmem:[%s2 + $0x8] sm:$0xff]
        %v196 = vld [vmem:[%s2 + $0x10] sm:$0xff]
        %v197 = vld [vmem:[%s2 + $0x18] sm:$0xff]
        %v198 = vld [vmem:[%s2 + $0x20] sm:$0xff]
        %v199 = vld [vmem:[%s2 + $0x28] sm:$0xff]
        %v200 = vld [vmem:[%s2 + $0x30] sm:$0xff]
        %v201 = vld [vmem:[%s2 + $0x38] sm:$0xff]
        %v202 = vld [vmem:[%s2 + $0x40] sm:$0xff]
        %v203 = vld [vmem:[%s2 + $0x48] sm:$0xff]
        %v204 = vld [vmem:[%s2 + $0x50] sm:$0xff]
        %v205 = vld [vmem:[%s2 + $0x58] sm:$0xff]
        %v206 = vld [vmem:[%s2 + $0x60] sm:$0xff]
        %v207 = vld [vmem:[%s2 + $0x68] sm:$0xff]
        %v208 = vld [vmem:[%s2 + $0x70] sm:$0x1]
        %v209 = vld [vmem:[%s2 + $0x78] sm:$0x1]
        %v210 = vld [vmem:[%s185] sm:$0xff]
        %v211 = vld [vmem:[%s185 + $0x8] sm:$0xff]
        %v212 = vld [vmem:[%s185 + $0x10] sm:$0xff]
        %v213 = vld [vmem:[%s185 + $0x18] sm:$0xff]
        %v214 = vld [vmem:[%s185 + $0x20] sm:$0xff]
        %v215 = vld [vmem:[%s185 + $0x28] sm:$0xff]
        %v216 = vld [vmem:[%s185 + $0x30] sm:$0xff]
        %v217 = vld [vmem:[%s185 + $0x38] sm:$0xff]
        %v218 = vld [vmem:[%s185 + $0x40] sm:$0xff]
        %v219 = vld [vmem:[%s185 + $0x48] sm:$0xff]
        %v220 = vld [vmem:[%s185 + $0x50] sm:$0xff]
        %v221 = vld [vmem:[%s185 + $0x58] sm:$0xff]
        %v222 = vld [vmem:[%s185 + $0x60] sm:$0xff]
        %v223 = vld [vmem:[%s185 + $0x68] sm:$0xff]
        %v224 = vld [vmem:[%s185 + $0x70] sm:$0xff]
        %v225 = vld [vmem:[%s185 + $0x78] sm:$0xff]
        %v226 = vld [vmem:[%s191] sm:$0x3f]
        %v227 = vld [vmem:[%s191 + $0x8] sm:$0x3f]
        %v228 = vld [vmem:[%s191 + $0x10] sm:$0x3f]
        %v229 = vld [vmem:[%s191 + $0x18] sm:$0x3f]
        %v230 = vld [vmem:[%s191 + $0x20] sm:$0x3f]
        %v231 = vld [vmem:[%s191 + $0x28] sm:$0x3f]
        %v232 = vld [vmem:[%s191 + $0x30] sm:$0x3f]
        %v233 = vld [vmem:[%s191 + $0x38] sm:$0x3f]
        %v234 = vld [vmem:[%s191 + $0x40] sm:$0x3f]
        %v235 = vld [vmem:[%s191 + $0x48] sm:$0x3f]
        %v236 = vld [vmem:[%s191 + $0x50] sm:$0x3f]
        %v237 = vld [vmem:[%s191 + $0x58] sm:$0x3f]
        %v238 = vld [vmem:[%s191 + $0x60] sm:$0x3f]
        %v239 = vld [vmem:[%s191 + $0x68] sm:$0x3f]
        %v240 = vld [vmem:[%s191 + $0x70] sm:$0x3f]
        %v241 = vld [vmem:[%s191 + $0x78] sm:$0x3f]
        %v242 = vlaneseq
        %v243 = vshrl.u32 %v242, 7
        %v244 = vsub.s32 0, %v243
        %v245 = vrot.slane %v208, %v244
        %vm246 = vcmask 130048
        %v248 = vsel %vm246, %v210, 0
        %v251 = vsel %vm246, %v211, 0
        %v254 = vsel %vm246, %v212, 0
        %v257 = vsel %vm246, %v213, 0
        %v260 = vsel %vm246, %v214, 0
        %v263 = vsel %vm246, %v215, 0
        %v266 = vsel %vm246, %v216, 0
        %v269 = vsel %vm246, %v217, 0
        %v272 = vsel %vm246, %v218, 0
        %v275 = vsel %vm246, %v219, 0
        %v278 = vsel %vm246, %v220, 0
        %v281 = vsel %vm246, %v221, 0
        %v284 = vsel %vm246, %v222, 0
        %v287 = vsel %vm246, %v223, 0
        %v290 = vsel %vm246, %v224, 0
        %v293 = vsel %vm246, %v225, 0
        %295 = vmatprep.subr.mxu0 0.0
        %296 = vmatpush1.msra.mxu0 %v194
        %297 = vmatprep.subr.mxu0 0.0
        %298 = vmatpush1.msra.mxu0 %v195
        %299 = vmatprep.subr.mxu0 0.0
        %300 = vmatpush1.msra.mxu0 0.0
        %301 = vmatprep.subr.mxu0 0.0
        %302 = vmatpush1.msra.mxu0 0.0
        %303 = vmatprep.subr.mxu0 0.0
        %304 = vmatpush1.msra.mxu0 0.0
        %305 = vmatprep.subr.mxu0 0.0
        %306 = vmatpush1.msra.mxu0 0.0
        %307 = vmatprep.subr.mxu0 0.0
        %308 = vmatpush1.msra.mxu0 0.0
        %309 = vmatprep.subr.mxu0 0.0
        %310 = vmatpush1.msra.mxu0 0.0
        %311 = vmatprep.subr.mxu0 0.0
        %312 = vmatpush1.msra.mxu0 0.0
        %313 = vmatprep.subr.mxu0 0.0
        %314 = vmatpush1.msra.mxu0 0.0
        %315 = vmatprep.subr.mxu0 0.0
        %316 = vmatpush1.msra.mxu0 0.0
        %317 = vmatprep.subr.mxu0 0.0
        %318 = vmatpush1.msra.mxu0 0.0
        %319 = vmatprep.subr.mxu0 0.0
        %320 = vmatpush1.msra.mxu0 0.0
        %321 = vmatprep.subr.mxu0 0.0
        %322 = vmatpush1.msra.mxu0 0.0
        %323 = vmatprep.subr.mxu0 0.0
        %324 = vmatpush1.msra.mxu0 0.0
        %325 = vmatprep.subr.mxu0 0.0
        %326 = vmatpush1.msra.mxu0 0.0
        %327 = vmatprep.subr.mxu0 0.0
        %328 = vmatpush1.msra.mxu0 0.0
        %329 = vmatprep.subr.mxu0 0.0
        %330 = vmatpush1.msra.mxu0 0.0
        %331 = vmatprep.subr.mxu0 0.0
        %332 = vmatpush1.msra.mxu0 0.0
        %333 = vmatprep.subr.mxu0 0.0
        %334 = vmatpush1.msra.mxu0 0.0
        %335 = vmatprep.subr.mxu0 0.0
        %336 = vmatpush1.msra.mxu0 0.0
        %337 = vmatprep.subr.mxu0 0.0
        %338 = vmatpush1.msra.mxu0 0.0
        %339 = vmatprep.subr.mxu0 0.0
        %340 = vmatpush1.msra.mxu0 0.0
        %341 = vmatprep.subr.mxu0 0.0
        %342 = vmatpush1.msra.mxu0 0.0
        %343 = vmatprep.subr.mxu0 0.0
        %344 = vmatpush1.msra.mxu0 0.0
        %345 = vmatprep.subr.mxu0 0.0
        %346 = vmatpush1.msra.mxu0 0.0
        %347 = vmatprep.subr.mxu0 0.0
        %348 = vmatpush1.msra.mxu0 0.0
        %349 = vmatprep.subr.mxu0 0.0
        %350 = vmatpush1.msra.mxu0 0.0
        %351 = vmatprep.subr.mxu0 0.0
        %352 = vmatpush1.msra.mxu0 0.0
        %353 = vmatprep.subr.mxu0 0.0
        %354 = vmatpush1.msra.mxu0 0.0
        %355 = vmatprep.subr.mxu0 0.0
        %356 = vmatpush1.msra.mxu0 0.0
        %357 = vmatprep.subr.mxu0 0.0
        %358 = vmatpush1.msra.mxu0 0.0
        %359 = vmatprep.mubr.f32.mxu0 0.0
        %360 = vmatmul.mubr.f32.gmra.mrb[0].mxu0 %v248
        %v361 = vpop.f32.mrb[0].mxu0
        %v362 = vadd.f32 %v245, %v361
        %v363 = vpop.f32.mrb[0].mxu0
        %364 = vmatprep.mubr.f32.mxu0 0.0
        %365 = vmatmul.mubr.f32.gmra.mrb[0].mxu0 %v251
        %v366 = vpop.f32.mrb[0].mxu0
        %v367 = vadd.f32 %v245, %v366
        %v368 = vpop.f32.mrb[0].mxu0
        %369 = vmatprep.mubr.f32.mxu0 0.0
        %370 = vmatmul.mubr.f32.gmra.mrb[0].mxu0 %v254
        %v371 = vpop.f32.mrb[0].mxu0
        %v372 = vadd.f32 %v245, %v371
        %v373 = vpop.f32.mrb[0].mxu0
        %374 = vmatprep.mubr.f32.mxu0 0.0
        %375 = vmatmul.mubr.f32.gmra.mrb[0].mxu0 %v257
        %v376 = vpop.f32.mrb[0].mxu0
        %v377 = vadd.f32 %v245, %v376
        %v378 = vpop.f32.mrb[0].mxu0
        %379 = vmatprep.mubr.f32.mxu0 0.0
        %380 = vmatmul.mubr.f32.gmra.mrb[0].mxu0 %v260
        %v381 = vpop.f32.mrb[0].mxu0
        %v382 = vadd.f32 %v245, %v381
        %v383 = vpop.f32.mrb[0].mxu0
        %384 = vmatprep.mubr.f32.mxu0 0.0
        %385 = vmatmul.mubr.f32.gmra.mrb[0].mxu0 %v263
        %v386 = vpop.f32.mrb[0].mxu0
        %v387 = vadd.f32 %v245, %v386
        %v388 = vpop.f32.mrb[0].mxu0
        %389 = vmatprep.mubr.f32.mxu0 0.0
        %390 = vmatmul.mubr.f32.gmra.mrb[0].mxu0 %v266
        %v391 = vpop.f32.mrb[0].mxu0
        %v392 = vadd.f32 %v245, %v391
        %v393 = vpop.f32.mrb[0].mxu0
        %394 = vmatprep.mubr.f32.mxu0 0.0
        %395 = vmatmul.mubr.f32.gmra.mrb[0].mxu0 %v269
        %v396 = vpop.f32.mrb[0].mxu0
        %v397 = vadd.f32 %v245, %v396
        %v398 = vpop.f32.mrb[0].mxu0
        %399 = vmatprep.mubr.f32.mxu0 0.0
        %400 = vmatmul.mubr.f32.gmra.mrb[0].mxu0 %v272
        %v401 = vpop.f32.mrb[0].mxu0
        %v402 = vadd.f32 %v245, %v401
        %v403 = vpop.f32.mrb[0].mxu0
        %404 = vmatprep.mubr.f32.mxu0 0.0
        %405 = vmatmul.mubr.f32.gmra.mrb[0].mxu0 %v275
        %v406 = vpop.f32.mrb[0].mxu0
        %v407 = vadd.f32 %v245, %v406
        %v408 = vpop.f32.mrb[0].mxu0
        %409 = vmatprep.mubr.f32.mxu0 0.0
        %410 = vmatmul.mubr.f32.gmra.mrb[0].mxu0 %v278
        %v411 = vpop.f32.mrb[0].mxu0
        %v412 = vadd.f32 %v245, %v411
        %v413 = vpop.f32.mrb[0].mxu0
        %414 = vmatprep.mubr.f32.mxu0 0.0
        %415 = vmatmul.mubr.f32.gmra.mrb[0].mxu0 %v281
        %v416 = vpop.f32.mrb[0].mxu0
        %v417 = vadd.f32 %v245, %v416
        %v418 = vpop.f32.mrb[0].mxu0
        %419 = vmatprep.mubr.f32.mxu0 0.0
        %420 = vmatmul.mubr.f32.gmra.mrb[0].mxu0 %v284
        %v421 = vpop.f32.mrb[0].mxu0
        %v422 = vadd.f32 %v245, %v421
        %v423 = vpop.f32.mrb[0].mxu0
        %424 = vmatprep.mubr.f32.mxu0 0.0
        %425 = vmatmul.mubr.f32.gmra.mrb[0].mxu0 %v287
        %v426 = vpop.f32.mrb[0].mxu0
        %v427 = vadd.f32 %v245, %v426
        %v428 = vpop.f32.mrb[0].mxu0
        %429 = vmatprep.mubr.f32.mxu0 0.0
        %430 = vmatmul.mubr.f32.gmra.mrb[0].mxu0 %v290
        %v431 = vpop.f32.mrb[0].mxu0
        %v432 = vadd.f32 %v245, %v431
        %v433 = vpop.f32.mrb[0].mxu0
        %434 = vmatprep.mubr.f32.mxu0 0.0
        %435 = vmatmul.mubr.f32.gmra.mrb[0].mxu0 %v293
        %v436 = vpop.f32.mrb[0].mxu0
        %v437 = vadd.f32 %v245, %v436
        %v438 = vpop.f32.mrb[0].mxu0
        %439 = vdwg.mxu0
        %v440 = vlaneseq
        %v441 = vand.u32 %v440, 127
        %vm442 = vcmask 62464
        %v443 = vsel %vm442, %v226, 0.0
        %v444 = vrot.slane %v443, 4
        %v445 = vadd.f32 %v443, %v444
        %v446 = vrot.slane %v445, 2
        %v447 = vadd.f32 %v445, %v446
        %v448 = vrot.slane %v447, 1
        %v449 = vadd.f32 %v447, %v448
        %v450 = vsel %vm442, %v227, 0.0
        %v451 = vrot.slane %v450, 4
        %v452 = vadd.f32 %v450, %v451
        %v453 = vrot.slane %v452, 2
        %v454 = vadd.f32 %v452, %v453
        %v455 = vrot.slane %v454, 1
        %v456 = vadd.f32 %v454, %v455
        %v457 = vsel %vm442, %v228, 0.0
        %v458 = vrot.slane %v457, 4
        %v459 = vadd.f32 %v457, %v458
        %v460 = vrot.slane %v459, 2
        %v461 = vadd.f32 %v459, %v460
        %v462 = vrot.slane %v461, 1
        %v463 = vadd.f32 %v461, %v462
        %v464 = vsel %vm442, %v229, 0.0
        %v465 = vrot.slane %v464, 4
        %v466 = vadd.f32 %v464, %v465
        %v467 = vrot.slane %v466, 2
        %v468 = vadd.f32 %v466, %v467
        %v469 = vrot.slane %v468, 1
        %v470 = vadd.f32 %v468, %v469
        %v471 = vsel %vm442, %v230, 0.0
        %v472 = vrot.slane %v471, 4
        %v473 = vadd.f32 %v471, %v472
        %v474 = vrot.slane %v473, 2
        %v475 = vadd.f32 %v473, %v474
        %v476 = vrot.slane %v475, 1
        %v477 = vadd.f32 %v475, %v476
        %v478 = vsel %vm442, %v231, 0.0
        %v479 = vrot.slane %v478, 4
        %v480 = vadd.f32 %v478, %v479
        %v481 = vrot.slane %v480, 2
        %v482 = vadd.f32 %v480, %v481
        %v483 = vrot.slane %v482, 1
        %v484 = vadd.f32 %v482, %v483
        %v485 = vsel %vm442, %v232, 0.0
        %v486 = vrot.slane %v485, 4
        %v487 = vadd.f32 %v485, %v486
        %v488 = vrot.slane %v487, 2
        %v489 = vadd.f32 %v487, %v488
        %v490 = vrot.slane %v489, 1
        %v491 = vadd.f32 %v489, %v490
        %v492 = vsel %vm442, %v233, 0.0
        %v493 = vrot.slane %v492, 4
        %v494 = vadd.f32 %v492, %v493
        %v495 = vrot.slane %v494, 2
        %v496 = vadd.f32 %v494, %v495
        %v497 = vrot.slane %v496, 1
        %v498 = vadd.f32 %v496, %v497
        %v499 = vsel %vm442, %v234, 0.0
        %v500 = vrot.slane %v499, 4
        %v501 = vadd.f32 %v499, %v500
        %v502 = vrot.slane %v501, 2
        %v503 = vadd.f32 %v501, %v502
        %v504 = vrot.slane %v503, 1
        %v505 = vadd.f32 %v503, %v504
        %v506 = vsel %vm442, %v235, 0.0
        %v507 = vrot.slane %v506, 4
        %v508 = vadd.f32 %v506, %v507
        %v509 = vrot.slane %v508, 2
        %v510 = vadd.f32 %v508, %v509
        %v511 = vrot.slane %v510, 1
        %v512 = vadd.f32 %v510, %v511
        %v513 = vsel %vm442, %v236, 0.0
        %v514 = vrot.slane %v513, 4
        %v515 = vadd.f32 %v513, %v514
        %v516 = vrot.slane %v515, 2
        %v517 = vadd.f32 %v515, %v516
        %v518 = vrot.slane %v517, 1
        %v519 = vadd.f32 %v517, %v518
        %v520 = vsel %vm442, %v237, 0.0
        %v521 = vrot.slane %v520, 4
        %v522 = vadd.f32 %v520, %v521
        %v523 = vrot.slane %v522, 2
        %v524 = vadd.f32 %v522, %v523
        %v525 = vrot.slane %v524, 1
        %v526 = vadd.f32 %v524, %v525
        %v527 = vsel %vm442, %v238, 0.0
        %v528 = vrot.slane %v527, 4
        %v529 = vadd.f32 %v527, %v528
        %v530 = vrot.slane %v529, 2
        %v531 = vadd.f32 %v529, %v530
        %v532 = vrot.slane %v531, 1
        %v533 = vadd.f32 %v531, %v532
        %v534 = vsel %vm442, %v239, 0.0
        %v535 = vrot.slane %v534, 4
        %v536 = vadd.f32 %v534, %v535
        %v537 = vrot.slane %v536, 2
        %v538 = vadd.f32 %v536, %v537
        %v539 = vrot.slane %v538, 1
        %v540 = vadd.f32 %v538, %v539
        %v541 = vsel %vm442, %v240, 0.0
        %v542 = vrot.slane %v541, 4
        %v543 = vadd.f32 %v541, %v542
        %v544 = vrot.slane %v543, 2
        %v545 = vadd.f32 %v543, %v544
        %v546 = vrot.slane %v545, 1
        %v547 = vadd.f32 %v545, %v546
        %v548 = vsel %vm442, %v241, 0.0
        %v549 = vrot.slane %v548, 4
        %v550 = vadd.f32 %v548, %v549
        %v551 = vrot.slane %v550, 2
        %v552 = vadd.f32 %v550, %v551
        %v553 = vrot.slane %v552, 1
        %v554 = vadd.f32 %v552, %v553
        %vm555 = vcmp.eq.f32.partialorder %v449, 0.0
        %vm556 = vcmp.eq.f32.partialorder %v456, 0.0
        %vm557 = vcmp.eq.f32.partialorder %v463, 0.0
        %vm558 = vcmp.eq.f32.partialorder %v470, 0.0
        %vm559 = vcmp.eq.f32.partialorder %v477, 0.0
        %vm560 = vcmp.eq.f32.partialorder %v484, 0.0
        %vm561 = vcmp.eq.f32.partialorder %v491, 0.0
        %vm562 = vcmp.eq.f32.partialorder %v498, 0.0
        %vm563 = vcmp.eq.f32.partialorder %v505, 0.0
        %vm564 = vcmp.eq.f32.partialorder %v512, 0.0
        %vm565 = vcmp.eq.f32.partialorder %v519, 0.0
        %vm566 = vcmp.eq.f32.partialorder %v526, 0.0
        %vm567 = vcmp.eq.f32.partialorder %v533, 0.0
        %vm568 = vcmp.eq.f32.partialorder %v540, 0.0
        %vm569 = vcmp.eq.f32.partialorder %v547, 0.0
        %vm570 = vcmp.eq.f32.partialorder %v554, 0.0
        %v571 = vsel %vm555, %v441, 8
        %v572 = vsel %vm556, %v441, 8
        %v573 = vsel %vm557, %v441, 8
        %v574 = vsel %vm558, %v441, 8
        %v575 = vsel %vm559, %v441, 8
        %v576 = vsel %vm560, %v441, 8
        %v577 = vsel %vm561, %v441, 8
        %v578 = vsel %vm562, %v441, 8
        %v579 = vsel %vm563, %v441, 8
        %v580 = vsel %vm564, %v441, 8
        %v581 = vsel %vm565, %v441, 8
        %v582 = vsel %vm566, %v441, 8
        %v583 = vsel %vm567, %v441, 8
        %v584 = vsel %vm568, %v441, 8
        %v585 = vsel %vm569, %v441, 8
        %v586 = vsel %vm570, %v441, 8
        %vm587 = vcmask 64512
        %v588 = vsel %vm587, %v571, 2147483647
        %v589 = vand.u32 %v588, 65535
        %v590 = vshra.s32 %v588, 16
        %v591 = vcvt.s32.f32 %v589
        %v592 = vcvt.s32.f32 %v590
        %593 = vmin.xlane.f32.xlu0 %v592
        %v594 = vpop.xlane.xlu0 %593
        %vm595 = vcmp.eq.f32.partialorder %v592, %v594
        %v596 = vsel %vm595, %v591, inf
        %597 = vmin.xlane.f32.xlu0 %v596
        %v598 = vpop.xlane.xlu0 %597
        %v599 = vcvt.f32.s32 %v598
        %v600 = vcvt.f32.s32 %v594
        %v601 = vshll.u32 %v600, 16
        %v602 = vadd.s32 %v601, %v599
        %v603 = vsel %vm587, %v572, 2147483647
        %v604 = vand.u32 %v603, 65535
        %v605 = vshra.s32 %v603, 16
        %v606 = vcvt.s32.f32 %v604
        %v607 = vcvt.s32.f32 %v605
        %608 = vmin.xlane.f32.xlu0 %v607
        %v609 = vpop.xlane.xlu0 %608
        %vm610 = vcmp.eq.f32.partialorder %v607, %v609
        %v611 = vsel %vm610, %v606, inf
        %612 = vmin.xlane.f32.xlu0 %v611
        %v613 = vpop.xlane.xlu0 %612
        %v614 = vcvt.f32.s32 %v613
        %v615 = vcvt.f32.s32 %v609
        %v616 = vshll.u32 %v615, 16
        %v617 = vadd.s32 %v616, %v614
        %v618 = vsel %vm587, %v573, 2147483647
        %v619 = vand.u32 %v618, 65535
        %v620 = vshra.s32 %v618, 16
        %v621 = vcvt.s32.f32 %v619
        %v622 = vcvt.s32.f32 %v620
        %623 = vmin.xlane.f32.xlu0 %v622
        %v624 = vpop.xlane.xlu0 %623
        %vm625 = vcmp.eq.f32.partialorder %v622, %v624
        %v626 = vsel %vm625, %v621, inf
        %627 = vmin.xlane.f32.xlu0 %v626
        %v628 = vpop.xlane.xlu0 %627
        %v629 = vcvt.f32.s32 %v628
        %v630 = vcvt.f32.s32 %v624
        %v631 = vshll.u32 %v630, 16
        %v632 = vadd.s32 %v631, %v629
        %v633 = vsel %vm587, %v574, 2147483647
        %v634 = vand.u32 %v633, 65535
        %v635 = vshra.s32 %v633, 16
        %v636 = vcvt.s32.f32 %v634
        %v637 = vcvt.s32.f32 %v635
        %638 = vmin.xlane.f32.xlu0 %v637
        %v639 = vpop.xlane.xlu0 %638
        %vm640 = vcmp.eq.f32.partialorder %v637, %v639
        %v641 = vsel %vm640, %v636, inf
        %642 = vmin.xlane.f32.xlu0 %v641
        %v643 = vpop.xlane.xlu0 %642
        %v644 = vcvt.f32.s32 %v643
        %v645 = vcvt.f32.s32 %v639
        %v646 = vshll.u32 %v645, 16
        %v647 = vadd.s32 %v646, %v644
        %v648 = vsel %vm587, %v575, 2147483647
        %v649 = vand.u32 %v648, 65535
        %v650 = vshra.s32 %v648, 16
        %v651 = vcvt.s32.f32 %v649
        %v652 = vcvt.s32.f32 %v650
        %653 = vmin.xlane.f32.xlu0 %v652
        %v654 = vpop.xlane.xlu0 %653
        %vm655 = vcmp.eq.f32.partialorder %v652, %v654
        %v656 = vsel %vm655, %v651, inf
        %657 = vmin.xlane.f32.xlu0 %v656
        %v658 = vpop.xlane.xlu0 %657
        %v659 = vcvt.f32.s32 %v658
        %v660 = vcvt.f32.s32 %v654
        %v661 = vshll.u32 %v660, 16
        %v662 = vadd.s32 %v661, %v659
        %v663 = vsel %vm587, %v576, 2147483647
        %v664 = vand.u32 %v663, 65535
        %v665 = vshra.s32 %v663, 16
        %v666 = vcvt.s32.f32 %v664
        %v667 = vcvt.s32.f32 %v665
        %668 = vmin.xlane.f32.xlu0 %v667
        %v669 = vpop.xlane.xlu0 %668
        %vm670 = vcmp.eq.f32.partialorder %v667, %v669
        %v671 = vsel %vm670, %v666, inf
        %672 = vmin.xlane.f32.xlu0 %v671
        %v673 = vpop.xlane.xlu0 %672
        %v674 = vcvt.f32.s32 %v673
        %v675 = vcvt.f32.s32 %v669
        %v676 = vshll.u32 %v675, 16
        %v677 = vadd.s32 %v676, %v674
        %v678 = vsel %vm587, %v577, 2147483647
        %v679 = vand.u32 %v678, 65535
        %v680 = vshra.s32 %v678, 16
        %v681 = vcvt.s32.f32 %v679
        %v682 = vcvt.s32.f32 %v680
        %683 = vmin.xlane.f32.xlu0 %v682
        %v684 = vpop.xlane.xlu0 %683
        %vm685 = vcmp.eq.f32.partialorder %v682, %v684
        %v686 = vsel %vm685, %v681, inf
        %687 = vmin.xlane.f32.xlu0 %v686
        %v688 = vpop.xlane.xlu0 %687
        %v689 = vcvt.f32.s32 %v688
        %v690 = vcvt.f32.s32 %v684
        %v691 = vshll.u32 %v690, 16
        %v692 = vadd.s32 %v691, %v689
        %v693 = vsel %vm587, %v578, 2147483647
        %v694 = vand.u32 %v693, 65535
        %v695 = vshra.s32 %v693, 16
        %v696 = vcvt.s32.f32 %v694
        %v697 = vcvt.s32.f32 %v695
        %698 = vmin.xlane.f32.xlu0 %v697
        %v699 = vpop.xlane.xlu0 %698
        %vm700 = vcmp.eq.f32.partialorder %v697, %v699
        %v701 = vsel %vm700, %v696, inf
        %702 = vmin.xlane.f32.xlu0 %v701
        %v703 = vpop.xlane.xlu0 %702
        %v704 = vcvt.f32.s32 %v703
        %v705 = vcvt.f32.s32 %v699
        %v706 = vshll.u32 %v705, 16
        %v707 = vadd.s32 %v706, %v704
        %v708 = vsel %vm587, %v579, 2147483647
        %v709 = vand.u32 %v708, 65535
        %v710 = vshra.s32 %v708, 16
        %v711 = vcvt.s32.f32 %v709
        %v712 = vcvt.s32.f32 %v710
        %713 = vmin.xlane.f32.xlu0 %v712
        %v714 = vpop.xlane.xlu0 %713
        %vm715 = vcmp.eq.f32.partialorder %v712, %v714
        %v716 = vsel %vm715, %v711, inf
        %717 = vmin.xlane.f32.xlu0 %v716
        %v718 = vpop.xlane.xlu0 %717
        %v719 = vcvt.f32.s32 %v718
        %v720 = vcvt.f32.s32 %v714
        %v721 = vshll.u32 %v720, 16
        %v722 = vadd.s32 %v721, %v719
        %v723 = vsel %vm587, %v580, 2147483647
        %v724 = vand.u32 %v723, 65535
        %v725 = vshra.s32 %v723, 16
        %v726 = vcvt.s32.f32 %v724
        %v727 = vcvt.s32.f32 %v725
        %728 = vmin.xlane.f32.xlu0 %v727
        %v729 = vpop.xlane.xlu0 %728
        %vm730 = vcmp.eq.f32.partialorder %v727, %v729
        %v731 = vsel %vm730, %v726, inf
        %732 = vmin.xlane.f32.xlu0 %v731
        %v733 = vpop.xlane.xlu0 %732
        %v734 = vcvt.f32.s32 %v733
        %v735 = vcvt.f32.s32 %v729
        %v736 = vshll.u32 %v735, 16
        %v737 = vadd.s32 %v736, %v734
        %v738 = vsel %vm587, %v581, 2147483647
        %v739 = vand.u32 %v738, 65535
        %v740 = vshra.s32 %v738, 16
        %v741 = vcvt.s32.f32 %v739
        %v742 = vcvt.s32.f32 %v740
        %743 = vmin.xlane.f32.xlu0 %v742
        %v744 = vpop.xlane.xlu0 %743
        %vm745 = vcmp.eq.f32.partialorder %v742, %v744
        %v746 = vsel %vm745, %v741, inf
        %747 = vmin.xlane.f32.xlu0 %v746
        %v748 = vpop.xlane.xlu0 %747
        %v749 = vcvt.f32.s32 %v748
        %v750 = vcvt.f32.s32 %v744
        %v751 = vshll.u32 %v750, 16
        %v752 = vadd.s32 %v751, %v749
        %v753 = vsel %vm587, %v582, 2147483647
        %v754 = vand.u32 %v753, 65535
        %v755 = vshra.s32 %v753, 16
        %v756 = vcvt.s32.f32 %v754
        %v757 = vcvt.s32.f32 %v755
        %758 = vmin.xlane.f32.xlu0 %v757
        %v759 = vpop.xlane.xlu0 %758
        %vm760 = vcmp.eq.f32.partialorder %v757, %v759
        %v761 = vsel %vm760, %v756, inf
        %762 = vmin.xlane.f32.xlu0 %v761
        %v763 = vpop.xlane.xlu0 %762
        %v764 = vcvt.f32.s32 %v763
        %v765 = vcvt.f32.s32 %v759
        %v766 = vshll.u32 %v765, 16
        %v767 = vadd.s32 %v766, %v764
        %v768 = vsel %vm587, %v583, 2147483647
        %v769 = vand.u32 %v768, 65535
        %v770 = vshra.s32 %v768, 16
        %v771 = vcvt.s32.f32 %v769
        %v772 = vcvt.s32.f32 %v770
        %773 = vmin.xlane.f32.xlu0 %v772
        %v774 = vpop.xlane.xlu0 %773
        %vm775 = vcmp.eq.f32.partialorder %v772, %v774
        %v776 = vsel %vm775, %v771, inf
        %777 = vmin.xlane.f32.xlu0 %v776
        %v778 = vpop.xlane.xlu0 %777
        %v779 = vcvt.f32.s32 %v778
        %v780 = vcvt.f32.s32 %v774
        %v781 = vshll.u32 %v780, 16
        %v782 = vadd.s32 %v781, %v779
        %v783 = vsel %vm587, %v584, 2147483647
        %v784 = vand.u32 %v783, 65535
        %v785 = vshra.s32 %v783, 16
        %v786 = vcvt.s32.f32 %v784
        %v787 = vcvt.s32.f32 %v785
        %788 = vmin.xlane.f32.xlu0 %v787
        %v789 = vpop.xlane.xlu0 %788
        %vm790 = vcmp.eq.f32.partialorder %v787, %v789
        %v791 = vsel %vm790, %v786, inf
        %792 = vmin.xlane.f32.xlu0 %v791
        %v793 = vpop.xlane.xlu0 %792
        %v794 = vcvt.f32.s32 %v793
        %v795 = vcvt.f32.s32 %v789
        %v796 = vshll.u32 %v795, 16
        %v797 = vadd.s32 %v796, %v794
        %v798 = vsel %vm587, %v585, 2147483647
        %v799 = vand.u32 %v798, 65535
        %v800 = vshra.s32 %v798, 16
        %v801 = vcvt.s32.f32 %v799
        %v802 = vcvt.s32.f32 %v800
        %803 = vmin.xlane.f32.xlu0 %v802
        %v804 = vpop.xlane.xlu0 %803
        %vm805 = vcmp.eq.f32.partialorder %v802, %v804
        %v806 = vsel %vm805, %v801, inf
        %807 = vmin.xlane.f32.xlu0 %v806
        %v808 = vpop.xlane.xlu0 %807
        %v809 = vcvt.f32.s32 %v808
        %v810 = vcvt.f32.s32 %v804
        %v811 = vshll.u32 %v810, 16
        %v812 = vadd.s32 %v811, %v809
        %v813 = vsel %vm587, %v586, 2147483647
        %v814 = vand.u32 %v813, 65535
        %v815 = vshra.s32 %v813, 16
        %v816 = vcvt.s32.f32 %v814
        %v817 = vcvt.s32.f32 %v815
        %818 = vmin.xlane.f32.xlu0 %v817
        %v819 = vpop.xlane.xlu0 %818
        %vm820 = vcmp.eq.f32.partialorder %v817, %v819
        %v821 = vsel %vm820, %v816, inf
        %822 = vmin.xlane.f32.xlu0 %v821
        %v823 = vpop.xlane.xlu0 %822
        %v824 = vcvt.f32.s32 %v823
        %v825 = vcvt.f32.s32 %v819
        %v826 = vshll.u32 %v825, 16
        %v827 = vadd.s32 %v826, %v824
        %vm828 = vcmp.eq.f32.partialorder %v226, 1.0
        %vm829 = vcmp.eq.f32.partialorder %v227, 1.0
        %vm830 = vcmp.eq.f32.partialorder %v228, 1.0
        %vm831 = vcmp.eq.f32.partialorder %v229, 1.0
        %vm832 = vcmp.eq.f32.partialorder %v230, 1.0
        %vm833 = vcmp.eq.f32.partialorder %v231, 1.0
        %vm834 = vcmp.eq.f32.partialorder %v232, 1.0
        %vm835 = vcmp.eq.f32.partialorder %v233, 1.0
        %vm836 = vcmp.eq.f32.partialorder %v234, 1.0
        %vm837 = vcmp.eq.f32.partialorder %v235, 1.0
        %vm838 = vcmp.eq.f32.partialorder %v236, 1.0
        %vm839 = vcmp.eq.f32.partialorder %v237, 1.0
        %vm840 = vcmp.eq.f32.partialorder %v238, 1.0
        %vm841 = vcmp.eq.f32.partialorder %v239, 1.0
        %vm842 = vcmp.eq.f32.partialorder %v240, 1.0
        %vm843 = vcmp.eq.f32.partialorder %v241, 1.0
        %vm844 = vcmp.lt.s32.totalorder %v441, %v602
        %vm845 = vcmp.lt.s32.totalorder %v441, %v617
        %vm846 = vcmp.lt.s32.totalorder %v441, %v632
        %vm847 = vcmp.lt.s32.totalorder %v441, %v647
        %vm848 = vcmp.lt.s32.totalorder %v441, %v662
        %vm849 = vcmp.lt.s32.totalorder %v441, %v677
        %vm850 = vcmp.lt.s32.totalorder %v441, %v692
        %vm851 = vcmp.lt.s32.totalorder %v441, %v707
        %vm852 = vcmp.lt.s32.totalorder %v441, %v722
        %vm853 = vcmp.lt.s32.totalorder %v441, %v737
        %vm854 = vcmp.lt.s32.totalorder %v441, %v752
        %vm855 = vcmp.lt.s32.totalorder %v441, %v767
        %vm856 = vcmp.lt.s32.totalorder %v441, %v782
        %vm857 = vcmp.lt.s32.totalorder %v441, %v797
        %vm858 = vcmp.lt.s32.totalorder %v441, %v812
        %vm859 = vcmp.lt.s32.totalorder %v441, %v827
        %v860 = vsel %vm844, 1, 0
        %v861 = vsel %vm845, 1, 0
        %v862 = vsel %vm846, 1, 0
        %v863 = vsel %vm847, 1, 0
        %v864 = vsel %vm848, 1, 0
        %v865 = vsel %vm849, 1, 0
        %v866 = vsel %vm850, 1, 0
        %v867 = vsel %vm851, 1, 0
        %v868 = vsel %vm852, 1, 0
        %v869 = vsel %vm853, 1, 0
        %v870 = vsel %vm854, 1, 0
        %v871 = vsel %vm855, 1, 0
        %v872 = vsel %vm856, 1, 0
        %v873 = vsel %vm857, 1, 0
        %v874 = vsel %vm858, 1, 0
        %v875 = vsel %vm859, 1, 0
        %vm876 = vcmp.eq.s32.totalorder %v860, 1
        %vm877 = vcmp.eq.s32.totalorder %v861, 1
        %vm878 = vcmp.eq.s32.totalorder %v862, 1
        %vm879 = vcmp.eq.s32.totalorder %v863, 1
        %vm880 = vcmp.eq.s32.totalorder %v864, 1
        %vm881 = vcmp.eq.s32.totalorder %v865, 1
        %vm882 = vcmp.eq.s32.totalorder %v866, 1
        %vm883 = vcmp.eq.s32.totalorder %v867, 1
        %vm884 = vcmp.eq.s32.totalorder %v868, 1
        %vm885 = vcmp.eq.s32.totalorder %v869, 1
        %vm886 = vcmp.eq.s32.totalorder %v870, 1
        %vm887 = vcmp.eq.s32.totalorder %v871, 1
        %vm888 = vcmp.eq.s32.totalorder %v872, 1
        %vm889 = vcmp.eq.s32.totalorder %v873, 1
        %vm890 = vcmp.eq.s32.totalorder %v874, 1
        %vm891 = vcmp.eq.s32.totalorder %v875, 1
        %vm892 = vmand %vm828, %vm876
        %vm893 = vmand %vm829, %vm877
        %vm894 = vmand %vm830, %vm878
        %vm895 = vmand %vm831, %vm879
        %vm896 = vmand %vm832, %vm880
        %vm897 = vmand %vm833, %vm881
        %vm898 = vmand %vm834, %vm882
        %vm899 = vmand %vm835, %vm883
        %vm900 = vmand %vm836, %vm884
        %vm901 = vmand %vm837, %vm885
        %vm902 = vmand %vm838, %vm886
        %vm903 = vmand %vm839, %vm887
        %vm904 = vmand %vm840, %vm888
        %vm905 = vmand %vm841, %vm889
        %vm906 = vmand %vm842, %vm890
        %vm907 = vmand %vm843, %vm891
        %v908 = vsel %vm892, 1.0, 0.0
        %v909 = vsel %vm893, 1.0, 0.0
        %v910 = vsel %vm894, 1.0, 0.0
        %v911 = vsel %vm895, 1.0, 0.0
        %v912 = vsel %vm896, 1.0, 0.0
        %v913 = vsel %vm897, 1.0, 0.0
        %v914 = vsel %vm898, 1.0, 0.0
        %v915 = vsel %vm899, 1.0, 0.0
        %v916 = vsel %vm900, 1.0, 0.0
        %v917 = vsel %vm901, 1.0, 0.0
        %v918 = vsel %vm902, 1.0, 0.0
        %v919 = vsel %vm903, 1.0, 0.0
        %v920 = vsel %vm904, 1.0, 0.0
        %v921 = vsel %vm905, 1.0, 0.0
        %v922 = vsel %vm906, 1.0, 0.0
        %v923 = vsel %vm907, 1.0, 0.0
        %v924 = vlaneseq
        %v925 = vshrl.u32 %v924, 7
        %v926 = vsub.s32 0, %v925
        %v927 = vrot.slane %v209, %v926
        %vm928 = vcmask 261120
        %v930 = vsel %vm928, %v362, 0
        %v933 = vsel %vm928, %v367, 0
        %v936 = vsel %vm928, %v372, 0
        %v939 = vsel %vm928, %v377, 0
        %v942 = vsel %vm928, %v382, 0
        %v945 = vsel %vm928, %v387, 0
        %v948 = vsel %vm928, %v392, 0
        %v951 = vsel %vm928, %v397, 0
        %v954 = vsel %vm928, %v402, 0
        %v957 = vsel %vm928, %v407, 0
        %v960 = vsel %vm928, %v412, 0
        %v963 = vsel %vm928, %v417, 0
        %v966 = vsel %vm928, %v422, 0
        %v969 = vsel %vm928, %v427, 0
        %v972 = vsel %vm928, %v432, 0
        %v975 = vsel %vm928, %v437, 0
        %977 = vmatprep.subr.mxu0 0.0
        %978 = vmatpush1.msra.mxu0 %v196
        %979 = vmatprep.subr.mxu0 0.0
        %980 = vmatpush1.msra.mxu0 %v197
        %981 = vmatprep.subr.mxu0 0.0
        %982 = vmatpush1.msra.mxu0 %v198
        %983 = vmatprep.subr.mxu0 0.0
        %984 = vmatpush1.msra.mxu0 %v199
        %985 = vmatprep.subr.mxu0 0.0
        %986 = vmatpush1.msra.mxu0 0.0
        %987 = vmatprep.subr.mxu0 0.0
        %988 = vmatpush1.msra.mxu0 0.0
        %989 = vmatprep.subr.mxu0 0.0
        %990 = vmatpush1.msra.mxu0 0.0
        %991 = vmatprep.subr.mxu0 0.0
        %992 = vmatpush1.msra.mxu0 0.0
        %993 = vmatprep.subr.mxu0 0.0
        %994 = vmatpush1.msra.mxu0 0.0
        %995 = vmatprep.subr.mxu0 0.0
        %996 = vmatpush1.msra.mxu0 0.0
        %997 = vmatprep.subr.mxu0 0.0
        %998 = vmatpush1.msra.mxu0 0.0
        %999 = vmatprep.subr.mxu0 0.0
        %1000 = vmatpush1.msra.mxu0 0.0
        %1001 = vmatprep.subr.mxu0 0.0
        %1002 = vmatpush1.msra.mxu0 0.0
        %1003 = vmatprep.subr.mxu0 0.0
        %1004 = vmatpush1.msra.mxu0 0.0
        %1005 = vmatprep.subr.mxu0 0.0
        %1006 = vmatpush1.msra.mxu0 0.0
        %1007 = vmatprep.subr.mxu0 0.0
        %1008 = vmatpush1.msra.mxu0 0.0
        %1009 = vmatprep.subr.mxu0 0.0
        %1010 = vmatpush1.msra.mxu0 0.0
        %1011 = vmatprep.subr.mxu0 0.0
        %1012 = vmatpush1.msra.mxu0 0.0
        %1013 = vmatprep.subr.mxu0 0.0
        %1014 = vmatpush1.msra.mxu0 0.0
        %1015 = vmatprep.subr.mxu0 0.0
        %1016 = vmatpush1.msra.mxu0 0.0
        %1017 = vmatprep.subr.mxu0 0.0
        %1018 = vmatpush1.msra.mxu0 0.0
        %1019 = vmatprep.subr.mxu0 0.0
        %1020 = vmatpush1.msra.mxu0 0.0
        %1021 = vmatprep.subr.mxu0 0.0
        %1022 = vmatpush1.msra.mxu0 0.0
        %1023 = vmatprep.subr.mxu0 0.0
        %1024 = vmatpush1.msra.mxu0 0.0
        %1025 = vmatprep.subr.mxu0 0.0
        %1026 = vmatpush1.msra.mxu0 0.0
        %1027 = vmatprep.subr.mxu0 0.0
        %1028 = vmatpush1.msra.mxu0 0.0
        %1029 = vmatprep.subr.mxu0 0.0
        %1030 = vmatpush1.msra.mxu0 0.0
        %1031 = vmatprep.subr.mxu0 0.0
        %1032 = vmatpush1.msra.mxu0 0.0
        %1033 = vmatprep.subr.mxu0 0.0
        %1034 = vmatpush1.msra.mxu0 0.0
        %1035 = vmatprep.subr.mxu0 0.0
        %1036 = vmatpush1.msra.mxu0 0.0
        %1037 = vmatprep.subr.mxu0 0.0
        %1038 = vmatpush1.msra.mxu0 0.0
        %1039 = vmatprep.subr.mxu0 0.0
        %1040 = vmatpush1.msra.mxu0 0.0
        %1041 = vmatprep.mubr.f32.mxu0 0.0
        %1042 = vmatmul.mubr.f32.gmra.mrb[0].mxu0 %v930
        %v1043 = vpop.f32.mrb[0].mxu0
        %v1044 = vadd.f32 %v927, %v1043
        %v1045 = vpop.f32.mrb[0].mxu0
        %1046 = vmatprep.mubr.f32.mxu0 0.0
        %1047 = vmatmul.mubr.f32.gmra.mrb[0].mxu0 %v933
        %v1048 = vpop.f32.mrb[0].mxu0
        %v1049 = vadd.f32 %v927, %v1048
        %v1050 = vpop.f32.mrb[0].mxu0
        %1051 = vmatprep.mubr.f32.mxu0 0.0
        %1052 = vmatmul.mubr.f32.gmra.mrb[0].mxu0 %v936
        %v1053 = vpop.f32.mrb[0].mxu0
        %v1054 = vadd.f32 %v927, %v1053
        %v1055 = vpop.f32.mrb[0].mxu0
        %1056 = vmatprep.mubr.f32.mxu0 0.0
        %1057 = vmatmul.mubr.f32.gmra.mrb[0].mxu0 %v939
        %v1058 = vpop.f32.mrb[0].mxu0
        %v1059 = vadd.f32 %v927, %v1058
        %v1060 = vpop.f32.mrb[0].mxu0
        %1061 = vmatprep.mubr.f32.mxu0 0.0
        %1062 = vmatmul.mubr.f32.gmra.mrb[0].mxu0 %v942
        %v1063 = vpop.f32.mrb[0].mxu0
        %v1064 = vadd.f32 %v927, %v1063
        %v1065 = vpop.f32.mrb[0].mxu0
        %1066 = vmatprep.mubr.f32.mxu0 0.0
        %1067 = vmatmul.mubr.f32.gmra.mrb[0].mxu0 %v945
        %v1068 = vpop.f32.mrb[0].mxu0
        %v1069 = vadd.f32 %v927, %v1068
        %v1070 = vpop.f32.mrb[0].mxu0
        %1071 = vmatprep.mubr.f32.mxu0 0.0
        %1072 = vmatmul.mubr.f32.gmra.mrb[0].mxu0 %v948
        %v1073 = vpop.f32.mrb[0].mxu0
        %v1074 = vadd.f32 %v927, %v1073
        %v1075 = vpop.f32.mrb[0].mxu0
        %1076 = vmatprep.mubr.f32.mxu0 0.0
        %1077 = vmatmul.mubr.f32.gmra.mrb[0].mxu0 %v951
        %v1078 = vpop.f32.mrb[0].mxu0
        %v1079 = vadd.f32 %v927, %v1078
        %v1080 = vpop.f32.mrb[0].mxu0
        %1081 = vmatprep.mubr.f32.mxu0 0.0
        %1082 = vmatmul.mubr.f32.gmra.mrb[0].mxu0 %v954
        %v1083 = vpop.f32.mrb[0].mxu0
        %v1084 = vadd.f32 %v927, %v1083
        %v1085 = vpop.f32.mrb[0].mxu0
        %1086 = vmatprep.mubr.f32.mxu0 0.0
        %1087 = vmatmul.mubr.f32.gmra.mrb[0].mxu0 %v957
        %v1088 = vpop.f32.mrb[0].mxu0
        %v1089 = vadd.f32 %v927, %v1088
        %v1090 = vpop.f32.mrb[0].mxu0
        %1091 = vmatprep.mubr.f32.mxu0 0.0
        %1092 = vmatmul.mubr.f32.gmra.mrb[0].mxu0 %v960
        %v1093 = vpop.f32.mrb[0].mxu0
        %v1094 = vadd.f32 %v927, %v1093
        %v1095 = vpop.f32.mrb[0].mxu0
        %1096 = vmatprep.mubr.f32.mxu0 0.0
        %1097 = vmatmul.mubr.f32.gmra.mrb[0].mxu0 %v963
        %v1098 = vpop.f32.mrb[0].mxu0
        %v1099 = vadd.f32 %v927, %v1098
        %v1100 = vpop.f32.mrb[0].mxu0
        %1101 = vmatprep.mubr.f32.mxu0 0.0
        %1102 = vmatmul.mubr.f32.gmra.mrb[0].mxu0 %v966
        %v1103 = vpop.f32.mrb[0].mxu0
        %v1104 = vadd.f32 %v927, %v1103
        %v1105 = vpop.f32.mrb[0].mxu0
        %1106 = vmatprep.mubr.f32.mxu0 0.0
        %1107 = vmatmul.mubr.f32.gmra.mrb[0].mxu0 %v969
        %v1108 = vpop.f32.mrb[0].mxu0
        %v1109 = vadd.f32 %v927, %v1108
        %v1110 = vpop.f32.mrb[0].mxu0
        %1111 = vmatprep.mubr.f32.mxu0 0.0
        %1112 = vmatmul.mubr.f32.gmra.mrb[0].mxu0 %v972
        %v1113 = vpop.f32.mrb[0].mxu0
        %v1114 = vadd.f32 %v927, %v1113
        %v1115 = vpop.f32.mrb[0].mxu0
        %1116 = vmatprep.mubr.f32.mxu0 0.0
        %1117 = vmatmul.mubr.f32.gmra.mrb[0].mxu0 %v975
        %v1118 = vpop.f32.mrb[0].mxu0
        %v1119 = vadd.f32 %v927, %v1118
        %v1120 = vpop.f32.mrb[0].mxu0
        %1121 = vdwg.mxu0
        %v1122 = vmax.f32 %v1044, 0.0
        %v1123 = vmax.f32 %v1049, 0.0
        %v1124 = vmax.f32 %v1054, 0.0
        %v1125 = vmax.f32 %v1059, 0.0
        %v1126 = vmax.f32 %v1064, 0.0
        %v1127 = vmax.f32 %v1069, 0.0
        %v1128 = vmax.f32 %v1074, 0.0
        %v1129 = vmax.f32 %v1079, 0.0
        %v1130 = vmax.f32 %v1084, 0.0
        %v1131 = vmax.f32 %v1089, 0.0
        %v1132 = vmax.f32 %v1094, 0.0
        %v1133 = vmax.f32 %v1099, 0.0
        %v1134 = vmax.f32 %v1104, 0.0
        %v1135 = vmax.f32 %v1109, 0.0
        %v1136 = vmax.f32 %v1114, 0.0
        %v1137 = vmax.f32 %v1119, 0.0
        %v1139 = vsel %vm928, %v1122, 0
        %v1142 = vsel %vm928, %v1123, 0
        %v1145 = vsel %vm928, %v1124, 0
        %v1148 = vsel %vm928, %v1125, 0
        %v1151 = vsel %vm928, %v1126, 0
        %v1154 = vsel %vm928, %v1127, 0
        %v1157 = vsel %vm928, %v1128, 0
        %v1160 = vsel %vm928, %v1129, 0
        %v1163 = vsel %vm928, %v1130, 0
        %v1166 = vsel %vm928, %v1131, 0
        %v1169 = vsel %vm928, %v1132, 0
        %v1172 = vsel %vm928, %v1133, 0
        %v1175 = vsel %vm928, %v1134, 0
        %v1178 = vsel %vm928, %v1135, 0
        %v1181 = vsel %vm928, %v1136, 0
        %v1184 = vsel %vm928, %v1137, 0
        %1186 = vmatprep.subr.mxu0 0.0
        %1187 = vmatpush1.msra.mxu0 %v204
        %1188 = vmatprep.subr.mxu0 0.0
        %1189 = vmatpush1.msra.mxu0 %v205
        %1190 = vmatprep.subr.mxu0 0.0
        %1191 = vmatpush1.msra.mxu0 %v206
        %1192 = vmatprep.subr.mxu0 0.0
        %1193 = vmatpush1.msra.mxu0 %v207
        %1194 = vmatprep.subr.mxu0 0.0
        %1195 = vmatpush1.msra.mxu0 0.0
        %1196 = vmatprep.subr.mxu0 0.0
        %1197 = vmatpush1.msra.mxu0 0.0
        %1198 = vmatprep.subr.mxu0 0.0
        %1199 = vmatpush1.msra.mxu0 0.0
        %1200 = vmatprep.subr.mxu0 0.0
        %1201 = vmatpush1.msra.mxu0 0.0
        %1202 = vmatprep.subr.mxu0 0.0
        %1203 = vmatpush1.msra.mxu0 0.0
        %1204 = vmatprep.subr.mxu0 0.0
        %1205 = vmatpush1.msra.mxu0 0.0
        %1206 = vmatprep.subr.mxu0 0.0
        %1207 = vmatpush1.msra.mxu0 0.0
        %1208 = vmatprep.subr.mxu0 0.0
        %1209 = vmatpush1.msra.mxu0 0.0
        %1210 = vmatprep.subr.mxu0 0.0
        %1211 = vmatpush1.msra.mxu0 0.0
        %1212 = vmatprep.subr.mxu0 0.0
        %1213 = vmatpush1.msra.mxu0 0.0
        %1214 = vmatprep.subr.mxu0 0.0
        %1215 = vmatpush1.msra.mxu0 0.0
        %1216 = vmatprep.subr.mxu0 0.0
        %1217 = vmatpush1.msra.mxu0 0.0
        %1218 = vmatprep.subr.mxu0 0.0
        %1219 = vmatpush1.msra.mxu0 0.0
        %1220 = vmatprep.subr.mxu0 0.0
        %1221 = vmatpush1.msra.mxu0 0.0
        %1222 = vmatprep.subr.mxu0 0.0
        %1223 = vmatpush1.msra.mxu0 0.0
        %1224 = vmatprep.subr.mxu0 0.0
        %1225 = vmatpush1.msra.mxu0 0.0
        %1226 = vmatprep.subr.mxu0 0.0
        %1227 = vmatpush1.msra.mxu0 0.0
        %1228 = vmatprep.subr.mxu0 0.0
        %1229 = vmatpush1.msra.mxu0 0.0
        %1230 = vmatprep.subr.mxu0 0.0
        %1231 = vmatpush1.msra.mxu0 0.0
        %1232 = vmatprep.subr.mxu0 0.0
        %1233 = vmatpush1.msra.mxu0 0.0
        %1234 = vmatprep.subr.mxu0 0.0
        %1235 = vmatpush1.msra.mxu0 0.0
        %1236 = vmatprep.subr.mxu0 0.0
        %1237 = vmatpush1.msra.mxu0 0.0
        %1238 = vmatprep.subr.mxu0 0.0
        %1239 = vmatpush1.msra.mxu0 0.0
        %1240 = vmatprep.subr.mxu0 0.0
        %1241 = vmatpush1.msra.mxu0 0.0
        %1242 = vmatprep.subr.mxu0 0.0
        %1243 = vmatpush1.msra.mxu0 0.0
        %1244 = vmatprep.subr.mxu0 0.0
        %1245 = vmatpush1.msra.mxu0 0.0
        %1246 = vmatprep.subr.mxu0 0.0
        %1247 = vmatpush1.msra.mxu0 0.0
        %1248 = vmatprep.subr.mxu0 0.0
        %1249 = vmatpush1.msra.mxu0 0.0
        %1250 = vmatprep.mubr.f32.mxu0 0.0
        %1251 = vmatmul.mubr.f32.gmra.mrb[0].mxu0 %v1139
        %v1252 = vpop.f32.mrb[0].mxu0
        %v1253 = vadd.f32 0.0, %v1252
        %v1254 = vpop.f32.mrb[0].mxu0
        %1255 = vmatprep.mubr.f32.mxu0 0.0
        %1256 = vmatmul.mubr.f32.gmra.mrb[0].mxu0 %v1142
        %v1257 = vpop.f32.mrb[0].mxu0
        %v1258 = vadd.f32 0.0, %v1257
        %v1259 = vpop.f32.mrb[0].mxu0
        %1260 = vmatprep.mubr.f32.mxu0 0.0
        %1261 = vmatmul.mubr.f32.gmra.mrb[0].mxu0 %v1145
        %v1262 = vpop.f32.mrb[0].mxu0
        %v1263 = vadd.f32 0.0, %v1262
        %v1264 = vpop.f32.mrb[0].mxu0
        %1265 = vmatprep.mubr.f32.mxu0 0.0
        %1266 = vmatmul.mubr.f32.gmra.mrb[0].mxu0 %v1148
        %v1267 = vpop.f32.mrb[0].mxu0
        %v1268 = vadd.f32 0.0, %v1267
        %v1269 = vpop.f32.mrb[0].mxu0
        %1270 = vmatprep.mubr.f32.mxu0 0.0
        %1271 = vmatmul.mubr.f32.gmra.mrb[0].mxu0 %v1151
        %v1272 = vpop.f32.mrb[0].mxu0
        %v1273 = vadd.f32 0.0, %v1272
        %v1274 = vpop.f32.mrb[0].mxu0
        %1275 = vmatprep.mubr.f32.mxu0 0.0
        %1276 = vmatmul.mubr.f32.gmra.mrb[0].mxu0 %v1154
        %v1277 = vpop.f32.mrb[0].mxu0
        %v1278 = vadd.f32 0.0, %v1277
        %v1279 = vpop.f32.mrb[0].mxu0
        %1280 = vmatprep.mubr.f32.mxu0 0.0
        %1281 = vmatmul.mubr.f32.gmra.mrb[0].mxu0 %v1157
        %v1282 = vpop.f32.mrb[0].mxu0
        %v1283 = vadd.f32 0.0, %v1282
        %v1284 = vpop.f32.mrb[0].mxu0
        %1285 = vmatprep.mubr.f32.mxu0 0.0
        %1286 = vmatmul.mubr.f32.gmra.mrb[0].mxu0 %v1160
        %v1287 = vpop.f32.mrb[0].mxu0
        %v1288 = vadd.f32 0.0, %v1287
        %v1289 = vpop.f32.mrb[0].mxu0
        %1290 = vmatprep.mubr.f32.mxu0 0.0
        %1291 = vmatmul.mubr.f32.gmra.mrb[0].mxu0 %v1163
        %v1292 = vpop.f32.mrb[0].mxu0
        %v1293 = vadd.f32 0.0, %v1292
        %v1294 = vpop.f32.mrb[0].mxu0
        %1295 = vmatprep.mubr.f32.mxu0 0.0
        %1296 = vmatmul.mubr.f32.gmra.mrb[0].mxu0 %v1166
        %v1297 = vpop.f32.mrb[0].mxu0
        %v1298 = vadd.f32 0.0, %v1297
        %v1299 = vpop.f32.mrb[0].mxu0
        %1300 = vmatprep.mubr.f32.mxu0 0.0
        %1301 = vmatmul.mubr.f32.gmra.mrb[0].mxu0 %v1169
        %v1302 = vpop.f32.mrb[0].mxu0
        %v1303 = vadd.f32 0.0, %v1302
        %v1304 = vpop.f32.mrb[0].mxu0
        %1305 = vmatprep.mubr.f32.mxu0 0.0
        %1306 = vmatmul.mubr.f32.gmra.mrb[0].mxu0 %v1172
        %v1307 = vpop.f32.mrb[0].mxu0
        %v1308 = vadd.f32 0.0, %v1307
        %v1309 = vpop.f32.mrb[0].mxu0
        %1310 = vmatprep.mubr.f32.mxu0 0.0
        %1311 = vmatmul.mubr.f32.gmra.mrb[0].mxu0 %v1175
        %v1312 = vpop.f32.mrb[0].mxu0
        %v1313 = vadd.f32 0.0, %v1312
        %v1314 = vpop.f32.mrb[0].mxu0
        %1315 = vmatprep.mubr.f32.mxu0 0.0
        %1316 = vmatmul.mubr.f32.gmra.mrb[0].mxu0 %v1178
        %v1317 = vpop.f32.mrb[0].mxu0
        %v1318 = vadd.f32 0.0, %v1317
        %v1319 = vpop.f32.mrb[0].mxu0
        %1320 = vmatprep.mubr.f32.mxu0 0.0
        %1321 = vmatmul.mubr.f32.gmra.mrb[0].mxu0 %v1181
        %v1322 = vpop.f32.mrb[0].mxu0
        %v1323 = vadd.f32 0.0, %v1322
        %v1324 = vpop.f32.mrb[0].mxu0
        %1325 = vmatprep.mubr.f32.mxu0 0.0
        %1326 = vmatmul.mubr.f32.gmra.mrb[0].mxu0 %v1184
        %v1327 = vpop.f32.mrb[0].mxu0
        %v1328 = vadd.f32 0.0, %v1327
        %v1329 = vpop.f32.mrb[0].mxu0
        %1330 = vdwg.mxu0
        %1331 = vmatprep.subr.mxu0 0.0
        %1332 = vmatpush1.msra.mxu0 %v200
        %1333 = vmatprep.subr.mxu0 0.0
        %1334 = vmatpush1.msra.mxu0 %v201
        %1335 = vmatprep.subr.mxu0 0.0
        %1336 = vmatpush1.msra.mxu0 %v202
        %1337 = vmatprep.subr.mxu0 0.0
        %1338 = vmatpush1.msra.mxu0 %v203
        %1339 = vmatprep.subr.mxu0 0.0
        %1340 = vmatpush1.msra.mxu0 0.0
        %1341 = vmatprep.subr.mxu0 0.0
        %1342 = vmatpush1.msra.mxu0 0.0
        %1343 = vmatprep.subr.mxu0 0.0
        %1344 = vmatpush1.msra.mxu0 0.0
        %1345 = vmatprep.subr.mxu0 0.0
        %1346 = vmatpush1.msra.mxu0 0.0
        %1347 = vmatprep.subr.mxu0 0.0
        %1348 = vmatpush1.msra.mxu0 0.0
        %1349 = vmatprep.subr.mxu0 0.0
        %1350 = vmatpush1.msra.mxu0 0.0
        %1351 = vmatprep.subr.mxu0 0.0
        %1352 = vmatpush1.msra.mxu0 0.0
        %1353 = vmatprep.subr.mxu0 0.0
        %1354 = vmatpush1.msra.mxu0 0.0
        %1355 = vmatprep.subr.mxu0 0.0
        %1356 = vmatpush1.msra.mxu0 0.0
        %1357 = vmatprep.subr.mxu0 0.0
        %1358 = vmatpush1.msra.mxu0 0.0
        %1359 = vmatprep.subr.mxu0 0.0
        %1360 = vmatpush1.msra.mxu0 0.0
        %1361 = vmatprep.subr.mxu0 0.0
        %1362 = vmatpush1.msra.mxu0 0.0
        %1363 = vmatprep.subr.mxu0 0.0
        %1364 = vmatpush1.msra.mxu0 0.0
        %1365 = vmatprep.subr.mxu0 0.0
        %1366 = vmatpush1.msra.mxu0 0.0
        %1367 = vmatprep.subr.mxu0 0.0
        %1368 = vmatpush1.msra.mxu0 0.0
        %1369 = vmatprep.subr.mxu0 0.0
        %1370 = vmatpush1.msra.mxu0 0.0
        %1371 = vmatprep.subr.mxu0 0.0
        %1372 = vmatpush1.msra.mxu0 0.0
        %1373 = vmatprep.subr.mxu0 0.0
        %1374 = vmatpush1.msra.mxu0 0.0
        %1375 = vmatprep.subr.mxu0 0.0
        %1376 = vmatpush1.msra.mxu0 0.0
        %1377 = vmatprep.subr.mxu0 0.0
        %1378 = vmatpush1.msra.mxu0 0.0
        %1379 = vmatprep.subr.mxu0 0.0
        %1380 = vmatpush1.msra.mxu0 0.0
        %1381 = vmatprep.subr.mxu0 0.0
        %1382 = vmatpush1.msra.mxu0 0.0
        %1383 = vmatprep.subr.mxu0 0.0
        %1384 = vmatpush1.msra.mxu0 0.0
        %1385 = vmatprep.subr.mxu0 0.0
        %1386 = vmatpush1.msra.mxu0 0.0
        %1387 = vmatprep.subr.mxu0 0.0
        %1388 = vmatpush1.msra.mxu0 0.0
        %1389 = vmatprep.subr.mxu0 0.0
        %1390 = vmatpush1.msra.mxu0 0.0
        %1391 = vmatprep.subr.mxu0 0.0
        %1392 = vmatpush1.msra.mxu0 0.0
        %1393 = vmatprep.subr.mxu0 0.0
        %1394 = vmatpush1.msra.mxu0 0.0
        %1395 = vmatprep.mubr.f32.mxu0 0.0
        %1396 = vmatmul.mubr.f32.gmra.mrb[0].mxu0 %v930
        %v1397 = vpop.f32.mrb[0].mxu0
        %v1398 = vadd.f32 0.0, %v1397
        %v1399 = vpop.f32.mrb[0].mxu0
        %1400 = vmatprep.mubr.f32.mxu0 0.0
        %1401 = vmatmul.mubr.f32.gmra.mrb[0].mxu0 %v933
        %v1402 = vpop.f32.mrb[0].mxu0
        %v1403 = vadd.f32 0.0, %v1402
        %v1404 = vpop.f32.mrb[0].mxu0
        %1405 = vmatprep.mubr.f32.mxu0 0.0
        %1406 = vmatmul.mubr.f32.gmra.mrb[0].mxu0 %v936
        %v1407 = vpop.f32.mrb[0].mxu0
        %v1408 = vadd.f32 0.0, %v1407
        %v1409 = vpop.f32.mrb[0].mxu0
        %1410 = vmatprep.mubr.f32.mxu0 0.0
        %1411 = vmatmul.mubr.f32.gmra.mrb[0].mxu0 %v939
        %v1412 = vpop.f32.mrb[0].mxu0
        %v1413 = vadd.f32 0.0, %v1412
        %v1414 = vpop.f32.mrb[0].mxu0
        %1415 = vmatprep.mubr.f32.mxu0 0.0
        %1416 = vmatmul.mubr.f32.gmra.mrb[0].mxu0 %v942
        %v1417 = vpop.f32.mrb[0].mxu0
        %v1418 = vadd.f32 0.0, %v1417
        %v1419 = vpop.f32.mrb[0].mxu0
        %1420 = vmatprep.mubr.f32.mxu0 0.0
        %1421 = vmatmul.mubr.f32.gmra.mrb[0].mxu0 %v945
        %v1422 = vpop.f32.mrb[0].mxu0
        %v1423 = vadd.f32 0.0, %v1422
        %v1424 = vpop.f32.mrb[0].mxu0
        %1425 = vmatprep.mubr.f32.mxu0 0.0
        %1426 = vmatmul.mubr.f32.gmra.mrb[0].mxu0 %v948
        %v1427 = vpop.f32.mrb[0].mxu0
        %v1428 = vadd.f32 0.0, %v1427
        %v1429 = vpop.f32.mrb[0].mxu0
        %1430 = vmatprep.mubr.f32.mxu0 0.0
        %1431 = vmatmul.mubr.f32.gmra.mrb[0].mxu0 %v951
        %v1432 = vpop.f32.mrb[0].mxu0
        %v1433 = vadd.f32 0.0, %v1432
        %v1434 = vpop.f32.mrb[0].mxu0
        %1435 = vmatprep.mubr.f32.mxu0 0.0
        %1436 = vmatmul.mubr.f32.gmra.mrb[0].mxu0 %v954
        %v1437 = vpop.f32.mrb[0].mxu0
        %v1438 = vadd.f32 0.0, %v1437
        %v1439 = vpop.f32.mrb[0].mxu0
        %1440 = vmatprep.mubr.f32.mxu0 0.0
        %1441 = vmatmul.mubr.f32.gmra.mrb[0].mxu0 %v957
        %v1442 = vpop.f32.mrb[0].mxu0
        %v1443 = vadd.f32 0.0, %v1442
        %v1444 = vpop.f32.mrb[0].mxu0
        %1445 = vmatprep.mubr.f32.mxu0 0.0
        %1446 = vmatmul.mubr.f32.gmra.mrb[0].mxu0 %v960
        %v1447 = vpop.f32.mrb[0].mxu0
        %v1448 = vadd.f32 0.0, %v1447
        %v1449 = vpop.f32.mrb[0].mxu0
        %1450 = vmatprep.mubr.f32.mxu0 0.0
        %1451 = vmatmul.mubr.f32.gmra.mrb[0].mxu0 %v963
        %v1452 = vpop.f32.mrb[0].mxu0
        %v1453 = vadd.f32 0.0, %v1452
        %v1454 = vpop.f32.mrb[0].mxu0
        %1455 = vmatprep.mubr.f32.mxu0 0.0
        %1456 = vmatmul.mubr.f32.gmra.mrb[0].mxu0 %v966
        %v1457 = vpop.f32.mrb[0].mxu0
        %v1458 = vadd.f32 0.0, %v1457
        %v1459 = vpop.f32.mrb[0].mxu0
        %1460 = vmatprep.mubr.f32.mxu0 0.0
        %1461 = vmatmul.mubr.f32.gmra.mrb[0].mxu0 %v969
        %v1462 = vpop.f32.mrb[0].mxu0
        %v1463 = vadd.f32 0.0, %v1462
        %v1464 = vpop.f32.mrb[0].mxu0
        %1465 = vmatprep.mubr.f32.mxu0 0.0
        %1466 = vmatmul.mubr.f32.gmra.mrb[0].mxu0 %v972
        %v1467 = vpop.f32.mrb[0].mxu0
        %v1468 = vadd.f32 0.0, %v1467
        %v1469 = vpop.f32.mrb[0].mxu0
        %1470 = vmatprep.mubr.f32.mxu0 0.0
        %1471 = vmatmul.mubr.f32.gmra.mrb[0].mxu0 %v975
        %v1472 = vpop.f32.mrb[0].mxu0
        %v1473 = vadd.f32 0.0, %v1472
        %v1474 = vpop.f32.mrb[0].mxu0
        %1475 = vdwg.mxu0
        %v1476 = vadd.f32 %v908, 1.0
        %v1477 = vadd.f32 %v909, 1.0
        %v1478 = vadd.f32 %v910, 1.0
        %v1479 = vadd.f32 %v911, 1.0
        %v1480 = vadd.f32 %v912, 1.0
        %v1481 = vadd.f32 %v913, 1.0
        %v1482 = vadd.f32 %v914, 1.0
        %v1483 = vadd.f32 %v915, 1.0
        %v1484 = vadd.f32 %v916, 1.0
        %v1485 = vadd.f32 %v917, 1.0
        %v1486 = vadd.f32 %v918, 1.0
        %v1487 = vadd.f32 %v919, 1.0
        %v1488 = vadd.f32 %v920, 1.0
        %v1489 = vadd.f32 %v921, 1.0
        %v1490 = vadd.f32 %v922, 1.0
        %v1491 = vadd.f32 %v923, 1.0
        %1493 = vset.pattern.permute.xlu0 0
        %1494 = vperm.xlu0 %1493, %v1476
        %v1495 = vpop.permute.xlu0 %1494
        %1498 = vset.pattern.permute.xlu0 0
        %1499 = vperm.xlu0 %1498, %v1477
        %v1500 = vpop.permute.xlu0 %1499
        %1503 = vset.pattern.permute.xlu0 0
        %1504 = vperm.xlu0 %1503, %v1478
        %v1505 = vpop.permute.xlu0 %1504
        %1508 = vset.pattern.permute.xlu0 0
        %1509 = vperm.xlu0 %1508, %v1479
        %v1510 = vpop.permute.xlu0 %1509
        %1513 = vset.pattern.permute.xlu0 0
        %1514 = vperm.xlu0 %1513, %v1480
        %v1515 = vpop.permute.xlu0 %1514
        %1518 = vset.pattern.permute.xlu0 0
        %1519 = vperm.xlu0 %1518, %v1481
        %v1520 = vpop.permute.xlu0 %1519
        %1523 = vset.pattern.permute.xlu0 0
        %1524 = vperm.xlu0 %1523, %v1482
        %v1525 = vpop.permute.xlu0 %1524
        %1528 = vset.pattern.permute.xlu0 0
        %1529 = vperm.xlu0 %1528, %v1483
        %v1530 = vpop.permute.xlu0 %1529
        %1533 = vset.pattern.permute.xlu0 0
        %1534 = vperm.xlu0 %1533, %v1484
        %v1535 = vpop.permute.xlu0 %1534
        %1538 = vset.pattern.permute.xlu0 0
        %1539 = vperm.xlu0 %1538, %v1485
        %v1540 = vpop.permute.xlu0 %1539
        %1543 = vset.pattern.permute.xlu0 0
        %1544 = vperm.xlu0 %1543, %v1486
        %v1545 = vpop.permute.xlu0 %1544
        %1548 = vset.pattern.permute.xlu0 0
        %1549 = vperm.xlu0 %1548, %v1487
        %v1550 = vpop.permute.xlu0 %1549
        %1553 = vset.pattern.permute.xlu0 0
        %1554 = vperm.xlu0 %1553, %v1488
        %v1555 = vpop.permute.xlu0 %1554
        %1558 = vset.pattern.permute.xlu0 0
        %1559 = vperm.xlu0 %1558, %v1489
        %v1560 = vpop.permute.xlu0 %1559
        %1563 = vset.pattern.permute.xlu0 0
        %1564 = vperm.xlu0 %1563, %v1490
        %v1565 = vpop.permute.xlu0 %1564
        %1568 = vset.pattern.permute.xlu0 0
        %1569 = vperm.xlu0 %1568, %v1491
        %v1570 = vpop.permute.xlu0 %1569
        %v1572 = vlaneseq
        %v1573 = vshrl.u32 %v1572, 7
        %v1574 = vsub.s32 0, %v1573
        %v1575 = vrot.slane %v1398, %v1574
        %v1576 = vlaneseq
        %v1577 = vshrl.u32 %v1576, 7
        %v1578 = vsub.s32 0, %v1577
        %v1579 = vrot.slane %v1403, %v1578
        %v1580 = vlaneseq
        %v1581 = vshrl.u32 %v1580, 7
        %v1582 = vsub.s32 0, %v1581
        %v1583 = vrot.slane %v1408, %v1582
        %v1584 = vlaneseq
        %v1585 = vshrl.u32 %v1584, 7
        %v1586 = vsub.s32 0, %v1585
        %v1587 = vrot.slane %v1413, %v1586
        %v1588 = vlaneseq
        %v1589 = vshrl.u32 %v1588, 7
        %v1590 = vsub.s32 0, %v1589
        %v1591 = vrot.slane %v1418, %v1590
        %v1592 = vlaneseq
        %v1593 = vshrl.u32 %v1592, 7
        %v1594 = vsub.s32 0, %v1593
        %v1595 = vrot.slane %v1423, %v1594
        %v1596 = vlaneseq
        %v1597 = vshrl.u32 %v1596, 7
        %v1598 = vsub.s32 0, %v1597
        %v1599 = vrot.slane %v1428, %v1598
        %v1600 = vlaneseq
        %v1601 = vshrl.u32 %v1600, 7
        %v1602 = vsub.s32 0, %v1601
        %v1603 = vrot.slane %v1433, %v1602
        %v1604 = vlaneseq
        %v1605 = vshrl.u32 %v1604, 7
        %v1606 = vsub.s32 0, %v1605
        %v1607 = vrot.slane %v1438, %v1606
        %v1608 = vlaneseq
        %v1609 = vshrl.u32 %v1608, 7
        %v1610 = vsub.s32 0, %v1609
        %v1611 = vrot.slane %v1443, %v1610
        %v1612 = vlaneseq
        %v1613 = vshrl.u32 %v1612, 7
        %v1614 = vsub.s32 0, %v1613
        %v1615 = vrot.slane %v1448, %v1614
        %v1616 = vlaneseq
        %v1617 = vshrl.u32 %v1616, 7
        %v1618 = vsub.s32 0, %v1617
        %v1619 = vrot.slane %v1453, %v1618
        %v1620 = vlaneseq
        %v1621 = vshrl.u32 %v1620, 7
        %v1622 = vsub.s32 0, %v1621
        %v1623 = vrot.slane %v1458, %v1622
        %v1624 = vlaneseq
        %v1625 = vshrl.u32 %v1624, 7
        %v1626 = vsub.s32 0, %v1625
        %v1627 = vrot.slane %v1463, %v1626
        %v1628 = vlaneseq
        %v1629 = vshrl.u32 %v1628, 7
        %v1630 = vsub.s32 0, %v1629
        %v1631 = vrot.slane %v1468, %v1630
        %v1632 = vlaneseq
        %v1633 = vshrl.u32 %v1632, 7
        %v1634 = vsub.s32 0, %v1633
        %v1635 = vrot.slane %v1473, %v1634
        %v1636 = vmul.f32 %v1495, %v1575
        %v1637 = vmul.f32 %v1500, %v1579
        %v1638 = vmul.f32 %v1505, %v1583
        %v1639 = vmul.f32 %v1510, %v1587
        %v1640 = vmul.f32 %v1515, %v1591
        %v1641 = vmul.f32 %v1520, %v1595
        %v1642 = vmul.f32 %v1525, %v1599
        %v1643 = vmul.f32 %v1530, %v1603
        %v1644 = vmul.f32 %v1535, %v1607
        %v1645 = vmul.f32 %v1540, %v1611
        %v1646 = vmul.f32 %v1545, %v1615
        %v1647 = vmul.f32 %v1550, %v1619
        %v1648 = vmul.f32 %v1555, %v1623
        %v1649 = vmul.f32 %v1560, %v1627
        %v1650 = vmul.f32 %v1565, %v1631
        %v1651 = vmul.f32 %v1570, %v1635
        %1652 = vset.pattern.permute.xlu0 1
        %1653 = vperm.xlu0 %1652, %v1476
        %v1654 = vpop.permute.xlu0 %1653
        %1656 = vset.pattern.permute.xlu0 1
        %1657 = vperm.xlu0 %1656, %v1477
        %v1658 = vpop.permute.xlu0 %1657
        %1660 = vset.pattern.permute.xlu0 1
        %1661 = vperm.xlu0 %1660, %v1478
        %v1662 = vpop.permute.xlu0 %1661
        %1664 = vset.pattern.permute.xlu0 1
        %1665 = vperm.xlu0 %1664, %v1479
        %v1666 = vpop.permute.xlu0 %1665
        %1668 = vset.pattern.permute.xlu0 1
        %1669 = vperm.xlu0 %1668, %v1480
        %v1670 = vpop.permute.xlu0 %1669
        %1672 = vset.pattern.permute.xlu0 1
        %1673 = vperm.xlu0 %1672, %v1481
        %v1674 = vpop.permute.xlu0 %1673
        %1676 = vset.pattern.permute.xlu0 1
        %1677 = vperm.xlu0 %1676, %v1482
        %v1678 = vpop.permute.xlu0 %1677
        %1680 = vset.pattern.permute.xlu0 1
        %1681 = vperm.xlu0 %1680, %v1483
        %v1682 = vpop.permute.xlu0 %1681
        %1684 = vset.pattern.permute.xlu0 1
        %1685 = vperm.xlu0 %1684, %v1484
        %v1686 = vpop.permute.xlu0 %1685
        %1688 = vset.pattern.permute.xlu0 1
        %1689 = vperm.xlu0 %1688, %v1485
        %v1690 = vpop.permute.xlu0 %1689
        %1692 = vset.pattern.permute.xlu0 1
        %1693 = vperm.xlu0 %1692, %v1486
        %v1694 = vpop.permute.xlu0 %1693
        %1696 = vset.pattern.permute.xlu0 1
        %1697 = vperm.xlu0 %1696, %v1487
        %v1698 = vpop.permute.xlu0 %1697
        %1700 = vset.pattern.permute.xlu0 1
        %1701 = vperm.xlu0 %1700, %v1488
        %v1702 = vpop.permute.xlu0 %1701
        %1704 = vset.pattern.permute.xlu0 1
        %1705 = vperm.xlu0 %1704, %v1489
        %v1706 = vpop.permute.xlu0 %1705
        %1708 = vset.pattern.permute.xlu0 1
        %1709 = vperm.xlu0 %1708, %v1490
        %v1710 = vpop.permute.xlu0 %1709
        %1712 = vset.pattern.permute.xlu0 1
        %1713 = vperm.xlu0 %1712, %v1491
        %v1714 = vpop.permute.xlu0 %1713
        %v1716 = vlaneseq
        %v1717 = vshrl.u32 %v1716, 7
        %v1718 = vsub.s32 1, %v1717
        %v1719 = vrot.slane %v1398, %v1718
        %v1720 = vlaneseq
        %v1721 = vshrl.u32 %v1720, 7
        %v1722 = vsub.s32 1, %v1721
        %v1723 = vrot.slane %v1403, %v1722
        %v1724 = vlaneseq
        %v1725 = vshrl.u32 %v1724, 7
        %v1726 = vsub.s32 1, %v1725
        %v1727 = vrot.slane %v1408, %v1726
        %v1728 = vlaneseq
        %v1729 = vshrl.u32 %v1728, 7
        %v1730 = vsub.s32 1, %v1729
        %v1731 = vrot.slane %v1413, %v1730
        %v1732 = vlaneseq
        %v1733 = vshrl.u32 %v1732, 7
        %v1734 = vsub.s32 1, %v1733
        %v1735 = vrot.slane %v1418, %v1734
        %v1736 = vlaneseq
        %v1737 = vshrl.u32 %v1736, 7
        %v1738 = vsub.s32 1, %v1737
        %v1739 = vrot.slane %v1423, %v1738
        %v1740 = vlaneseq
        %v1741 = vshrl.u32 %v1740, 7
        %v1742 = vsub.s32 1, %v1741
        %v1743 = vrot.slane %v1428, %v1742
        %v1744 = vlaneseq
        %v1745 = vshrl.u32 %v1744, 7
        %v1746 = vsub.s32 1, %v1745
        %v1747 = vrot.slane %v1433, %v1746
        %v1748 = vlaneseq
        %v1749 = vshrl.u32 %v1748, 7
        %v1750 = vsub.s32 1, %v1749
        %v1751 = vrot.slane %v1438, %v1750
        %v1752 = vlaneseq
        %v1753 = vshrl.u32 %v1752, 7
        %v1754 = vsub.s32 1, %v1753
        %v1755 = vrot.slane %v1443, %v1754
        %v1756 = vlaneseq
        %v1757 = vshrl.u32 %v1756, 7
        %v1758 = vsub.s32 1, %v1757
        %v1759 = vrot.slane %v1448, %v1758
        %v1760 = vlaneseq
        %v1761 = vshrl.u32 %v1760, 7
        %v1762 = vsub.s32 1, %v1761
        %v1763 = vrot.slane %v1453, %v1762
        %v1764 = vlaneseq
        %v1765 = vshrl.u32 %v1764, 7
        %v1766 = vsub.s32 1, %v1765
        %v1767 = vrot.slane %v1458, %v1766
        %v1768 = vlaneseq
        %v1769 = vshrl.u32 %v1768, 7
        %v1770 = vsub.s32 1, %v1769
        %v1771 = vrot.slane %v1463, %v1770
        %v1772 = vlaneseq
        %v1773 = vshrl.u32 %v1772, 7
        %v1774 = vsub.s32 1, %v1773
        %v1775 = vrot.slane %v1468, %v1774
        %v1776 = vlaneseq
        %v1777 = vshrl.u32 %v1776, 7
        %v1778 = vsub.s32 1, %v1777
        %v1779 = vrot.slane %v1473, %v1778
        %v1780 = vmul.f32 %v1654, %v1719
        %v1781 = vmul.f32 %v1658, %v1723
        %v1782 = vmul.f32 %v1662, %v1727
        %v1783 = vmul.f32 %v1666, %v1731
        %v1784 = vmul.f32 %v1670, %v1735
        %v1785 = vmul.f32 %v1674, %v1739
        %v1786 = vmul.f32 %v1678, %v1743
        %v1787 = vmul.f32 %v1682, %v1747
        %v1788 = vmul.f32 %v1686, %v1751
        %v1789 = vmul.f32 %v1690, %v1755
        %v1790 = vmul.f32 %v1694, %v1759
        %v1791 = vmul.f32 %v1698, %v1763
        %v1792 = vmul.f32 %v1702, %v1767
        %v1793 = vmul.f32 %v1706, %v1771
        %v1794 = vmul.f32 %v1710, %v1775
        %v1795 = vmul.f32 %v1714, %v1779
        %v1796 = vadd.f32 %v1636, %v1780
        %v1797 = vadd.f32 %v1637, %v1781
        %v1798 = vadd.f32 %v1638, %v1782
        %v1799 = vadd.f32 %v1639, %v1783
        %v1800 = vadd.f32 %v1640, %v1784
        %v1801 = vadd.f32 %v1641, %v1785
        %v1802 = vadd.f32 %v1642, %v1786
        %v1803 = vadd.f32 %v1643, %v1787
        %v1804 = vadd.f32 %v1644, %v1788
        %v1805 = vadd.f32 %v1645, %v1789
        %v1806 = vadd.f32 %v1646, %v1790
        %v1807 = vadd.f32 %v1647, %v1791
        %v1808 = vadd.f32 %v1648, %v1792
        %v1809 = vadd.f32 %v1649, %v1793
        %v1810 = vadd.f32 %v1650, %v1794
        %v1811 = vadd.f32 %v1651, %v1795
        %1812 = vset.pattern.permute.xlu0 2
        %1813 = vperm.xlu0 %1812, %v1476
        %v1814 = vpop.permute.xlu0 %1813
        %1816 = vset.pattern.permute.xlu0 2
        %1817 = vperm.xlu0 %1816, %v1477
        %v1818 = vpop.permute.xlu0 %1817
        %1820 = vset.pattern.permute.xlu0 2
        %1821 = vperm.xlu0 %1820, %v1478
        %v1822 = vpop.permute.xlu0 %1821
        %1824 = vset.pattern.permute.xlu0 2
        %1825 = vperm.xlu0 %1824, %v1479
        %v1826 = vpop.permute.xlu0 %1825
        %1828 = vset.pattern.permute.xlu0 2
        %1829 = vperm.xlu0 %1828, %v1480
        %v1830 = vpop.permute.xlu0 %1829
        %1832 = vset.pattern.permute.xlu0 2
        %1833 = vperm.xlu0 %1832, %v1481
        %v1834 = vpop.permute.xlu0 %1833
        %1836 = vset.pattern.permute.xlu0 2
        %1837 = vperm.xlu0 %1836, %v1482
        %v1838 = vpop.permute.xlu0 %1837
        %1840 = vset.pattern.permute.xlu0 2
        %1841 = vperm.xlu0 %1840, %v1483
        %v1842 = vpop.permute.xlu0 %1841
        %1844 = vset.pattern.permute.xlu0 2
        %1845 = vperm.xlu0 %1844, %v1484
        %v1846 = vpop.permute.xlu0 %1845
        %1848 = vset.pattern.permute.xlu0 2
        %1849 = vperm.xlu0 %1848, %v1485
        %v1850 = vpop.permute.xlu0 %1849
        %1852 = vset.pattern.permute.xlu0 2
        %1853 = vperm.xlu0 %1852, %v1486
        %v1854 = vpop.permute.xlu0 %1853
        %1856 = vset.pattern.permute.xlu0 2
        %1857 = vperm.xlu0 %1856, %v1487
        %v1858 = vpop.permute.xlu0 %1857
        %1860 = vset.pattern.permute.xlu0 2
        %1861 = vperm.xlu0 %1860, %v1488
        %v1862 = vpop.permute.xlu0 %1861
        %1864 = vset.pattern.permute.xlu0 2
        %1865 = vperm.xlu0 %1864, %v1489
        %v1866 = vpop.permute.xlu0 %1865
        %1868 = vset.pattern.permute.xlu0 2
        %1869 = vperm.xlu0 %1868, %v1490
        %v1870 = vpop.permute.xlu0 %1869
        %1872 = vset.pattern.permute.xlu0 2
        %1873 = vperm.xlu0 %1872, %v1491
        %v1874 = vpop.permute.xlu0 %1873
        %v1876 = vlaneseq
        %v1877 = vshrl.u32 %v1876, 7
        %v1878 = vsub.s32 2, %v1877
        %v1879 = vrot.slane %v1398, %v1878
        %v1880 = vlaneseq
        %v1881 = vshrl.u32 %v1880, 7
        %v1882 = vsub.s32 2, %v1881
        %v1883 = vrot.slane %v1403, %v1882
        %v1884 = vlaneseq
        %v1885 = vshrl.u32 %v1884, 7
        %v1886 = vsub.s32 2, %v1885
        %v1887 = vrot.slane %v1408, %v1886
        %v1888 = vlaneseq
        %v1889 = vshrl.u32 %v1888, 7
        %v1890 = vsub.s32 2, %v1889
        %v1891 = vrot.slane %v1413, %v1890
        %v1892 = vlaneseq
        %v1893 = vshrl.u32 %v1892, 7
        %v1894 = vsub.s32 2, %v1893
        %v1895 = vrot.slane %v1418, %v1894
        %v1896 = vlaneseq
        %v1897 = vshrl.u32 %v1896, 7
        %v1898 = vsub.s32 2, %v1897
        %v1899 = vrot.slane %v1423, %v1898
        %v1900 = vlaneseq
        %v1901 = vshrl.u32 %v1900, 7
        %v1902 = vsub.s32 2, %v1901
        %v1903 = vrot.slane %v1428, %v1902
        %v1904 = vlaneseq
        %v1905 = vshrl.u32 %v1904, 7
        %v1906 = vsub.s32 2, %v1905
        %v1907 = vrot.slane %v1433, %v1906
        %v1908 = vlaneseq
        %v1909 = vshrl.u32 %v1908, 7
        %v1910 = vsub.s32 2, %v1909
        %v1911 = vrot.slane %v1438, %v1910
        %v1912 = vlaneseq
        %v1913 = vshrl.u32 %v1912, 7
        %v1914 = vsub.s32 2, %v1913
        %v1915 = vrot.slane %v1443, %v1914
        %v1916 = vlaneseq
        %v1917 = vshrl.u32 %v1916, 7
        %v1918 = vsub.s32 2, %v1917
        %v1919 = vrot.slane %v1448, %v1918
        %v1920 = vlaneseq
        %v1921 = vshrl.u32 %v1920, 7
        %v1922 = vsub.s32 2, %v1921
        %v1923 = vrot.slane %v1453, %v1922
        %v1924 = vlaneseq
        %v1925 = vshrl.u32 %v1924, 7
        %v1926 = vsub.s32 2, %v1925
        %v1927 = vrot.slane %v1458, %v1926
        %v1928 = vlaneseq
        %v1929 = vshrl.u32 %v1928, 7
        %v1930 = vsub.s32 2, %v1929
        %v1931 = vrot.slane %v1463, %v1930
        %v1932 = vlaneseq
        %v1933 = vshrl.u32 %v1932, 7
        %v1934 = vsub.s32 2, %v1933
        %v1935 = vrot.slane %v1468, %v1934
        %v1936 = vlaneseq
        %v1937 = vshrl.u32 %v1936, 7
        %v1938 = vsub.s32 2, %v1937
        %v1939 = vrot.slane %v1473, %v1938
        %v1940 = vmul.f32 %v1814, %v1879
        %v1941 = vmul.f32 %v1818, %v1883
        %v1942 = vmul.f32 %v1822, %v1887
        %v1943 = vmul.f32 %v1826, %v1891
        %v1944 = vmul.f32 %v1830, %v1895
        %v1945 = vmul.f32 %v1834, %v1899
        %v1946 = vmul.f32 %v1838, %v1903
        %v1947 = vmul.f32 %v1842, %v1907
        %v1948 = vmul.f32 %v1846, %v1911
        %v1949 = vmul.f32 %v1850, %v1915
        %v1950 = vmul.f32 %v1854, %v1919
        %v1951 = vmul.f32 %v1858, %v1923
        %v1952 = vmul.f32 %v1862, %v1927
        %v1953 = vmul.f32 %v1866, %v1931
        %v1954 = vmul.f32 %v1870, %v1935
        %v1955 = vmul.f32 %v1874, %v1939
        %v1956 = vadd.f32 %v1796, %v1940
        %v1957 = vadd.f32 %v1797, %v1941
        %v1958 = vadd.f32 %v1798, %v1942
        %v1959 = vadd.f32 %v1799, %v1943
        %v1960 = vadd.f32 %v1800, %v1944
        %v1961 = vadd.f32 %v1801, %v1945
        %v1962 = vadd.f32 %v1802, %v1946
        %v1963 = vadd.f32 %v1803, %v1947
        %v1964 = vadd.f32 %v1804, %v1948
        %v1965 = vadd.f32 %v1805, %v1949
        %v1966 = vadd.f32 %v1806, %v1950
        %v1967 = vadd.f32 %v1807, %v1951
        %v1968 = vadd.f32 %v1808, %v1952
        %v1969 = vadd.f32 %v1809, %v1953
        %v1970 = vadd.f32 %v1810, %v1954
        %v1971 = vadd.f32 %v1811, %v1955
        %1972 = vset.pattern.permute.xlu0 3
        %1973 = vperm.xlu0 %1972, %v1476
        %v1974 = vpop.permute.xlu0 %1973
        %1976 = vset.pattern.permute.xlu0 3
        %1977 = vperm.xlu0 %1976, %v1477
        %v1978 = vpop.permute.xlu0 %1977
        %1980 = vset.pattern.permute.xlu0 3
        %1981 = vperm.xlu0 %1980, %v1478
        %v1982 = vpop.permute.xlu0 %1981
        %1984 = vset.pattern.permute.xlu0 3
        %1985 = vperm.xlu0 %1984, %v1479
        %v1986 = vpop.permute.xlu0 %1985
        %1988 = vset.pattern.permute.xlu0 3
        %1989 = vperm.xlu0 %1988, %v1480
        %v1990 = vpop.permute.xlu0 %1989
        %1992 = vset.pattern.permute.xlu0 3
        %1993 = vperm.xlu0 %1992, %v1481
        %v1994 = vpop.permute.xlu0 %1993
        %1996 = vset.pattern.permute.xlu0 3
        %1997 = vperm.xlu0 %1996, %v1482
        %v1998 = vpop.permute.xlu0 %1997
        %2000 = vset.pattern.permute.xlu0 3
        %2001 = vperm.xlu0 %2000, %v1483
        %v2002 = vpop.permute.xlu0 %2001
        %2004 = vset.pattern.permute.xlu0 3
        %2005 = vperm.xlu0 %2004, %v1484
        %v2006 = vpop.permute.xlu0 %2005
        %2008 = vset.pattern.permute.xlu0 3
        %2009 = vperm.xlu0 %2008, %v1485
        %v2010 = vpop.permute.xlu0 %2009
        %2012 = vset.pattern.permute.xlu0 3
        %2013 = vperm.xlu0 %2012, %v1486
        %v2014 = vpop.permute.xlu0 %2013
        %2016 = vset.pattern.permute.xlu0 3
        %2017 = vperm.xlu0 %2016, %v1487
        %v2018 = vpop.permute.xlu0 %2017
        %2020 = vset.pattern.permute.xlu0 3
        %2021 = vperm.xlu0 %2020, %v1488
        %v2022 = vpop.permute.xlu0 %2021
        %2024 = vset.pattern.permute.xlu0 3
        %2025 = vperm.xlu0 %2024, %v1489
        %v2026 = vpop.permute.xlu0 %2025
        %2028 = vset.pattern.permute.xlu0 3
        %2029 = vperm.xlu0 %2028, %v1490
        %v2030 = vpop.permute.xlu0 %2029
        %2032 = vset.pattern.permute.xlu0 3
        %2033 = vperm.xlu0 %2032, %v1491
        %v2034 = vpop.permute.xlu0 %2033
        %v2036 = vlaneseq
        %v2037 = vshrl.u32 %v2036, 7
        %v2038 = vsub.s32 3, %v2037
        %v2039 = vrot.slane %v1398, %v2038
        %v2040 = vlaneseq
        %v2041 = vshrl.u32 %v2040, 7
        %v2042 = vsub.s32 3, %v2041
        %v2043 = vrot.slane %v1403, %v2042
        %v2044 = vlaneseq
        %v2045 = vshrl.u32 %v2044, 7
        %v2046 = vsub.s32 3, %v2045
        %v2047 = vrot.slane %v1408, %v2046
        %v2048 = vlaneseq
        %v2049 = vshrl.u32 %v2048, 7
        %v2050 = vsub.s32 3, %v2049
        %v2051 = vrot.slane %v1413, %v2050
        %v2052 = vlaneseq
        %v2053 = vshrl.u32 %v2052, 7
        %v2054 = vsub.s32 3, %v2053
        %v2055 = vrot.slane %v1418, %v2054
        %v2056 = vlaneseq
        %v2057 = vshrl.u32 %v2056, 7
        %v2058 = vsub.s32 3, %v2057
        %v2059 = vrot.slane %v1423, %v2058
        %v2060 = vlaneseq
        %v2061 = vshrl.u32 %v2060, 7
        %v2062 = vsub.s32 3, %v2061
        %v2063 = vrot.slane %v1428, %v2062
        %v2064 = vlaneseq
        %v2065 = vshrl.u32 %v2064, 7
        %v2066 = vsub.s32 3, %v2065
        %v2067 = vrot.slane %v1433, %v2066
        %v2068 = vlaneseq
        %v2069 = vshrl.u32 %v2068, 7
        %v2070 = vsub.s32 3, %v2069
        %v2071 = vrot.slane %v1438, %v2070
        %v2072 = vlaneseq
        %v2073 = vshrl.u32 %v2072, 7
        %v2074 = vsub.s32 3, %v2073
        %v2075 = vrot.slane %v1443, %v2074
        %v2076 = vlaneseq
        %v2077 = vshrl.u32 %v2076, 7
        %v2078 = vsub.s32 3, %v2077
        %v2079 = vrot.slane %v1448, %v2078
        %v2080 = vlaneseq
        %v2081 = vshrl.u32 %v2080, 7
        %v2082 = vsub.s32 3, %v2081
        %v2083 = vrot.slane %v1453, %v2082
        %v2084 = vlaneseq
        %v2085 = vshrl.u32 %v2084, 7
        %v2086 = vsub.s32 3, %v2085
        %v2087 = vrot.slane %v1458, %v2086
        %v2088 = vlaneseq
        %v2089 = vshrl.u32 %v2088, 7
        %v2090 = vsub.s32 3, %v2089
        %v2091 = vrot.slane %v1463, %v2090
        %v2092 = vlaneseq
        %v2093 = vshrl.u32 %v2092, 7
        %v2094 = vsub.s32 3, %v2093
        %v2095 = vrot.slane %v1468, %v2094
        %v2096 = vlaneseq
        %v2097 = vshrl.u32 %v2096, 7
        %v2098 = vsub.s32 3, %v2097
        %v2099 = vrot.slane %v1473, %v2098
        %v2100 = vmul.f32 %v1974, %v2039
        %v2101 = vmul.f32 %v1978, %v2043
        %v2102 = vmul.f32 %v1982, %v2047
        %v2103 = vmul.f32 %v1986, %v2051
        %v2104 = vmul.f32 %v1990, %v2055
        %v2105 = vmul.f32 %v1994, %v2059
        %v2106 = vmul.f32 %v1998, %v2063
        %v2107 = vmul.f32 %v2002, %v2067
        %v2108 = vmul.f32 %v2006, %v2071
        %v2109 = vmul.f32 %v2010, %v2075
        %v2110 = vmul.f32 %v2014, %v2079
        %v2111 = vmul.f32 %v2018, %v2083
        %v2112 = vmul.f32 %v2022, %v2087
        %v2113 = vmul.f32 %v2026, %v2091
        %v2114 = vmul.f32 %v2030, %v2095
        %v2115 = vmul.f32 %v2034, %v2099
        %v2116 = vadd.f32 %v1956, %v2100
        %v2117 = vadd.f32 %v1957, %v2101
        %v2118 = vadd.f32 %v1958, %v2102
        %v2119 = vadd.f32 %v1959, %v2103
        %v2120 = vadd.f32 %v1960, %v2104
        %v2121 = vadd.f32 %v1961, %v2105
        %v2122 = vadd.f32 %v1962, %v2106
        %v2123 = vadd.f32 %v1963, %v2107
        %v2124 = vadd.f32 %v1964, %v2108
        %v2125 = vadd.f32 %v1965, %v2109
        %v2126 = vadd.f32 %v1966, %v2110
        %v2127 = vadd.f32 %v1967, %v2111
        %v2128 = vadd.f32 %v1968, %v2112
        %v2129 = vadd.f32 %v1969, %v2113
        %v2130 = vadd.f32 %v1970, %v2114
        %v2131 = vadd.f32 %v1971, %v2115
        %2132 = vset.pattern.permute.xlu0 4
        %2133 = vperm.xlu0 %2132, %v1476
        %v2134 = vpop.permute.xlu0 %2133
        %2136 = vset.pattern.permute.xlu0 4
        %2137 = vperm.xlu0 %2136, %v1477
        %v2138 = vpop.permute.xlu0 %2137
        %2140 = vset.pattern.permute.xlu0 4
        %2141 = vperm.xlu0 %2140, %v1478
        %v2142 = vpop.permute.xlu0 %2141
        %2144 = vset.pattern.permute.xlu0 4
        %2145 = vperm.xlu0 %2144, %v1479
        %v2146 = vpop.permute.xlu0 %2145
        %2148 = vset.pattern.permute.xlu0 4
        %2149 = vperm.xlu0 %2148, %v1480
        %v2150 = vpop.permute.xlu0 %2149
        %2152 = vset.pattern.permute.xlu0 4
        %2153 = vperm.xlu0 %2152, %v1481
        %v2154 = vpop.permute.xlu0 %2153
        %2156 = vset.pattern.permute.xlu0 4
        %2157 = vperm.xlu0 %2156, %v1482
        %v2158 = vpop.permute.xlu0 %2157
        %2160 = vset.pattern.permute.xlu0 4
        %2161 = vperm.xlu0 %2160, %v1483
        %v2162 = vpop.permute.xlu0 %2161
        %2164 = vset.pattern.permute.xlu0 4
        %2165 = vperm.xlu0 %2164, %v1484
        %v2166 = vpop.permute.xlu0 %2165
        %2168 = vset.pattern.permute.xlu0 4
        %2169 = vperm.xlu0 %2168, %v1485
        %v2170 = vpop.permute.xlu0 %2169
        %2172 = vset.pattern.permute.xlu0 4
        %2173 = vperm.xlu0 %2172, %v1486
        %v2174 = vpop.permute.xlu0 %2173
        %2176 = vset.pattern.permute.xlu0 4
        %2177 = vperm.xlu0 %2176, %v1487
        %v2178 = vpop.permute.xlu0 %2177
        %2180 = vset.pattern.permute.xlu0 4
        %2181 = vperm.xlu0 %2180, %v1488
        %v2182 = vpop.permute.xlu0 %2181
        %2184 = vset.pattern.permute.xlu0 4
        %2185 = vperm.xlu0 %2184, %v1489
        %v2186 = vpop.permute.xlu0 %2185
        %2188 = vset.pattern.permute.xlu0 4
        %2189 = vperm.xlu0 %2188, %v1490
        %v2190 = vpop.permute.xlu0 %2189
        %2192 = vset.pattern.permute.xlu0 4
        %2193 = vperm.xlu0 %2192, %v1491
        %v2194 = vpop.permute.xlu0 %2193
        %v2196 = vlaneseq
        %v2197 = vshrl.u32 %v2196, 7
        %v2198 = vsub.s32 4, %v2197
        %v2199 = vrot.slane %v1398, %v2198
        %v2200 = vlaneseq
        %v2201 = vshrl.u32 %v2200, 7
        %v2202 = vsub.s32 4, %v2201
        %v2203 = vrot.slane %v1403, %v2202
        %v2204 = vlaneseq
        %v2205 = vshrl.u32 %v2204, 7
        %v2206 = vsub.s32 4, %v2205
        %v2207 = vrot.slane %v1408, %v2206
        %v2208 = vlaneseq
        %v2209 = vshrl.u32 %v2208, 7
        %v2210 = vsub.s32 4, %v2209
        %v2211 = vrot.slane %v1413, %v2210
        %v2212 = vlaneseq
        %v2213 = vshrl.u32 %v2212, 7
        %v2214 = vsub.s32 4, %v2213
        %v2215 = vrot.slane %v1418, %v2214
        %v2216 = vlaneseq
        %v2217 = vshrl.u32 %v2216, 7
        %v2218 = vsub.s32 4, %v2217
        %v2219 = vrot.slane %v1423, %v2218
        %v2220 = vlaneseq
        %v2221 = vshrl.u32 %v2220, 7
        %v2222 = vsub.s32 4, %v2221
        %v2223 = vrot.slane %v1428, %v2222
        %v2224 = vlaneseq
        %v2225 = vshrl.u32 %v2224, 7
        %v2226 = vsub.s32 4, %v2225
        %v2227 = vrot.slane %v1433, %v2226
        %v2228 = vlaneseq
        %v2229 = vshrl.u32 %v2228, 7
        %v2230 = vsub.s32 4, %v2229
        %v2231 = vrot.slane %v1438, %v2230
        %v2232 = vlaneseq
        %v2233 = vshrl.u32 %v2232, 7
        %v2234 = vsub.s32 4, %v2233
        %v2235 = vrot.slane %v1443, %v2234
        %v2236 = vlaneseq
        %v2237 = vshrl.u32 %v2236, 7
        %v2238 = vsub.s32 4, %v2237
        %v2239 = vrot.slane %v1448, %v2238
        %v2240 = vlaneseq
        %v2241 = vshrl.u32 %v2240, 7
        %v2242 = vsub.s32 4, %v2241
        %v2243 = vrot.slane %v1453, %v2242
        %v2244 = vlaneseq
        %v2245 = vshrl.u32 %v2244, 7
        %v2246 = vsub.s32 4, %v2245
        %v2247 = vrot.slane %v1458, %v2246
        %v2248 = vlaneseq
        %v2249 = vshrl.u32 %v2248, 7
        %v2250 = vsub.s32 4, %v2249
        %v2251 = vrot.slane %v1463, %v2250
        %v2252 = vlaneseq
        %v2253 = vshrl.u32 %v2252, 7
        %v2254 = vsub.s32 4, %v2253
        %v2255 = vrot.slane %v1468, %v2254
        %v2256 = vlaneseq
        %v2257 = vshrl.u32 %v2256, 7
        %v2258 = vsub.s32 4, %v2257
        %v2259 = vrot.slane %v1473, %v2258
        %v2260 = vmul.f32 %v2134, %v2199
        %v2261 = vmul.f32 %v2138, %v2203
        %v2262 = vmul.f32 %v2142, %v2207
        %v2263 = vmul.f32 %v2146, %v2211
        %v2264 = vmul.f32 %v2150, %v2215
        %v2265 = vmul.f32 %v2154, %v2219
        %v2266 = vmul.f32 %v2158, %v2223
        %v2267 = vmul.f32 %v2162, %v2227
        %v2268 = vmul.f32 %v2166, %v2231
        %v2269 = vmul.f32 %v2170, %v2235
        %v2270 = vmul.f32 %v2174, %v2239
        %v2271 = vmul.f32 %v2178, %v2243
        %v2272 = vmul.f32 %v2182, %v2247
        %v2273 = vmul.f32 %v2186, %v2251
        %v2274 = vmul.f32 %v2190, %v2255
        %v2275 = vmul.f32 %v2194, %v2259
        %v2276 = vadd.f32 %v2116, %v2260
        %v2277 = vadd.f32 %v2117, %v2261
        %v2278 = vadd.f32 %v2118, %v2262
        %v2279 = vadd.f32 %v2119, %v2263
        %v2280 = vadd.f32 %v2120, %v2264
        %v2281 = vadd.f32 %v2121, %v2265
        %v2282 = vadd.f32 %v2122, %v2266
        %v2283 = vadd.f32 %v2123, %v2267
        %v2284 = vadd.f32 %v2124, %v2268
        %v2285 = vadd.f32 %v2125, %v2269
        %v2286 = vadd.f32 %v2126, %v2270
        %v2287 = vadd.f32 %v2127, %v2271
        %v2288 = vadd.f32 %v2128, %v2272
        %v2289 = vadd.f32 %v2129, %v2273
        %v2290 = vadd.f32 %v2130, %v2274
        %v2291 = vadd.f32 %v2131, %v2275
        %2292 = vset.pattern.permute.xlu0 5
        %2293 = vperm.xlu0 %2292, %v1476
        %v2294 = vpop.permute.xlu0 %2293
        %2296 = vset.pattern.permute.xlu0 5
        %2297 = vperm.xlu0 %2296, %v1477
        %v2298 = vpop.permute.xlu0 %2297
        %2300 = vset.pattern.permute.xlu0 5
        %2301 = vperm.xlu0 %2300, %v1478
        %v2302 = vpop.permute.xlu0 %2301
        %2304 = vset.pattern.permute.xlu0 5
        %2305 = vperm.xlu0 %2304, %v1479
        %v2306 = vpop.permute.xlu0 %2305
        %2308 = vset.pattern.permute.xlu0 5
        %2309 = vperm.xlu0 %2308, %v1480
        %v2310 = vpop.permute.xlu0 %2309
        %2312 = vset.pattern.permute.xlu0 5
        %2313 = vperm.xlu0 %2312, %v1481
        %v2314 = vpop.permute.xlu0 %2313
        %2316 = vset.pattern.permute.xlu0 5
        %2317 = vperm.xlu0 %2316, %v1482
        %v2318 = vpop.permute.xlu0 %2317
        %2320 = vset.pattern.permute.xlu0 5
        %2321 = vperm.xlu0 %2320, %v1483
        %v2322 = vpop.permute.xlu0 %2321
        %2324 = vset.pattern.permute.xlu0 5
        %2325 = vperm.xlu0 %2324, %v1484
        %v2326 = vpop.permute.xlu0 %2325
        %2328 = vset.pattern.permute.xlu0 5
        %2329 = vperm.xlu0 %2328, %v1485
        %v2330 = vpop.permute.xlu0 %2329
        %2332 = vset.pattern.permute.xlu0 5
        %2333 = vperm.xlu0 %2332, %v1486
        %v2334 = vpop.permute.xlu0 %2333
        %2336 = vset.pattern.permute.xlu0 5
        %2337 = vperm.xlu0 %2336, %v1487
        %v2338 = vpop.permute.xlu0 %2337
        %2340 = vset.pattern.permute.xlu0 5
        %2341 = vperm.xlu0 %2340, %v1488
        %v2342 = vpop.permute.xlu0 %2341
        %2344 = vset.pattern.permute.xlu0 5
        %2345 = vperm.xlu0 %2344, %v1489
        %v2346 = vpop.permute.xlu0 %2345
        %2348 = vset.pattern.permute.xlu0 5
        %2349 = vperm.xlu0 %2348, %v1490
        %v2350 = vpop.permute.xlu0 %2349
        %2352 = vset.pattern.permute.xlu0 5
        %2353 = vperm.xlu0 %2352, %v1491
        %v2354 = vpop.permute.xlu0 %2353
        %v2356 = vlaneseq
        %v2357 = vshrl.u32 %v2356, 7
        %v2358 = vsub.s32 5, %v2357
        %v2359 = vrot.slane %v1398, %v2358
        %v2360 = vlaneseq
        %v2361 = vshrl.u32 %v2360, 7
        %v2362 = vsub.s32 5, %v2361
        %v2363 = vrot.slane %v1403, %v2362
        %v2364 = vlaneseq
        %v2365 = vshrl.u32 %v2364, 7
        %v2366 = vsub.s32 5, %v2365
        %v2367 = vrot.slane %v1408, %v2366
        %v2368 = vlaneseq
        %v2369 = vshrl.u32 %v2368, 7
        %v2370 = vsub.s32 5, %v2369
        %v2371 = vrot.slane %v1413, %v2370
        %v2372 = vlaneseq
        %v2373 = vshrl.u32 %v2372, 7
        %v2374 = vsub.s32 5, %v2373
        %v2375 = vrot.slane %v1418, %v2374
        %v2376 = vlaneseq
        %v2377 = vshrl.u32 %v2376, 7
        %v2378 = vsub.s32 5, %v2377
        %v2379 = vrot.slane %v1423, %v2378
        %v2380 = vlaneseq
        %v2381 = vshrl.u32 %v2380, 7
        %v2382 = vsub.s32 5, %v2381
        %v2383 = vrot.slane %v1428, %v2382
        %v2384 = vlaneseq
        %v2385 = vshrl.u32 %v2384, 7
        %v2386 = vsub.s32 5, %v2385
        %v2387 = vrot.slane %v1433, %v2386
        %v2388 = vlaneseq
        %v2389 = vshrl.u32 %v2388, 7
        %v2390 = vsub.s32 5, %v2389
        %v2391 = vrot.slane %v1438, %v2390
        %v2392 = vlaneseq
        %v2393 = vshrl.u32 %v2392, 7
        %v2394 = vsub.s32 5, %v2393
        %v2395 = vrot.slane %v1443, %v2394
        %v2396 = vlaneseq
        %v2397 = vshrl.u32 %v2396, 7
        %v2398 = vsub.s32 5, %v2397
        %v2399 = vrot.slane %v1448, %v2398
        %v2400 = vlaneseq
        %v2401 = vshrl.u32 %v2400, 7
        %v2402 = vsub.s32 5, %v2401
        %v2403 = vrot.slane %v1453, %v2402
        %v2404 = vlaneseq
        %v2405 = vshrl.u32 %v2404, 7
        %v2406 = vsub.s32 5, %v2405
        %v2407 = vrot.slane %v1458, %v2406
        %v2408 = vlaneseq
        %v2409 = vshrl.u32 %v2408, 7
        %v2410 = vsub.s32 5, %v2409
        %v2411 = vrot.slane %v1463, %v2410
        %v2412 = vlaneseq
        %v2413 = vshrl.u32 %v2412, 7
        %v2414 = vsub.s32 5, %v2413
        %v2415 = vrot.slane %v1468, %v2414
        %v2416 = vlaneseq
        %v2417 = vshrl.u32 %v2416, 7
        %v2418 = vsub.s32 5, %v2417
        %v2419 = vrot.slane %v1473, %v2418
        %v2420 = vmul.f32 %v2294, %v2359
        %v2421 = vmul.f32 %v2298, %v2363
        %v2422 = vmul.f32 %v2302, %v2367
        %v2423 = vmul.f32 %v2306, %v2371
        %v2424 = vmul.f32 %v2310, %v2375
        %v2425 = vmul.f32 %v2314, %v2379
        %v2426 = vmul.f32 %v2318, %v2383
        %v2427 = vmul.f32 %v2322, %v2387
        %v2428 = vmul.f32 %v2326, %v2391
        %v2429 = vmul.f32 %v2330, %v2395
        %v2430 = vmul.f32 %v2334, %v2399
        %v2431 = vmul.f32 %v2338, %v2403
        %v2432 = vmul.f32 %v2342, %v2407
        %v2433 = vmul.f32 %v2346, %v2411
        %v2434 = vmul.f32 %v2350, %v2415
        %v2435 = vmul.f32 %v2354, %v2419
        %v2436 = vadd.f32 %v2276, %v2420
        %v2437 = vadd.f32 %v2277, %v2421
        %v2438 = vadd.f32 %v2278, %v2422
        %v2439 = vadd.f32 %v2279, %v2423
        %v2440 = vadd.f32 %v2280, %v2424
        %v2441 = vadd.f32 %v2281, %v2425
        %v2442 = vadd.f32 %v2282, %v2426
        %v2443 = vadd.f32 %v2283, %v2427
        %v2444 = vadd.f32 %v2284, %v2428
        %v2445 = vadd.f32 %v2285, %v2429
        %v2446 = vadd.f32 %v2286, %v2430
        %v2447 = vadd.f32 %v2287, %v2431
        %v2448 = vadd.f32 %v2288, %v2432
        %v2449 = vadd.f32 %v2289, %v2433
        %v2450 = vadd.f32 %v2290, %v2434
        %v2451 = vadd.f32 %v2291, %v2435
        %2452 = vset.pattern.permute.xlu0 6
        %2453 = vperm.xlu0 %2452, %v1476
        %v2454 = vpop.permute.xlu0 %2453
        %2456 = vset.pattern.permute.xlu0 6
        %2457 = vperm.xlu0 %2456, %v1477
        %v2458 = vpop.permute.xlu0 %2457
        %2460 = vset.pattern.permute.xlu0 6
        %2461 = vperm.xlu0 %2460, %v1478
        %v2462 = vpop.permute.xlu0 %2461
        %2464 = vset.pattern.permute.xlu0 6
        %2465 = vperm.xlu0 %2464, %v1479
        %v2466 = vpop.permute.xlu0 %2465
        %2468 = vset.pattern.permute.xlu0 6
        %2469 = vperm.xlu0 %2468, %v1480
        %v2470 = vpop.permute.xlu0 %2469
        %2472 = vset.pattern.permute.xlu0 6
        %2473 = vperm.xlu0 %2472, %v1481
        %v2474 = vpop.permute.xlu0 %2473
        %2476 = vset.pattern.permute.xlu0 6
        %2477 = vperm.xlu0 %2476, %v1482
        %v2478 = vpop.permute.xlu0 %2477
        %2480 = vset.pattern.permute.xlu0 6
        %2481 = vperm.xlu0 %2480, %v1483
        %v2482 = vpop.permute.xlu0 %2481
        %2484 = vset.pattern.permute.xlu0 6
        %2485 = vperm.xlu0 %2484, %v1484
        %v2486 = vpop.permute.xlu0 %2485
        %2488 = vset.pattern.permute.xlu0 6
        %2489 = vperm.xlu0 %2488, %v1485
        %v2490 = vpop.permute.xlu0 %2489
        %2492 = vset.pattern.permute.xlu0 6
        %2493 = vperm.xlu0 %2492, %v1486
        %v2494 = vpop.permute.xlu0 %2493
        %2496 = vset.pattern.permute.xlu0 6
        %2497 = vperm.xlu0 %2496, %v1487
        %v2498 = vpop.permute.xlu0 %2497
        %2500 = vset.pattern.permute.xlu0 6
        %2501 = vperm.xlu0 %2500, %v1488
        %v2502 = vpop.permute.xlu0 %2501
        %2504 = vset.pattern.permute.xlu0 6
        %2505 = vperm.xlu0 %2504, %v1489
        %v2506 = vpop.permute.xlu0 %2505
        %2508 = vset.pattern.permute.xlu0 6
        %2509 = vperm.xlu0 %2508, %v1490
        %v2510 = vpop.permute.xlu0 %2509
        %2512 = vset.pattern.permute.xlu0 6
        %2513 = vperm.xlu0 %2512, %v1491
        %v2514 = vpop.permute.xlu0 %2513
        %v2516 = vlaneseq
        %v2517 = vshrl.u32 %v2516, 7
        %v2518 = vsub.s32 6, %v2517
        %v2519 = vrot.slane %v1398, %v2518
        %v2520 = vlaneseq
        %v2521 = vshrl.u32 %v2520, 7
        %v2522 = vsub.s32 6, %v2521
        %v2523 = vrot.slane %v1403, %v2522
        %v2524 = vlaneseq
        %v2525 = vshrl.u32 %v2524, 7
        %v2526 = vsub.s32 6, %v2525
        %v2527 = vrot.slane %v1408, %v2526
        %v2528 = vlaneseq
        %v2529 = vshrl.u32 %v2528, 7
        %v2530 = vsub.s32 6, %v2529
        %v2531 = vrot.slane %v1413, %v2530
        %v2532 = vlaneseq
        %v2533 = vshrl.u32 %v2532, 7
        %v2534 = vsub.s32 6, %v2533
        %v2535 = vrot.slane %v1418, %v2534
        %v2536 = vlaneseq
        %v2537 = vshrl.u32 %v2536, 7
        %v2538 = vsub.s32 6, %v2537
        %v2539 = vrot.slane %v1423, %v2538
        %v2540 = vlaneseq
        %v2541 = vshrl.u32 %v2540, 7
        %v2542 = vsub.s32 6, %v2541
        %v2543 = vrot.slane %v1428, %v2542
        %v2544 = vlaneseq
        %v2545 = vshrl.u32 %v2544, 7
        %v2546 = vsub.s32 6, %v2545
        %v2547 = vrot.slane %v1433, %v2546
        %v2548 = vlaneseq
        %v2549 = vshrl.u32 %v2548, 7
        %v2550 = vsub.s32 6, %v2549
        %v2551 = vrot.slane %v1438, %v2550
        %v2552 = vlaneseq
        %v2553 = vshrl.u32 %v2552, 7
        %v2554 = vsub.s32 6, %v2553
        %v2555 = vrot.slane %v1443, %v2554
        %v2556 = vlaneseq
        %v2557 = vshrl.u32 %v2556, 7
        %v2558 = vsub.s32 6, %v2557
        %v2559 = vrot.slane %v1448, %v2558
        %v2560 = vlaneseq
        %v2561 = vshrl.u32 %v2560, 7
        %v2562 = vsub.s32 6, %v2561
        %v2563 = vrot.slane %v1453, %v2562
        %v2564 = vlaneseq
        %v2565 = vshrl.u32 %v2564, 7
        %v2566 = vsub.s32 6, %v2565
        %v2567 = vrot.slane %v1458, %v2566
        %v2568 = vlaneseq
        %v2569 = vshrl.u32 %v2568, 7
        %v2570 = vsub.s32 6, %v2569
        %v2571 = vrot.slane %v1463, %v2570
        %v2572 = vlaneseq
        %v2573 = vshrl.u32 %v2572, 7
        %v2574 = vsub.s32 6, %v2573
        %v2575 = vrot.slane %v1468, %v2574
        %v2576 = vlaneseq
        %v2577 = vshrl.u32 %v2576, 7
        %v2578 = vsub.s32 6, %v2577
        %v2579 = vrot.slane %v1473, %v2578
        %v2580 = vmul.f32 %v2454, %v2519
        %v2581 = vmul.f32 %v2458, %v2523
        %v2582 = vmul.f32 %v2462, %v2527
        %v2583 = vmul.f32 %v2466, %v2531
        %v2584 = vmul.f32 %v2470, %v2535
        %v2585 = vmul.f32 %v2474, %v2539
        %v2586 = vmul.f32 %v2478, %v2543
        %v2587 = vmul.f32 %v2482, %v2547
        %v2588 = vmul.f32 %v2486, %v2551
        %v2589 = vmul.f32 %v2490, %v2555
        %v2590 = vmul.f32 %v2494, %v2559
        %v2591 = vmul.f32 %v2498, %v2563
        %v2592 = vmul.f32 %v2502, %v2567
        %v2593 = vmul.f32 %v2506, %v2571
        %v2594 = vmul.f32 %v2510, %v2575
        %v2595 = vmul.f32 %v2514, %v2579
        %v2596 = vadd.f32 %v2436, %v2580
        %v2597 = vadd.f32 %v2437, %v2581
        %v2598 = vadd.f32 %v2438, %v2582
        %v2599 = vadd.f32 %v2439, %v2583
        %v2600 = vadd.f32 %v2440, %v2584
        %v2601 = vadd.f32 %v2441, %v2585
        %v2602 = vadd.f32 %v2442, %v2586
        %v2603 = vadd.f32 %v2443, %v2587
        %v2604 = vadd.f32 %v2444, %v2588
        %v2605 = vadd.f32 %v2445, %v2589
        %v2606 = vadd.f32 %v2446, %v2590
        %v2607 = vadd.f32 %v2447, %v2591
        %v2608 = vadd.f32 %v2448, %v2592
        %v2609 = vadd.f32 %v2449, %v2593
        %v2610 = vadd.f32 %v2450, %v2594
        %v2611 = vadd.f32 %v2451, %v2595
        %2612 = vset.pattern.permute.xlu0 7
        %2613 = vperm.xlu0 %2612, %v1476
        %v2614 = vpop.permute.xlu0 %2613
        %2616 = vset.pattern.permute.xlu0 7
        %2617 = vperm.xlu0 %2616, %v1477
        %v2618 = vpop.permute.xlu0 %2617
        %2620 = vset.pattern.permute.xlu0 7
        %2621 = vperm.xlu0 %2620, %v1478
        %v2622 = vpop.permute.xlu0 %2621
        %2624 = vset.pattern.permute.xlu0 7
        %2625 = vperm.xlu0 %2624, %v1479
        %v2626 = vpop.permute.xlu0 %2625
        %2628 = vset.pattern.permute.xlu0 7
        %2629 = vperm.xlu0 %2628, %v1480
        %v2630 = vpop.permute.xlu0 %2629
        %2632 = vset.pattern.permute.xlu0 7
        %2633 = vperm.xlu0 %2632, %v1481
        %v2634 = vpop.permute.xlu0 %2633
        %2636 = vset.pattern.permute.xlu0 7
        %2637 = vperm.xlu0 %2636, %v1482
        %v2638 = vpop.permute.xlu0 %2637
        %2640 = vset.pattern.permute.xlu0 7
        %2641 = vperm.xlu0 %2640, %v1483
        %v2642 = vpop.permute.xlu0 %2641
        %2644 = vset.pattern.permute.xlu0 7
        %2645 = vperm.xlu0 %2644, %v1484
        %v2646 = vpop.permute.xlu0 %2645
        %2648 = vset.pattern.permute.xlu0 7
        %2649 = vperm.xlu0 %2648, %v1485
        %v2650 = vpop.permute.xlu0 %2649
        %2652 = vset.pattern.permute.xlu0 7
        %2653 = vperm.xlu0 %2652, %v1486
        %v2654 = vpop.permute.xlu0 %2653
        %2656 = vset.pattern.permute.xlu0 7
        %2657 = vperm.xlu0 %2656, %v1487
        %v2658 = vpop.permute.xlu0 %2657
        %2660 = vset.pattern.permute.xlu0 7
        %2661 = vperm.xlu0 %2660, %v1488
        %v2662 = vpop.permute.xlu0 %2661
        %2664 = vset.pattern.permute.xlu0 7
        %2665 = vperm.xlu0 %2664, %v1489
        %v2666 = vpop.permute.xlu0 %2665
        %2668 = vset.pattern.permute.xlu0 7
        %2669 = vperm.xlu0 %2668, %v1490
        %v2670 = vpop.permute.xlu0 %2669
        %2672 = vset.pattern.permute.xlu0 7
        %2673 = vperm.xlu0 %2672, %v1491
        %v2674 = vpop.permute.xlu0 %2673
        %v2676 = vlaneseq
        %v2677 = vshrl.u32 %v2676, 7
        %v2678 = vsub.s32 7, %v2677
        %v2679 = vrot.slane %v1398, %v2678
        %v2680 = vlaneseq
        %v2681 = vshrl.u32 %v2680, 7
        %v2682 = vsub.s32 7, %v2681
        %v2683 = vrot.slane %v1403, %v2682
        %v2684 = vlaneseq
        %v2685 = vshrl.u32 %v2684, 7
        %v2686 = vsub.s32 7, %v2685
        %v2687 = vrot.slane %v1408, %v2686
        %v2688 = vlaneseq
        %v2689 = vshrl.u32 %v2688, 7
        %v2690 = vsub.s32 7, %v2689
        %v2691 = vrot.slane %v1413, %v2690
        %v2692 = vlaneseq
        %v2693 = vshrl.u32 %v2692, 7
        %v2694 = vsub.s32 7, %v2693
        %v2695 = vrot.slane %v1418, %v2694
        %v2696 = vlaneseq
        %v2697 = vshrl.u32 %v2696, 7
        %v2698 = vsub.s32 7, %v2697
        %v2699 = vrot.slane %v1423, %v2698
        %v2700 = vlaneseq
        %v2701 = vshrl.u32 %v2700, 7
        %v2702 = vsub.s32 7, %v2701
        %v2703 = vrot.slane %v1428, %v2702
        %v2704 = vlaneseq
        %v2705 = vshrl.u32 %v2704, 7
        %v2706 = vsub.s32 7, %v2705
        %v2707 = vrot.slane %v1433, %v2706
        %v2708 = vlaneseq
        %v2709 = vshrl.u32 %v2708, 7
        %v2710 = vsub.s32 7, %v2709
        %v2711 = vrot.slane %v1438, %v2710
        %v2712 = vlaneseq
        %v2713 = vshrl.u32 %v2712, 7
        %v2714 = vsub.s32 7, %v2713
        %v2715 = vrot.slane %v1443, %v2714
        %v2716 = vlaneseq
        %v2717 = vshrl.u32 %v2716, 7
        %v2718 = vsub.s32 7, %v2717
        %v2719 = vrot.slane %v1448, %v2718
        %v2720 = vlaneseq
        %v2721 = vshrl.u32 %v2720, 7
        %v2722 = vsub.s32 7, %v2721
        %v2723 = vrot.slane %v1453, %v2722
        %v2724 = vlaneseq
        %v2725 = vshrl.u32 %v2724, 7
        %v2726 = vsub.s32 7, %v2725
        %v2727 = vrot.slane %v1458, %v2726
        %v2728 = vlaneseq
        %v2729 = vshrl.u32 %v2728, 7
        %v2730 = vsub.s32 7, %v2729
        %v2731 = vrot.slane %v1463, %v2730
        %v2732 = vlaneseq
        %v2733 = vshrl.u32 %v2732, 7
        %v2734 = vsub.s32 7, %v2733
        %v2735 = vrot.slane %v1468, %v2734
        %v2736 = vlaneseq
        %v2737 = vshrl.u32 %v2736, 7
        %v2738 = vsub.s32 7, %v2737
        %v2739 = vrot.slane %v1473, %v2738
        %v2740 = vmul.f32 %v2614, %v2679
        %v2741 = vmul.f32 %v2618, %v2683
        %v2742 = vmul.f32 %v2622, %v2687
        %v2743 = vmul.f32 %v2626, %v2691
        %v2744 = vmul.f32 %v2630, %v2695
        %v2745 = vmul.f32 %v2634, %v2699
        %v2746 = vmul.f32 %v2638, %v2703
        %v2747 = vmul.f32 %v2642, %v2707
        %v2748 = vmul.f32 %v2646, %v2711
        %v2749 = vmul.f32 %v2650, %v2715
        %v2750 = vmul.f32 %v2654, %v2719
        %v2751 = vmul.f32 %v2658, %v2723
        %v2752 = vmul.f32 %v2662, %v2727
        %v2753 = vmul.f32 %v2666, %v2731
        %v2754 = vmul.f32 %v2670, %v2735
        %v2755 = vmul.f32 %v2674, %v2739
        %v2756 = vadd.f32 %v2596, %v2740
        %v2757 = vadd.f32 %v2597, %v2741
        %v2758 = vadd.f32 %v2598, %v2742
        %v2759 = vadd.f32 %v2599, %v2743
        %v2760 = vadd.f32 %v2600, %v2744
        %v2761 = vadd.f32 %v2601, %v2745
        %v2762 = vadd.f32 %v2602, %v2746
        %v2763 = vadd.f32 %v2603, %v2747
        %v2764 = vadd.f32 %v2604, %v2748
        %v2765 = vadd.f32 %v2605, %v2749
        %v2766 = vadd.f32 %v2606, %v2750
        %v2767 = vadd.f32 %v2607, %v2751
        %v2768 = vadd.f32 %v2608, %v2752
        %v2769 = vadd.f32 %v2609, %v2753
        %v2770 = vadd.f32 %v2610, %v2754
        %v2771 = vadd.f32 %v2611, %v2755
        %v2772 = vadd.f32 %v2756, %v927
        %v2773 = vadd.f32 %v2757, %v927
        %v2774 = vadd.f32 %v2758, %v927
        %v2775 = vadd.f32 %v2759, %v927
        %v2776 = vadd.f32 %v2760, %v927
        %v2777 = vadd.f32 %v2761, %v927
        %v2778 = vadd.f32 %v2762, %v927
        %v2779 = vadd.f32 %v2763, %v927
        %v2780 = vadd.f32 %v2764, %v927
        %v2781 = vadd.f32 %v2765, %v927
        %v2782 = vadd.f32 %v2766, %v927
        %v2783 = vadd.f32 %v2767, %v927
        %v2784 = vadd.f32 %v2768, %v927
        %v2785 = vadd.f32 %v2769, %v927
        %v2786 = vadd.f32 %v2770, %v927
        %v2787 = vadd.f32 %v2771, %v927
        %v2788 = vmax.f32 %v2772, 0.0
        %v2789 = vmax.f32 %v2773, 0.0
        %v2790 = vmax.f32 %v2774, 0.0
        %v2791 = vmax.f32 %v2775, 0.0
        %v2792 = vmax.f32 %v2776, 0.0
        %v2793 = vmax.f32 %v2777, 0.0
        %v2794 = vmax.f32 %v2778, 0.0
        %v2795 = vmax.f32 %v2779, 0.0
        %v2796 = vmax.f32 %v2780, 0.0
        %v2797 = vmax.f32 %v2781, 0.0
        %v2798 = vmax.f32 %v2782, 0.0
        %v2799 = vmax.f32 %v2783, 0.0
        %v2800 = vmax.f32 %v2784, 0.0
        %v2801 = vmax.f32 %v2785, 0.0
        %v2802 = vmax.f32 %v2786, 0.0
        %v2803 = vmax.f32 %v2787, 0.0
        %v2804 = vlaneseq
        %v2805 = vshrl.u32 %v2804, 7
        %vm2806 = vcmp.eq.s32.totalorder %v2805, %v602
        %vm2807 = vcmp.eq.s32.totalorder %v2805, %v617
        %vm2808 = vcmp.eq.s32.totalorder %v2805, %v632
        %vm2809 = vcmp.eq.s32.totalorder %v2805, %v647
        %vm2810 = vcmp.eq.s32.totalorder %v2805, %v662
        %vm2811 = vcmp.eq.s32.totalorder %v2805, %v677
        %vm2812 = vcmp.eq.s32.totalorder %v2805, %v692
        %vm2813 = vcmp.eq.s32.totalorder %v2805, %v707
        %vm2814 = vcmp.eq.s32.totalorder %v2805, %v722
        %vm2815 = vcmp.eq.s32.totalorder %v2805, %v737
        %vm2816 = vcmp.eq.s32.totalorder %v2805, %v752
        %vm2817 = vcmp.eq.s32.totalorder %v2805, %v767
        %vm2818 = vcmp.eq.s32.totalorder %v2805, %v782
        %vm2819 = vcmp.eq.s32.totalorder %v2805, %v797
        %vm2820 = vcmp.eq.s32.totalorder %v2805, %v812
        %vm2821 = vcmp.eq.s32.totalorder %v2805, %v827
        %v2822 = vsel %vm2806, 1, 0
        %v2823 = vsel %vm2807, 1, 0
        %v2824 = vsel %vm2808, 1, 0
        %v2825 = vsel %vm2809, 1, 0
        %v2826 = vsel %vm2810, 1, 0
        %v2827 = vsel %vm2811, 1, 0
        %v2828 = vsel %vm2812, 1, 0
        %v2829 = vsel %vm2813, 1, 0
        %v2830 = vsel %vm2814, 1, 0
        %v2831 = vsel %vm2815, 1, 0
        %v2832 = vsel %vm2816, 1, 0
        %v2833 = vsel %vm2817, 1, 0
        %v2834 = vsel %vm2818, 1, 0
        %v2835 = vsel %vm2819, 1, 0
        %v2836 = vsel %vm2820, 1, 0
        %v2837 = vsel %vm2821, 1, 0
        %v2838 = vcvt.s32.f32 %v2822
        %v2839 = vcvt.s32.f32 %v2823
        %v2840 = vcvt.s32.f32 %v2824
        %v2841 = vcvt.s32.f32 %v2825
        %v2842 = vcvt.s32.f32 %v2826
        %v2843 = vcvt.s32.f32 %v2827
        %v2844 = vcvt.s32.f32 %v2828
        %v2845 = vcvt.s32.f32 %v2829
        %v2846 = vcvt.s32.f32 %v2830
        %v2847 = vcvt.s32.f32 %v2831
        %v2848 = vcvt.s32.f32 %v2832
        %v2849 = vcvt.s32.f32 %v2833
        %v2850 = vcvt.s32.f32 %v2834
        %v2851 = vcvt.s32.f32 %v2835
        %v2852 = vcvt.s32.f32 %v2836
        %v2853 = vcvt.s32.f32 %v2837
        %v2854 = vmul.f32 %v2838, %v1253
        %v2855 = vmul.f32 %v2839, %v1258
        %v2856 = vmul.f32 %v2840, %v1263
        %v2857 = vmul.f32 %v2841, %v1268
        %v2858 = vmul.f32 %v2842, %v1273
        %v2859 = vmul.f32 %v2843, %v1278
        %v2860 = vmul.f32 %v2844, %v1283
        %v2861 = vmul.f32 %v2845, %v1288
        %v2862 = vmul.f32 %v2846, %v1293
        %v2863 = vmul.f32 %v2847, %v1298
        %v2864 = vmul.f32 %v2848, %v1303
        %v2865 = vmul.f32 %v2849, %v1308
        %v2866 = vmul.f32 %v2850, %v1313
        %v2867 = vmul.f32 %v2851, %v1318
        %v2868 = vmul.f32 %v2852, %v1323
        %v2869 = vmul.f32 %v2853, %v1328
        %v2870 = vsel %vm928, %v2854, 0.0
        %v2871 = vrot.slane %v2870, 4
        %v2872 = vadd.f32 %v2870, %v2871
        %v2873 = vrot.slane %v2872, 2
        %v2874 = vadd.f32 %v2872, %v2873
        %v2875 = vrot.slane %v2874, 1
        %v2876 = vadd.f32 %v2874, %v2875
        %v2877 = vsel %vm928, %v2855, 0.0
        %v2878 = vrot.slane %v2877, 4
        %v2879 = vadd.f32 %v2877, %v2878
        %v2880 = vrot.slane %v2879, 2
        %v2881 = vadd.f32 %v2879, %v2880
        %v2882 = vrot.slane %v2881, 1
        %v2883 = vadd.f32 %v2881, %v2882
        %v2884 = vsel %vm928, %v2856, 0.0
        %v2885 = vrot.slane %v2884, 4
        %v2886 = vadd.f32 %v2884, %v2885
        %v2887 = vrot.slane %v2886, 2
        %v2888 = vadd.f32 %v2886, %v2887
        %v2889 = vrot.slane %v2888, 1
        %v2890 = vadd.f32 %v2888, %v2889
        %v2891 = vsel %vm928, %v2857, 0.0
        %v2892 = vrot.slane %v2891, 4
        %v2893 = vadd.f32 %v2891, %v2892
        %v2894 = vrot.slane %v2893, 2
        %v2895 = vadd.f32 %v2893, %v2894
        %v2896 = vrot.slane %v2895, 1
        %v2897 = vadd.f32 %v2895, %v2896
        %v2898 = vsel %vm928, %v2858, 0.0
        %v2899 = vrot.slane %v2898, 4
        %v2900 = vadd.f32 %v2898, %v2899
        %v2901 = vrot.slane %v2900, 2
        %v2902 = vadd.f32 %v2900, %v2901
        %v2903 = vrot.slane %v2902, 1
        %v2904 = vadd.f32 %v2902, %v2903
        %v2905 = vsel %vm928, %v2859, 0.0
        %v2906 = vrot.slane %v2905, 4
        %v2907 = vadd.f32 %v2905, %v2906
        %v2908 = vrot.slane %v2907, 2
        %v2909 = vadd.f32 %v2907, %v2908
        %v2910 = vrot.slane %v2909, 1
        %v2911 = vadd.f32 %v2909, %v2910
        %v2912 = vsel %vm928, %v2860, 0.0
        %v2913 = vrot.slane %v2912, 4
        %v2914 = vadd.f32 %v2912, %v2913
        %v2915 = vrot.slane %v2914, 2
        %v2916 = vadd.f32 %v2914, %v2915
        %v2917 = vrot.slane %v2916, 1
        %v2918 = vadd.f32 %v2916, %v2917
        %v2919 = vsel %vm928, %v2861, 0.0
        %v2920 = vrot.slane %v2919, 4
        %v2921 = vadd.f32 %v2919, %v2920
        %v2922 = vrot.slane %v2921, 2
        %v2923 = vadd.f32 %v2921, %v2922
        %v2924 = vrot.slane %v2923, 1
        %v2925 = vadd.f32 %v2923, %v2924
        %v2926 = vsel %vm928, %v2862, 0.0
        %v2927 = vrot.slane %v2926, 4
        %v2928 = vadd.f32 %v2926, %v2927
        %v2929 = vrot.slane %v2928, 2
        %v2930 = vadd.f32 %v2928, %v2929
        %v2931 = vrot.slane %v2930, 1
        %v2932 = vadd.f32 %v2930, %v2931
        %v2933 = vsel %vm928, %v2863, 0.0
        %v2934 = vrot.slane %v2933, 4
        %v2935 = vadd.f32 %v2933, %v2934
        %v2936 = vrot.slane %v2935, 2
        %v2937 = vadd.f32 %v2935, %v2936
        %v2938 = vrot.slane %v2937, 1
        %v2939 = vadd.f32 %v2937, %v2938
        %v2940 = vsel %vm928, %v2864, 0.0
        %v2941 = vrot.slane %v2940, 4
        %v2942 = vadd.f32 %v2940, %v2941
        %v2943 = vrot.slane %v2942, 2
        %v2944 = vadd.f32 %v2942, %v2943
        %v2945 = vrot.slane %v2944, 1
        %v2946 = vadd.f32 %v2944, %v2945
        %v2947 = vsel %vm928, %v2865, 0.0
        %v2948 = vrot.slane %v2947, 4
        %v2949 = vadd.f32 %v2947, %v2948
        %v2950 = vrot.slane %v2949, 2
        %v2951 = vadd.f32 %v2949, %v2950
        %v2952 = vrot.slane %v2951, 1
        %v2953 = vadd.f32 %v2951, %v2952
        %v2954 = vsel %vm928, %v2866, 0.0
        %v2955 = vrot.slane %v2954, 4
        %v2956 = vadd.f32 %v2954, %v2955
        %v2957 = vrot.slane %v2956, 2
        %v2958 = vadd.f32 %v2956, %v2957
        %v2959 = vrot.slane %v2958, 1
        %v2960 = vadd.f32 %v2958, %v2959
        %v2961 = vsel %vm928, %v2867, 0.0
        %v2962 = vrot.slane %v2961, 4
        %v2963 = vadd.f32 %v2961, %v2962
        %v2964 = vrot.slane %v2963, 2
        %v2965 = vadd.f32 %v2963, %v2964
        %v2966 = vrot.slane %v2965, 1
        %v2967 = vadd.f32 %v2965, %v2966
        %v2968 = vsel %vm928, %v2868, 0.0
        %v2969 = vrot.slane %v2968, 4
        %v2970 = vadd.f32 %v2968, %v2969
        %v2971 = vrot.slane %v2970, 2
        %v2972 = vadd.f32 %v2970, %v2971
        %v2973 = vrot.slane %v2972, 1
        %v2974 = vadd.f32 %v2972, %v2973
        %v2975 = vsel %vm928, %v2869, 0.0
        %v2976 = vrot.slane %v2975, 4
        %v2977 = vadd.f32 %v2975, %v2976
        %v2978 = vrot.slane %v2977, 2
        %v2979 = vadd.f32 %v2977, %v2978
        %v2980 = vrot.slane %v2979, 1
        %v2981 = vadd.f32 %v2979, %v2980
        %v2982 = vmul.f32 %v2876, %v2788
        %v2983 = vmul.f32 %v2883, %v2789
        %v2984 = vmul.f32 %v2890, %v2790
        %v2985 = vmul.f32 %v2897, %v2791
        %v2986 = vmul.f32 %v2904, %v2792
        %v2987 = vmul.f32 %v2911, %v2793
        %v2988 = vmul.f32 %v2918, %v2794
        %v2989 = vmul.f32 %v2925, %v2795
        %v2990 = vmul.f32 %v2932, %v2796
        %v2991 = vmul.f32 %v2939, %v2797
        %v2992 = vmul.f32 %v2946, %v2798
        %v2993 = vmul.f32 %v2953, %v2799
        %v2994 = vmul.f32 %v2960, %v2800
        %v2995 = vmul.f32 %v2967, %v2801
        %v2996 = vmul.f32 %v2974, %v2802
        %v2997 = vmul.f32 %v2981, %v2803
        %vm2998 = vcmask 259072
        %v2999 = vsel %vm2998, %v2982, 0.0
        %3000 = vadd.xlane.f32.xlu0 %v2999
        %v3001 = vpop.xlane.xlu0 %3000
        %v3002 = vsel %vm2998, %v2983, 0.0
        %3003 = vadd.xlane.f32.xlu0 %v3002
        %v3004 = vpop.xlane.xlu0 %3003
        %v3005 = vsel %vm2998, %v2984, 0.0
        %3006 = vadd.xlane.f32.xlu0 %v3005
        %v3007 = vpop.xlane.xlu0 %3006
        %v3008 = vsel %vm2998, %v2985, 0.0
        %3009 = vadd.xlane.f32.xlu0 %v3008
        %v3010 = vpop.xlane.xlu0 %3009
        %v3011 = vsel %vm2998, %v2986, 0.0
        %3012 = vadd.xlane.f32.xlu0 %v3011
        %v3013 = vpop.xlane.xlu0 %3012
        %v3014 = vsel %vm2998, %v2987, 0.0
        %3015 = vadd.xlane.f32.xlu0 %v3014
        %v3016 = vpop.xlane.xlu0 %3015
        %v3017 = vsel %vm2998, %v2988, 0.0
        %3018 = vadd.xlane.f32.xlu0 %v3017
        %v3019 = vpop.xlane.xlu0 %3018
        %v3020 = vsel %vm2998, %v2989, 0.0
        %3021 = vadd.xlane.f32.xlu0 %v3020
        %v3022 = vpop.xlane.xlu0 %3021
        %v3023 = vsel %vm2998, %v2990, 0.0
        %3024 = vadd.xlane.f32.xlu0 %v3023
        %v3025 = vpop.xlane.xlu0 %3024
        %v3026 = vsel %vm2998, %v2991, 0.0
        %3027 = vadd.xlane.f32.xlu0 %v3026
        %v3028 = vpop.xlane.xlu0 %3027
        %v3029 = vsel %vm2998, %v2992, 0.0
        %3030 = vadd.xlane.f32.xlu0 %v3029
        %v3031 = vpop.xlane.xlu0 %3030
        %v3032 = vsel %vm2998, %v2993, 0.0
        %3033 = vadd.xlane.f32.xlu0 %v3032
        %v3034 = vpop.xlane.xlu0 %3033
        %v3035 = vsel %vm2998, %v2994, 0.0
        %3036 = vadd.xlane.f32.xlu0 %v3035
        %v3037 = vpop.xlane.xlu0 %3036
        %v3038 = vsel %vm2998, %v2995, 0.0
        %3039 = vadd.xlane.f32.xlu0 %v3038
        %v3040 = vpop.xlane.xlu0 %3039
        %v3041 = vsel %vm2998, %v2996, 0.0
        %3042 = vadd.xlane.f32.xlu0 %v3041
        %v3043 = vpop.xlane.xlu0 %3042
        %v3044 = vsel %vm2998, %v2997, 0.0
        %3045 = vadd.xlane.f32.xlu0 %v3044
        %v3046 = vpop.xlane.xlu0 %3045
        %vm3047 = vcmp.eq.s32.totalorder %v441, %v2805
        %v3048 = vsel %vm3047, 1, 0
        %v3049 = vcvt.s32.f32 %v3048
        %v3050 = vmul.f32 %v3001, %v3049
        %v3051 = vmul.f32 %v3004, %v3049
        %v3052 = vmul.f32 %v3007, %v3049
        %v3053 = vmul.f32 %v3010, %v3049
        %v3054 = vmul.f32 %v3013, %v3049
        %v3055 = vmul.f32 %v3016, %v3049
        %v3056 = vmul.f32 %v3019, %v3049
        %v3057 = vmul.f32 %v3022, %v3049
        %v3058 = vmul.f32 %v3025, %v3049
        %v3059 = vmul.f32 %v3028, %v3049
        %v3060 = vmul.f32 %v3031, %v3049
        %v3061 = vmul.f32 %v3034, %v3049
        %v3062 = vmul.f32 %v3037, %v3049
        %v3063 = vmul.f32 %v3040, %v3049
        %v3064 = vmul.f32 %v3043, %v3049
        %v3065 = vmul.f32 %v3046, %v3049
        %vm3066 = vcmask 1045504
        %v3067 = vsel %vm3066, %v3050, 0.0
        %v3068 = vrot.slane %v3067, 4
        %v3069 = vadd.f32 %v3067, %v3068
        %v3070 = vrot.slane %v3069, 2
        %v3071 = vadd.f32 %v3069, %v3070
        %v3072 = vrot.slane %v3071, 1
        %v3073 = vadd.f32 %v3071, %v3072
        %v3074 = vsel %vm3066, %v3051, 0.0
        %v3075 = vrot.slane %v3074, 4
        %v3076 = vadd.f32 %v3074, %v3075
        %v3077 = vrot.slane %v3076, 2
        %v3078 = vadd.f32 %v3076, %v3077
        %v3079 = vrot.slane %v3078, 1
        %v3080 = vadd.f32 %v3078, %v3079
        %v3081 = vsel %vm3066, %v3052, 0.0
        %v3082 = vrot.slane %v3081, 4
        %v3083 = vadd.f32 %v3081, %v3082
        %v3084 = vrot.slane %v3083, 2
        %v3085 = vadd.f32 %v3083, %v3084
        %v3086 = vrot.slane %v3085, 1
        %v3087 = vadd.f32 %v3085, %v3086
        %v3088 = vsel %vm3066, %v3053, 0.0
        %v3089 = vrot.slane %v3088, 4
        %v3090 = vadd.f32 %v3088, %v3089
        %v3091 = vrot.slane %v3090, 2
        %v3092 = vadd.f32 %v3090, %v3091
        %v3093 = vrot.slane %v3092, 1
        %v3094 = vadd.f32 %v3092, %v3093
        %v3095 = vsel %vm3066, %v3054, 0.0
        %v3096 = vrot.slane %v3095, 4
        %v3097 = vadd.f32 %v3095, %v3096
        %v3098 = vrot.slane %v3097, 2
        %v3099 = vadd.f32 %v3097, %v3098
        %v3100 = vrot.slane %v3099, 1
        %v3101 = vadd.f32 %v3099, %v3100
        %v3102 = vsel %vm3066, %v3055, 0.0
        %v3103 = vrot.slane %v3102, 4
        %v3104 = vadd.f32 %v3102, %v3103
        %v3105 = vrot.slane %v3104, 2
        %v3106 = vadd.f32 %v3104, %v3105
        %v3107 = vrot.slane %v3106, 1
        %v3108 = vadd.f32 %v3106, %v3107
        %v3109 = vsel %vm3066, %v3056, 0.0
        %v3110 = vrot.slane %v3109, 4
        %v3111 = vadd.f32 %v3109, %v3110
        %v3112 = vrot.slane %v3111, 2
        %v3113 = vadd.f32 %v3111, %v3112
        %v3114 = vrot.slane %v3113, 1
        %v3115 = vadd.f32 %v3113, %v3114
        %v3116 = vsel %vm3066, %v3057, 0.0
        %v3117 = vrot.slane %v3116, 4
        %v3118 = vadd.f32 %v3116, %v3117
        %v3119 = vrot.slane %v3118, 2
        %v3120 = vadd.f32 %v3118, %v3119
        %v3121 = vrot.slane %v3120, 1
        %v3122 = vadd.f32 %v3120, %v3121
        %v3123 = vsel %vm3066, %v3058, 0.0
        %v3124 = vrot.slane %v3123, 4
        %v3125 = vadd.f32 %v3123, %v3124
        %v3126 = vrot.slane %v3125, 2
        %v3127 = vadd.f32 %v3125, %v3126
        %v3128 = vrot.slane %v3127, 1
        %v3129 = vadd.f32 %v3127, %v3128
        %v3130 = vsel %vm3066, %v3059, 0.0
        %v3131 = vrot.slane %v3130, 4
        %v3132 = vadd.f32 %v3130, %v3131
        %v3133 = vrot.slane %v3132, 2
        %v3134 = vadd.f32 %v3132, %v3133
        %v3135 = vrot.slane %v3134, 1
        %v3136 = vadd.f32 %v3134, %v3135
        %v3137 = vsel %vm3066, %v3060, 0.0
        %v3138 = vrot.slane %v3137, 4
        %v3139 = vadd.f32 %v3137, %v3138
        %v3140 = vrot.slane %v3139, 2
        %v3141 = vadd.f32 %v3139, %v3140
        %v3142 = vrot.slane %v3141, 1
        %v3143 = vadd.f32 %v3141, %v3142
        %v3144 = vsel %vm3066, %v3061, 0.0
        %v3145 = vrot.slane %v3144, 4
        %v3146 = vadd.f32 %v3144, %v3145
        %v3147 = vrot.slane %v3146, 2
        %v3148 = vadd.f32 %v3146, %v3147
        %v3149 = vrot.slane %v3148, 1
        %v3150 = vadd.f32 %v3148, %v3149
        %v3151 = vsel %vm3066, %v3062, 0.0
        %v3152 = vrot.slane %v3151, 4
        %v3153 = vadd.f32 %v3151, %v3152
        %v3154 = vrot.slane %v3153, 2
        %v3155 = vadd.f32 %v3153, %v3154
        %v3156 = vrot.slane %v3155, 1
        %v3157 = vadd.f32 %v3155, %v3156
        %v3158 = vsel %vm3066, %v3063, 0.0
        %v3159 = vrot.slane %v3158, 4
        %v3160 = vadd.f32 %v3158, %v3159
        %v3161 = vrot.slane %v3160, 2
        %v3162 = vadd.f32 %v3160, %v3161
        %v3163 = vrot.slane %v3162, 1
        %v3164 = vadd.f32 %v3162, %v3163
        %v3165 = vsel %vm3066, %v3064, 0.0
        %v3166 = vrot.slane %v3165, 4
        %v3167 = vadd.f32 %v3165, %v3166
        %v3168 = vrot.slane %v3167, 2
        %v3169 = vadd.f32 %v3167, %v3168
        %v3170 = vrot.slane %v3169, 1
        %v3171 = vadd.f32 %v3169, %v3170
        %v3172 = vsel %vm3066, %v3065, 0.0
        %v3173 = vrot.slane %v3172, 4
        %v3174 = vadd.f32 %v3172, %v3173
        %v3175 = vrot.slane %v3174, 2
        %v3176 = vadd.f32 %v3174, %v3175
        %v3177 = vrot.slane %v3176, 1
        %v3178 = vadd.f32 %v3176, %v3177
        %vm3179 = vcmp.lt.s32.totalorder %v441, 6
        %v3180 = vsel %vm3179, %v3073, -1e+30
        %v3181 = vsel %vm3179, %v3080, -1e+30
        %v3182 = vsel %vm3179, %v3087, -1e+30
        %v3183 = vsel %vm3179, %v3094, -1e+30
        %v3184 = vsel %vm3179, %v3101, -1e+30
        %v3185 = vsel %vm3179, %v3108, -1e+30
        %v3186 = vsel %vm3179, %v3115, -1e+30
        %v3187 = vsel %vm3179, %v3122, -1e+30
        %v3188 = vsel %vm3179, %v3129, -1e+30
        %v3189 = vsel %vm3179, %v3136, -1e+30
        %v3190 = vsel %vm3179, %v3143, -1e+30
        %v3191 = vsel %vm3179, %v3150, -1e+30
        %v3192 = vsel %vm3179, %v3157, -1e+30
        %v3193 = vsel %vm3179, %v3164, -1e+30
        %v3194 = vsel %vm3179, %v3171, -1e+30
        %v3195 = vsel %vm3179, %v3178, -1e+30
        %3196 = vmax.xlane.f32.xlu0 %v3180
        %v3197 = vpop.xlane.xlu0 %3196
        %3198 = vmax.xlane.f32.xlu0 %v3181
        %v3199 = vpop.xlane.xlu0 %3198
        %3200 = vmax.xlane.f32.xlu0 %v3182
        %v3201 = vpop.xlane.xlu0 %3200
        %3202 = vmax.xlane.f32.xlu0 %v3183
        %v3203 = vpop.xlane.xlu0 %3202
        %3204 = vmax.xlane.f32.xlu0 %v3184
        %v3205 = vpop.xlane.xlu0 %3204
        %3206 = vmax.xlane.f32.xlu0 %v3185
        %v3207 = vpop.xlane.xlu0 %3206
        %3208 = vmax.xlane.f32.xlu0 %v3186
        %v3209 = vpop.xlane.xlu0 %3208
        %3210 = vmax.xlane.f32.xlu0 %v3187
        %v3211 = vpop.xlane.xlu0 %3210
        %3212 = vmax.xlane.f32.xlu0 %v3188
        %v3213 = vpop.xlane.xlu0 %3212
        %3214 = vmax.xlane.f32.xlu0 %v3189
        %v3215 = vpop.xlane.xlu0 %3214
        %3216 = vmax.xlane.f32.xlu0 %v3190
        %v3217 = vpop.xlane.xlu0 %3216
        %3218 = vmax.xlane.f32.xlu0 %v3191
        %v3219 = vpop.xlane.xlu0 %3218
        %3220 = vmax.xlane.f32.xlu0 %v3192
        %v3221 = vpop.xlane.xlu0 %3220
        %3222 = vmax.xlane.f32.xlu0 %v3193
        %v3223 = vpop.xlane.xlu0 %3222
        %3224 = vmax.xlane.f32.xlu0 %v3194
        %v3225 = vpop.xlane.xlu0 %3224
        %3226 = vmax.xlane.f32.xlu0 %v3195
        %v3227 = vpop.xlane.xlu0 %3226
        %v3228 = vsub.f32 %v3180, %v3197
        %v3229 = vsub.f32 %v3181, %v3199
        %v3230 = vsub.f32 %v3182, %v3201
        %v3231 = vsub.f32 %v3183, %v3203
        %v3232 = vsub.f32 %v3184, %v3205
        %v3233 = vsub.f32 %v3185, %v3207
        %v3234 = vsub.f32 %v3186, %v3209
        %v3235 = vsub.f32 %v3187, %v3211
        %v3236 = vsub.f32 %v3188, %v3213
        %v3237 = vsub.f32 %v3189, %v3215
        %v3238 = vsub.f32 %v3190, %v3217
        %v3239 = vsub.f32 %v3191, %v3219
        %v3240 = vsub.f32 %v3192, %v3221
        %v3241 = vsub.f32 %v3193, %v3223
        %v3242 = vsub.f32 %v3194, %v3225
        %v3243 = vsub.f32 %v3195, %v3227
        %v3244 = vmul.f32 %v3228, 1.442695
        %v3245 = vpow.pop %v3244
        %v3246 = vmul.f32 %v3229, 1.442695
        %v3247 = vpow.pop %v3246
        %v3248 = vmul.f32 %v3230, 1.442695
        %v3249 = vpow.pop %v3248
        %v3250 = vmul.f32 %v3231, 1.442695
        %v3251 = vpow.pop %v3250
        %v3252 = vmul.f32 %v3232, 1.442695
        %v3253 = vpow.pop %v3252
        %v3254 = vmul.f32 %v3233, 1.442695
        %v3255 = vpow.pop %v3254
        %v3256 = vmul.f32 %v3234, 1.442695
        %v3257 = vpow.pop %v3256
        %v3258 = vmul.f32 %v3235, 1.442695
        %v3259 = vpow.pop %v3258
        %v3260 = vmul.f32 %v3236, 1.442695
        %v3261 = vpow.pop %v3260
        %v3262 = vmul.f32 %v3237, 1.442695
        %v3263 = vpow.pop %v3262
        %v3264 = vmul.f32 %v3238, 1.442695
        %v3265 = vpow.pop %v3264
        %v3266 = vmul.f32 %v3239, 1.442695
        %v3267 = vpow.pop %v3266
        %v3268 = vmul.f32 %v3240, 1.442695
        %v3269 = vpow.pop %v3268
        %v3270 = vmul.f32 %v3241, 1.442695
        %v3271 = vpow.pop %v3270
        %v3272 = vmul.f32 %v3242, 1.442695
        %v3273 = vpow.pop %v3272
        %v3274 = vmul.f32 %v3243, 1.442695
        %v3275 = vpow.pop %v3274
        %3276 = vadd.xlane.f32.xlu0 %v3245
        %v3277 = vpop.xlane.xlu0 %3276
        %3278 = vadd.xlane.f32.xlu0 %v3247
        %v3279 = vpop.xlane.xlu0 %3278
        %3280 = vadd.xlane.f32.xlu0 %v3249
        %v3281 = vpop.xlane.xlu0 %3280
        %3282 = vadd.xlane.f32.xlu0 %v3251
        %v3283 = vpop.xlane.xlu0 %3282
        %3284 = vadd.xlane.f32.xlu0 %v3253
        %v3285 = vpop.xlane.xlu0 %3284
        %3286 = vadd.xlane.f32.xlu0 %v3255
        %v3287 = vpop.xlane.xlu0 %3286
        %3288 = vadd.xlane.f32.xlu0 %v3257
        %v3289 = vpop.xlane.xlu0 %3288
        %3290 = vadd.xlane.f32.xlu0 %v3259
        %v3291 = vpop.xlane.xlu0 %3290
        %3292 = vadd.xlane.f32.xlu0 %v3261
        %v3293 = vpop.xlane.xlu0 %3292
        %3294 = vadd.xlane.f32.xlu0 %v3263
        %v3295 = vpop.xlane.xlu0 %3294
        %3296 = vadd.xlane.f32.xlu0 %v3265
        %v3297 = vpop.xlane.xlu0 %3296
        %3298 = vadd.xlane.f32.xlu0 %v3267
        %v3299 = vpop.xlane.xlu0 %3298
        %3300 = vadd.xlane.f32.xlu0 %v3269
        %v3301 = vpop.xlane.xlu0 %3300
        %3302 = vadd.xlane.f32.xlu0 %v3271
        %v3303 = vpop.xlane.xlu0 %3302
        %3304 = vadd.xlane.f32.xlu0 %v3273
        %v3305 = vpop.xlane.xlu0 %3304
        %3306 = vadd.xlane.f32.xlu0 %v3275
        %v3307 = vpop.xlane.xlu0 %3306
        %v3308 = vrcp.pop %v3277
        %v3309 = vrcp.pop %v3279
        %v3310 = vrcp.pop %v3281
        %v3311 = vrcp.pop %v3283
        %v3312 = vrcp.pop %v3285
        %v3313 = vrcp.pop %v3287
        %v3314 = vrcp.pop %v3289
        %v3315 = vrcp.pop %v3291
        %v3316 = vrcp.pop %v3293
        %v3317 = vrcp.pop %v3295
        %v3318 = vrcp.pop %v3297
        %v3319 = vrcp.pop %v3299
        %v3320 = vrcp.pop %v3301
        %v3321 = vrcp.pop %v3303
        %v3322 = vrcp.pop %v3305
        %v3323 = vrcp.pop %v3307
        %v3324 = vmul.f32 %v3245, %v3308
        %v3325 = vmul.f32 %v3247, %v3309
        %v3326 = vmul.f32 %v3249, %v3310
        %v3327 = vmul.f32 %v3251, %v3311
        %v3328 = vmul.f32 %v3253, %v3312
        %v3329 = vmul.f32 %v3255, %v3313
        %v3330 = vmul.f32 %v3257, %v3314
        %v3331 = vmul.f32 %v3259, %v3315
        %v3332 = vmul.f32 %v3261, %v3316
        %v3333 = vmul.f32 %v3263, %v3317
        %v3334 = vmul.f32 %v3265, %v3318
        %v3335 = vmul.f32 %v3267, %v3319
        %v3336 = vmul.f32 %v3269, %v3320
        %v3337 = vmul.f32 %v3271, %v3321
        %v3338 = vmul.f32 %v3273, %v3322
        %v3339 = vmul.f32 %v3275, %v3323
        %3340 = vst [vmem:[%s180] sm:$0x1] %v3324
        %3341 = vst [vmem:[%s180 + $0x1] sm:$0x1] %v3325
        %3342 = vst [vmem:[%s180 + $0x2] sm:$0x1] %v3326
        %3343 = vst [vmem:[%s180 + $0x3] sm:$0x1] %v3327
        %3344 = vst [vmem:[%s180 + $0x4] sm:$0x1] %v3328
        %3345 = vst [vmem:[%s180 + $0x5] sm:$0x1] %v3329
        %3346 = vst [vmem:[%s180 + $0x6] sm:$0x1] %v3330
        %3347 = vst [vmem:[%s180 + $0x7] sm:$0x1] %v3331
        %3348 = vst [vmem:[%s180 + $0x8] sm:$0x1] %v3332
        %3349 = vst [vmem:[%s180 + $0x9] sm:$0x1] %v3333
        %3350 = vst [vmem:[%s180 + $0xa] sm:$0x1] %v3334
        %3351 = vst [vmem:[%s180 + $0xb] sm:$0x1] %v3335
        %3352 = vst [vmem:[%s180 + $0xc] sm:$0x1] %v3336
        %3353 = vst [vmem:[%s180 + $0xd] sm:$0x1] %v3337
        %3354 = vst [vmem:[%s180 + $0xe] sm:$0x1] %v3338
        %3355 = vst [vmem:[%s180 + $0xf] sm:$0x1] %v3339
        %s3356 = sand.u32 %s98, 1
        %s3357 = scalar_lea.sflag [#allocation3], %s3356
        %s3358 = sand.u32 %s98, 1
        %s3359 = smul.addr %s3358, 16
        %s3360 = scalar_lea.vmem [#allocation2], %s3359
        // Predicated region
        $region33: #{tpu_custom_call.1} parent=31 // pred_check
          %p3361 = pneg %p108
        $region34: #{tpu_custom_call.1} parent=31 // pred_check_branch
          %3363 = sbr.rel (%p3361) target = $region36
        $region35: #{tpu_custom_call.1} parent=31 // pred_region
          %s3364 = smul.u32 16, %s17
          %s3366 = ssub.s32 256, 256
          %3367 = vsyncadd %s3357, %s3366
          %s3368 = smul.addr %s3364, 16
          %s3369 = scalar_lea.hbm %s3, %s3368
          %s3370 = sshll.u32 %s3360, 4
          %s3371 = int_to_ptr.vmem [resolvable:$true] %s3370
          %3376 = dma.vmem_to_hbm [thread:$0]  %s3371, 256, %s3369, %s3357, 16, 16, 1
        $region36: #{tpu_custom_call.1} parent=31 // pred_fallthru
          _
      $region32: #{tpu_custom_call.1} parent=5 // pred_fallthru
        _
      %p3377 = scmp.le.s32.totalorder 2, %s12
      // Predicated region
      $region37: #{tpu_custom_call.1} parent=5 // pred_check
        %p3378 = pneg %p3377
      $region38: #{tpu_custom_call.1} parent=5 // pred_check_branch
        %3380 = sbr.rel (%p3378) target = $region40
      $region39: #{tpu_custom_call.1} parent=5 // pred_region
        %s3381 = ssub.s32 %s12, 2
        // Predicated region
        $region41: #{tpu_custom_call.1} parent=39 // pred_check
          %p3382 = pneg %p114
        $region42: #{tpu_custom_call.1} parent=39 // pred_check_branch
          %3384 = sbr.rel (%p3382) target = $region44
        $region43: #{tpu_custom_call.1} parent=39 // pred_region
          %s3385 = sand.u32 %s99, 1
          %s3386 = scalar_lea.sflag [#allocation3], %s3385
          %s3387 = sand.u32 %s99, 1
          %s3388 = smul.addr %s3387, 16
          %s3389 = scalar_lea.vmem [#allocation2], %s3388
          %3390 = dma.done %s3386, 256
        $region44: #{tpu_custom_call.1} parent=39 // pred_fallthru
          _
      $region40: #{tpu_custom_call.1} parent=5 // pred_fallthru
        _
    $region6: #{tpu_custom_call.1} parent=1 // loop_footer
      %s16 = sadd.s32 1, %s12
    $region7: #{tpu_custom_call.1} parent=1 // loop_footer_branch
      %11 = sbr.rel target = $region3
    $region8: #{tpu_custom_call.1} parent=1 // loop_exit
      _
    %3391 = vsyncpa [#allocation3], 1
    %s3392 = scalar_lea.sflag [#allocation3], 1
    %3393 = vsyncpa %s3392, 1

</llo_original>
